<compile_context>
chip_gen: v7x
topology: tpu7x:2x2x1
jax: 0.10.0
libtpu: 0.0.40
codegen_flags: <defaults>
</compile_context>

<pallas_src>
import jax
import jax.numpy as jnp
from jax import lax
from jax.experimental import pallas as pl
from jax.experimental.pallas import tpu as pltpu

# Model dimensions (small, lane-friendly).
FBINS, L1, L2, L3, NCLASS = 64, 128, 128, 64, 8
SUBLANE = 8          # batch padded up to a multiple of this


def _softsign_ref(x):
    return x / (1.0 + jnp.abs(x))


def network_kernel(x_ref, h1_init_ref, h2_init_ref,
                   w1x_ref, w1h_ref, b1_ref,
                   w2x_ref, w2h_ref, b2_ref,
                   w3_ref, b3_ref, w4_ref, b4_ref,
                   out_ref,
                   xproj_scr, h2_all_scr):
    B = h1_init_ref.shape[0]            # padded batch (multiple of 8)
    T = x_ref.shape[0] // B

    def softsign(v):
        # exact reciprocal (keeps agreement with the reference at 1e-4)
        return v * pl.reciprocal(1.0 + jnp.abs(v), approx=False)

    # ---- pre-loop: batched x-projection for all timesteps (b1 folded in) ----
    xproj_scr[...] = (
        jnp.dot(x_ref[...], w1x_ref[...], preferred_element_type=jnp.float32)
        + b1_ref[...])

    # Invariants hoisted out of the (unrolled) loop body.
    b2b = jnp.broadcast_to(b2_ref[...], (B, 2 * L2))

    def step(t, carry):
        h1, h2 = carry
        row = pl.multiple_of(t * B, SUBLANE)

        # ---- eGRU cell 1: only the recurrent h matmul is in the loop -------
        g1 = (jnp.dot(h1, w1h_ref[...], preferred_element_type=jnp.float32)
              + xproj_scr[pl.ds(row, B), :])
        z1 = jax.nn.sigmoid(g1[:, :L1])
        n1 = softsign(g1[:, L1:])
        h1 = z1 * h1 + (1.0 - z1) * n1

        # ---- eGRU cell 2: two direct dots from vregs (no scratch concat) ---
        g2 = (jnp.dot(h1, w2x_ref[...], preferred_element_type=jnp.float32)
              + jnp.dot(h2, w2h_ref[...], preferred_element_type=jnp.float32)
              + b2b)
        z2 = jax.nn.sigmoid(g2[:, :L2])
        n2 = softsign(g2[:, L2:])
        h2 = z2 * h2 + (1.0 - z2) * n2

        # Stash h2 for the batched post-loop head.
        h2_all_scr[pl.ds(row, B), :] = h2
        return (h1, h2)

    # Sequential recurrence over time, fully in-kernel.  Full unroll for small
    # T (LLO scheduling visibility), partial unroll otherwise.
    unroll = True if T <= 16 else 4
    lax.fori_loop(0, T, step, (h1_init_ref[...], h2_init_ref[...]),
                  unroll=unroll)

    # ---- post-loop: batched fc3 + ReLU + fc4 + log_softmax, one bulk store --
    h2_all = h2_all_scr[...]                                   # (T*B, L2)
    h3 = jnp.maximum(
        jnp.dot(h2_all, w3_ref[...], preferred_element_type=jnp.float32)
        + b3_ref[...], 0.0)
    h4 = (jnp.dot(h3, w4_ref[...], preferred_element_type=jnp.float32)
          + b4_ref[...])
    m = jnp.max(h4, axis=-1, keepdims=True)
    s = h4 - m
    lse = jnp.log(jnp.sum(jnp.exp(s), axis=-1, keepdims=True))
    out_ref[...] = (s - lse).astype(out_ref.dtype)


def _network_forward_impl(inputs, h1_init, h2_init, params):
    """inputs: (B, T, FBINS) float32.  Returns (B, T, NCLASS) log-probs."""
    B, T, F = inputs.shape
    w1x, w1h, b1, w2x, w2h, b2, w3, b3, w4, b4 = params

    B_pad = ((B + SUBLANE - 1) // SUBLANE) * SUBLANE
    pad_b = B_pad - B

    # Host-side (XLA) prep: transpose to time-major, pad batch, flatten rows.
    x_tbf = jnp.transpose(inputs, (1, 0, 2))                    # (T, B, F)
    x2d = jnp.pad(x_tbf, ((0, 0), (0, pad_b), (0, 0))).reshape(T * B_pad, F)
    h1p = jnp.pad(h1_init, ((0, pad_b), (0, 0)))                # (B_pad, L1)
    h2p = jnp.pad(h2_init, ((0, pad_b), (0, 0)))                # (B_pad, L2)

    vmem = pl.BlockSpec(memory_space=pltpu.MemorySpace.VMEM)

    out2d = pl.pallas_call(
        network_kernel,
        out_shape=jax.ShapeDtypeStruct((T * B_pad, NCLASS), jnp.float32),
        in_specs=[vmem] * 13,
        out_specs=vmem,
        scratch_shapes=[
            pltpu.VMEM((T * B_pad, 2 * L1), jnp.float32),   # xproj (all t)
            pltpu.VMEM((T * B_pad, L2), jnp.float32),       # h2 history
        ],
        compiler_params=pltpu.CompilerParams(
            vmem_limit_bytes=32 * 1024 * 1024),
    )(x2d, h1p, h2p, w1x, w1h, b1, w2x, w2h, b2, w3, b3, w4, b4)

    out_tbc = out2d.reshape(T, B_pad, NCLASS)[:, :B, :]
    return jnp.transpose(out_tbc, (1, 0, 2))                    # (B, T, NCLASS)


network_forward = jax.jit(_network_forward_impl)


def reference_forward(inputs, h1, h2, params):
    """Pure-JAX reference mirroring the PyTorch forward loop."""
    w1x, w1h, b1, w2x, w2h, b2, w3, b3, w4, b4 = params
    B, T, F = inputs.shape
    outs = []
    for t in range(T):
        x = inputs[:, t, :]
        g1 = x @ w1x + h1 @ w1h + b1
        z1 = jax.nn.sigmoid(g1[:, :L1]); n1 = _softsign_ref(g1[:, L1:])
        h1 = z1 * h1 + (1.0 - z1) * n1
        g2 = h1 @ w2x + h2 @ w2h + b2
        z2 = jax.nn.sigmoid(g2[:, :L2]); n2 = _softsign_ref(g2[:, L2:])
        h2 = z2 * h2 + (1.0 - z2) * n2
        h3 = jnp.maximum(h2 @ w3 + b3, 0.0)
        h4 = h3 @ w4 + b4
        outs.append(h4)
    y = jnp.stack(outs, axis=1)                                 # (B, T, NCLASS)
    return jax.nn.log_softmax(y, axis=-1)


def init_params(key):
    ks = jax.random.split(key, 10)
    def u(k, shape, fan_in):
        bound = 1.0 / jnp.sqrt(fan_in)
        return jax.random.uniform(k, shape, jnp.float32, -bound, bound)
    w1x = u(ks[0], (FBINS, 2 * L1), FBINS)
    w1h = u(ks[1], (L1,    2 * L1), L1)
    b1  = u(ks[2], (1,     2 * L1), L1)
    w2x = u(ks[3], (L1,    2 * L2), L1)
    w2h = u(ks[4], (L2,    2 * L2), L2)
    b2  = u(ks[5], (1,     2 * L2), L2)
    w3  = u(ks[6], (L2, L3), L2)
    b3  = u(ks[7], (1,  L3), L2)
    w4  = u(ks[8], (L3, NCLASS), L3)
    b4  = u(ks[9], (1,  NCLASS), L3)
    return (w1x, w1h, b1, w2x, w2h, b2, w3, b3, w4, b4)


if __name__ == "__main__":
    key = jax.random.PRNGKey(0)
    k_x, k_h1, k_h2, k_p = jax.random.split(key, 4)

    B, T = 2, 8
    x = jax.random.normal(k_x, (B, T, FBINS), jnp.float32)
    # The PyTorch forward draws h1, h2 ~ U(-1, 1) each call; we draw them once
    # here deterministically and feed them in.
    h1_init = jax.random.uniform(k_h1, (B, L1), jnp.float32, -1.0, 1.0)
    h2_init = jax.random.uniform(k_h2, (B, L2), jnp.float32, -1.0, 1.0)
    params = init_params(k_p)

    out = network_forward(x, h1_init, h2_init, params)
    out = jax.block_until_ready(out)

    ref = reference_forward(x, h1_init, h2_init, params)
    assert out.shape == (B, T, NCLASS)
    assert jnp.allclose(out, ref, atol=1e-4, rtol=1e-4), "mismatch vs reference"

    print("KERNEL_OK")
</pallas_src>

<mosaic_0001>
module attributes {stable_mosaic.version = 11 : i64} {
  func.func @network_kernel(%arg0: memref<64x64xf32, #tpu.memory_space<vmem>>, %arg1: memref<8x128xf32, #tpu.memory_space<vmem>>, %arg2: memref<8x128xf32, #tpu.memory_space<vmem>>, %arg3: memref<64x256xf32, #tpu.memory_space<vmem>>, %arg4: memref<128x256xf32, #tpu.memory_space<vmem>>, %arg5: memref<1x256xf32, #tpu.memory_space<vmem>>, %arg6: memref<128x256xf32, #tpu.memory_space<vmem>>, %arg7: memref<128x256xf32, #tpu.memory_space<vmem>>, %arg8: memref<1x256xf32, #tpu.memory_space<vmem>>, %arg9: memref<128x64xf32, #tpu.memory_space<vmem>>, %arg10: memref<1x64xf32, #tpu.memory_space<vmem>>, %arg11: memref<64x8xf32, #tpu.memory_space<vmem>>, %arg12: memref<1x8xf32, #tpu.memory_space<vmem>>, %arg13: memref<64x8xf32, #tpu.memory_space<vmem>>, %arg14: memref<64x256xf32, #tpu.memory_space<vmem>>, %arg15: memref<64x128xf32, #tpu.memory_space<vmem>>) attributes {dimension_semantics = [], scalar_prefetch = 0 : i64, scratch_operands = 2 : i64, tpu.core_type = #tpu.core_type<tc>} {
    %c0 = arith.constant 0 : index
    %c0_0 = arith.constant 0 : index
    %0 = vector.load %arg0[%c0, %c0_0] : memref<64x64xf32, #tpu.memory_space<vmem>>, vector<64x64xf32>
    %c0_1 = arith.constant 0 : index
    %c0_2 = arith.constant 0 : index
    %1 = vector.load %arg3[%c0_1, %c0_2] : memref<64x256xf32, #tpu.memory_space<vmem>>, vector<64x256xf32>
    %cst = arith.constant dense<0.000000e+00> : vector<64x256xf32>
    %2 = tpu.matmul %0, %1, %cst {dimension_numbers = #tpu.dot_dimension_numbers<[1], [0], [0], [1], [0, 0, 1, 1], [], []>} : vector<64x64xf32>, vector<64x256xf32>, vector<64x256xf32> -> vector<64x256xf32>
    %c0_3 = arith.constant 0 : index
    %c0_4 = arith.constant 0 : index
    %3 = vector.load %arg5[%c0_3, %c0_4] : memref<1x256xf32, #tpu.memory_space<vmem>>, vector<1x256xf32>
    %4 = vector.broadcast %3 : vector<1x256xf32> to vector<64x256xf32>
    %5 = arith.addf %2, %4 : vector<64x256xf32>
    %c0_5 = arith.constant 0 : index
    %c0_6 = arith.constant 0 : index
    %6 = vector.load %arg14[%c0_5, %c0_6] : memref<64x256xf32, #tpu.memory_space<vmem>>, vector<64x256xf32>
    tpu.vector_store %arg14[%c0_5, %c0_6], %5 {strides = array<i32>} : memref<64x256xf32, #tpu.memory_space<vmem>>, vector<64x256xf32>,
    %c0_7 = arith.constant 0 : index
    %c0_8 = arith.constant 0 : index
    %7 = vector.load %arg8[%c0_7, %c0_8] : memref<1x256xf32, #tpu.memory_space<vmem>>, vector<1x256xf32>
    %8 = vector.shape_cast %7 : vector<1x256xf32> to vector<1x256xf32>
    %9 = vector.broadcast %8 : vector<1x256xf32> to vector<8x256xf32>
    %c0_9 = arith.constant 0 : index
    %c0_10 = arith.constant 0 : index
    %10 = vector.load %arg1[%c0_9, %c0_10] : memref<8x128xf32, #tpu.memory_space<vmem>>, vector<8x128xf32>
    %c0_11 = arith.constant 0 : index
    %c0_12 = arith.constant 0 : index
    %11 = vector.load %arg2[%c0_11, %c0_12] : memref<8x128xf32, #tpu.memory_space<vmem>>, vector<8x128xf32>
    %c0_i32 = arith.constant 0 : i32
    %c8_i32 = arith.constant 8 : i32
    %12 = arith.muli %c0_i32, %c8_i32 : i32
    %13 = tpu.assume_multiple %12, 8 : i32
    %c0_13 = arith.constant 0 : index
    %c0_14 = arith.constant 0 : index
    %14 = vector.load %arg4[%c0_13, %c0_14] : memref<128x256xf32, #tpu.memory_space<vmem>>, vector<128x256xf32>
    %cst_15 = arith.constant dense<0.000000e+00> : vector<8x256xf32>
    %15 = tpu.matmul %10, %14, %cst_15 {dimension_numbers = #tpu.dot_dimension_numbers<[1], [0], [0], [1], [0, 0, 1, 1], [], []>} : vector<8x128xf32>, vector<128x256xf32>, vector<8x256xf32> -> vector<8x256xf32>
    %16 = arith.index_cast %13 : i32 to index
    %c0_16 = arith.constant 0 : index
    %17 = vector.load %arg14[%16, %c0_16] : memref<64x256xf32, #tpu.memory_space<vmem>>, vector<8x256xf32>
    %18 = arith.addf %15, %17 : vector<8x256xf32>
    %19 = vector.extract_strided_slice %18 {offsets = [0, 0], sizes = [8, 128], strides = [1, 1]} : vector<8x256xf32> to vector<8x128xf32>
    %20 = arith.negf %19 : vector<8x128xf32>
    %21 = math.exp %20 : vector<8x128xf32>
    %cst_17 = arith.constant 1.000000e+00 : f32
    %22 = vector.broadcast %cst_17 : f32 to vector<8x128xf32>
    %23 = arith.addf %22, %21 : vector<8x128xf32>
    %24 = arith.divf %22, %23 : vector<8x128xf32>
    %25 = vector.extract_strided_slice %18 {offsets = [0, 128], sizes = [8, 128], strides = [1, 1]} : vector<8x256xf32> to vector<8x128xf32>
    %26 = math.absf %25 : vector<8x128xf32>
    %cst_18 = arith.constant 1.000000e+00 : f32
    %27 = vector.broadcast %cst_18 : f32 to vector<8x128xf32>
    %28 = arith.addf %27, %26 : vector<8x128xf32>
    %29 = tpu.reciprocal %28 : vector<8x128xf32> -> vector<8x128xf32>
    %30 = arith.mulf %25, %29 : vector<8x128xf32>
    %31 = arith.mulf %24, %10 : vector<8x128xf32>
    %cst_19 = arith.constant 1.000000e+00 : f32
    %32 = vector.broadcast %cst_19 : f32 to vector<8x128xf32>
    %33 = arith.subf %32, %24 : vector<8x128xf32>
    %34 = arith.mulf %33, %30 : vector<8x128xf32>
    %35 = arith.addf %31, %34 : vector<8x128xf32>
    %c0_20 = arith.constant 0 : index
    %c0_21 = arith.constant 0 : index
    %36 = vector.load %arg6[%c0_20, %c0_21] : memref<128x256xf32, #tpu.memory_space<vmem>>, vector<128x256xf32>
    %cst_22 = arith.constant dense<0.000000e+00> : vector<8x256xf32>
    %37 = tpu.matmul %35, %36, %cst_22 {dimension_numbers = #tpu.dot_dimension_numbers<[1], [0], [0], [1], [0, 0, 1, 1], [], []>} : vector<8x128xf32>, vector<128x256xf32>, vector<8x256xf32> -> vector<8x256xf32>
    %c0_23 = arith.constant 0 : index
    %c0_24 = arith.constant 0 : index
    %38 = vector.load %arg7[%c0_23, %c0_24] : memref<128x256xf32, #tpu.memory_space<vmem>>, vector<128x256xf32>
    %cst_25 = arith.constant dense<0.000000e+00> : vector<8x256xf32>
    %39 = tpu.matmul %11, %38, %cst_25 {dimension_numbers = #tpu.dot_dimension_numbers<[1], [0], [0], [1], [0, 0, 1, 1], [], []>} : vector<8x128xf32>, vector<128x256xf32>, vector<8x256xf32> -> vector<8x256xf32>
    %40 = arith.addf %37, %39 : vector<8x256xf32>
    %41 = arith.addf %40, %9 : vector<8x256xf32>
    %42 = vector.extract_strided_slice %41 {offsets = [0, 0], sizes = [8, 128], strides = [1, 1]} : vector<8x256xf32> to vector<8x128xf32>
    %43 = arith.negf %42 : vector<8x128xf32>
    %44 = math.exp %43 : vector<8x128xf32>
    %cst_26 = arith.constant 1.000000e+00 : f32
    %45 = vector.broadcast %cst_26 : f32 to vector<8x128xf32>
    %46 = arith.addf %45, %44 : vector<8x128xf32>
    %47 = arith.divf %45, %46 : vector<8x128xf32>
    %48 = vector.extract_strided_slice %41 {offsets = [0, 128], sizes = [8, 128], strides = [1, 1]} : vector<8x256xf32> to vector<8x128xf32>
    %49 = math.absf %48 : vector<8x128xf32>
    %cst_27 = arith.constant 1.000000e+00 : f32
    %50 = vector.broadcast %cst_27 : f32 to vector<8x128xf32>
    %51 = arith.addf %50, %49 : vector<8x128xf32>
    %52 = tpu.reciprocal %51 : vector<8x128xf32> -> vector<8x128xf32>
    %53 = arith.mulf %48, %52 : vector<8x128xf32>
    %54 = arith.mulf %47, %11 : vector<8x128xf32>
    %cst_28 = arith.constant 1.000000e+00 : f32
    %55 = vector.broadcast %cst_28 : f32 to vector<8x128xf32>
    %56 = arith.subf %55, %47 : vector<8x128xf32>
    %57 = arith.mulf %56, %53 : vector<8x128xf32>
    %58 = arith.addf %54, %57 : vector<8x128xf32>
    %59 = arith.index_cast %13 : i32 to index
    %c0_29 = arith.constant 0 : index
    %60 = vector.load %arg15[%59, %c0_29] : memref<64x128xf32, #tpu.memory_space<vmem>>, vector<8x128xf32>
    tpu.vector_store %arg15[%59, %c0_29], %58 {strides = array<i32>} : memref<64x128xf32, #tpu.memory_space<vmem>>, vector<8x128xf32>,
    %c1_i32 = arith.constant 1 : i32
    %c8_i32_30 = arith.constant 8 : i32
    %61 = arith.muli %c1_i32, %c8_i32_30 : i32
    %62 = tpu.assume_multiple %61, 8 : i32
    %c0_31 = arith.constant 0 : index
    %c0_32 = arith.constant 0 : index
    %63 = vector.load %arg4[%c0_31, %c0_32] : memref<128x256xf32, #tpu.memory_space<vmem>>, vector<128x256xf32>
    %cst_33 = arith.constant dense<0.000000e+00> : vector<8x256xf32>
    %64 = tpu.matmul %35, %63, %cst_33 {dimension_numbers = #tpu.dot_dimension_numbers<[1], [0], [0], [1], [0, 0, 1, 1], [], []>} : vector<8x128xf32>, vector<128x256xf32>, vector<8x256xf32> -> vector<8x256xf32>
    %65 = arith.index_cast %62 : i32 to index
    %c0_34 = arith.constant 0 : index
    %66 = vector.load %arg14[%65, %c0_34] : memref<64x256xf32, #tpu.memory_space<vmem>>, vector<8x256xf32>
    %67 = arith.addf %64, %66 : vector<8x256xf32>
    %68 = vector.extract_strided_slice %67 {offsets = [0, 0], sizes = [8, 128], strides = [1, 1]} : vector<8x256xf32> to vector<8x128xf32>
    %69 = arith.negf %68 : vector<8x128xf32>
    %70 = math.exp %69 : vector<8x128xf32>
    %cst_35 = arith.constant 1.000000e+00 : f32
    %71 = vector.broadcast %cst_35 : f32 to vector<8x128xf32>
    %72 = arith.addf %71, %70 : vector<8x128xf32>
    %73 = arith.divf %71, %72 : vector<8x128xf32>
    %74 = vector.extract_strided_slice %67 {offsets = [0, 128], sizes = [8, 128], strides = [1, 1]} : vector<8x256xf32> to vector<8x128xf32>
    %75 = math.absf %74 : vector<8x128xf32>
    %cst_36 = arith.constant 1.000000e+00 : f32
    %76 = vector.broadcast %cst_36 : f32 to vector<8x128xf32>
    %77 = arith.addf %76, %75 : vector<8x128xf32>
    %78 = tpu.reciprocal %77 : vector<8x128xf32> -> vector<8x128xf32>
    %79 = arith.mulf %74, %78 : vector<8x128xf32>
    %80 = arith.mulf %73, %35 : vector<8x128xf32>
    %cst_37 = arith.constant 1.000000e+00 : f32
    %81 = vector.broadcast %cst_37 : f32 to vector<8x128xf32>
    %82 = arith.subf %81, %73 : vector<8x128xf32>
    %83 = arith.mulf %82, %79 : vector<8x128xf32>
    %84 = arith.addf %80, %83 : vector<8x128xf32>
    %c0_38 = arith.constant 0 : index
    %c0_39 = arith.constant 0 : index
    %85 = vector.load %arg6[%c0_38, %c0_39] : memref<128x256xf32, #tpu.memory_space<vmem>>, vector<128x256xf32>
    %cst_40 = arith.constant dense<0.000000e+00> : vector<8x256xf32>
    %86 = tpu.matmul %84, %85, %cst_40 {dimension_numbers = #tpu.dot_dimension_numbers<[1], [0], [0], [1], [0, 0, 1, 1], [], []>} : vector<8x128xf32>, vector<128x256xf32>, vector<8x256xf32> -> vector<8x256xf32>
    %c0_41 = arith.constant 0 : index
    %c0_42 = arith.constant 0 : index
    %87 = vector.load %arg7[%c0_41, %c0_42] : memref<128x256xf32, #tpu.memory_space<vmem>>, vector<128x256xf32>
    %cst_43 = arith.constant dense<0.000000e+00> : vector<8x256xf32>
    %88 = tpu.matmul %58, %87, %cst_43 {dimension_numbers = #tpu.dot_dimension_numbers<[1], [0], [0], [1], [0, 0, 1, 1], [], []>} : vector<8x128xf32>, vector<128x256xf32>, vector<8x256xf32> -> vector<8x256xf32>
    %89 = arith.addf %86, %88 : vector<8x256xf32>
    %90 = arith.addf %89, %9 : vector<8x256xf32>
    %91 = vector.extract_strided_slice %90 {offsets = [0, 0], sizes = [8, 128], strides = [1, 1]} : vector<8x256xf32> to vector<8x128xf32>
    %92 = arith.negf %91 : vector<8x128xf32>
    %93 = math.exp %92 : vector<8x128xf32>
    %cst_44 = arith.constant 1.000000e+00 : f32
    %94 = vector.broadcast %cst_44 : f32 to vector<8x128xf32>
    %95 = arith.addf %94, %93 : vector<8x128xf32>
    %96 = arith.divf %94, %95 : vector<8x128xf32>
    %97 = vector.extract_strided_slice %90 {offsets = [0, 128], sizes = [8, 128], strides = [1, 1]} : vector<8x256xf32> to vector<8x128xf32>
    %98 = math.absf %97 : vector<8x128xf32>
    %cst_45 = arith.constant 1.000000e+00 : f32
    %99 = vector.broadcast %cst_45 : f32 to vector<8x128xf32>
    %100 = arith.addf %99, %98 : vector<8x128xf32>
    %101 = tpu.reciprocal %100 : vector<8x128xf32> -> vector<8x128xf32>
    %102 = arith.mulf %97, %101 : vector<8x128xf32>
    %103 = arith.mulf %96, %58 : vector<8x128xf32>
    %cst_46 = arith.constant 1.000000e+00 : f32
    %104 = vector.broadcast %cst_46 : f32 to vector<8x128xf32>
    %105 = arith.subf %104, %96 : vector<8x128xf32>
    %106 = arith.mulf %105, %102 : vector<8x128xf32>
    %107 = arith.addf %103, %106 : vector<8x128xf32>
    %108 = arith.index_cast %62 : i32 to index
    %c0_47 = arith.constant 0 : index
    %109 = vector.load %arg15[%108, %c0_47] : memref<64x128xf32, #tpu.memory_space<vmem>>, vector<8x128xf32>
    tpu.vector_store %arg15[%108, %c0_47], %107 {strides = array<i32>} : memref<64x128xf32, #tpu.memory_space<vmem>>, vector<8x128xf32>,
    %c2_i32 = arith.constant 2 : i32
    %c8_i32_48 = arith.constant 8 : i32
    %110 = arith.muli %c2_i32, %c8_i32_48 : i32
    %111 = tpu.assume_multiple %110, 8 : i32
    %c0_49 = arith.constant 0 : index
    %c0_50 = arith.constant 0 : index
    %112 = vector.load %arg4[%c0_49, %c0_50] : memref<128x256xf32, #tpu.memory_space<vmem>>, vector<128x256xf32>
    %cst_51 = arith.constant dense<0.000000e+00> : vector<8x256xf32>
    %113 = tpu.matmul %84, %112, %cst_51 {dimension_numbers = #tpu.dot_dimension_numbers<[1], [0], [0], [1], [0, 0, 1, 1], [], []>} : vector<8x128xf32>, vector<128x256xf32>, vector<8x256xf32> -> vector<8x256xf32>
    %114 = arith.index_cast %111 : i32 to index
    %c0_52 = arith.constant 0 : index
    %115 = vector.load %arg14[%114, %c0_52] : memref<64x256xf32, #tpu.memory_space<vmem>>, vector<8x256xf32>
    %116 = arith.addf %113, %115 : vector<8x256xf32>
    %117 = vector.extract_strided_slice %116 {offsets = [0, 0], sizes = [8, 128], strides = [1, 1]} : vector<8x256xf32> to vector<8x128xf32>
    %118 = arith.negf %117 : vector<8x128xf32>
    %119 = math.exp %118 : vector<8x128xf32>
    %cst_53 = arith.constant 1.000000e+00 : f32
    %120 = vector.broadcast %cst_53 : f32 to vector<8x128xf32>
    %121 = arith.addf %120, %119 : vector<8x128xf32>
    %122 = arith.divf %120, %121 : vector<8x128xf32>
    %123 = vector.extract_strided_slice %116 {offsets = [0, 128], sizes = [8, 128], strides = [1, 1]} : vector<8x256xf32> to vector<8x128xf32>
    %124 = math.absf %123 : vector<8x128xf32>
    %cst_54 = arith.constant 1.000000e+00 : f32
    %125 = vector.broadcast %cst_54 : f32 to vector<8x128xf32>
    %126 = arith.addf %125, %124 : vector<8x128xf32>
    %127 = tpu.reciprocal %126 : vector<8x128xf32> -> vector<8x128xf32>
    %128 = arith.mulf %123, %127 : vector<8x128xf32>
    %129 = arith.mulf %122, %84 : vector<8x128xf32>
    %cst_55 = arith.constant 1.000000e+00 : f32
    %130 = vector.broadcast %cst_55 : f32 to vector<8x128xf32>
    %131 = arith.subf %130, %122 : vector<8x128xf32>
    %132 = arith.mulf %131, %128 : vector<8x128xf32>
    %133 = arith.addf %129, %132 : vector<8x128xf32>
    %c0_56 = arith.constant 0 : index
    %c0_57 = arith.constant 0 : index
    %134 = vector.load %arg6[%c0_56, %c0_57] : memref<128x256xf32, #tpu.memory_space<vmem>>, vector<128x256xf32>
    %cst_58 = arith.constant dense<0.000000e+00> : vector<8x256xf32>
    %135 = tpu.matmul %133, %134, %cst_58 {dimension_numbers = #tpu.dot_dimension_numbers<[1], [0], [0], [1], [0, 0, 1, 1], [], []>} : vector<8x128xf32>, vector<128x256xf32>, vector<8x256xf32> -> vector<8x256xf32>
    %c0_59 = arith.constant 0 : index
    %c0_60 = arith.constant 0 : index
    %136 = vector.load %arg7[%c0_59, %c0_60] : memref<128x256xf32, #tpu.memory_space<vmem>>, vector<128x256xf32>
    %cst_61 = arith.constant dense<0.000000e+00> : vector<8x256xf32>
    %137 = tpu.matmul %107, %136, %cst_61 {dimension_numbers = #tpu.dot_dimension_numbers<[1], [0], [0], [1], [0, 0, 1, 1], [], []>} : vector<8x128xf32>, vector<128x256xf32>, vector<8x256xf32> -> vector<8x256xf32>
    %138 = arith.addf %135, %137 : vector<8x256xf32>
    %139 = arith.addf %138, %9 : vector<8x256xf32>
    %140 = vector.extract_strided_slice %139 {offsets = [0, 0], sizes = [8, 128], strides = [1, 1]} : vector<8x256xf32> to vector<8x128xf32>
    %141 = arith.negf %140 : vector<8x128xf32>
    %142 = math.exp %141 : vector<8x128xf32>
    %cst_62 = arith.constant 1.000000e+00 : f32
    %143 = vector.broadcast %cst_62 : f32 to vector<8x128xf32>
    %144 = arith.addf %143, %142 : vector<8x128xf32>
    %145 = arith.divf %143, %144 : vector<8x128xf32>
    %146 = vector.extract_strided_slice %139 {offsets = [0, 128], sizes = [8, 128], strides = [1, 1]} : vector<8x256xf32> to vector<8x128xf32>
    %147 = math.absf %146 : vector<8x128xf32>
    %cst_63 = arith.constant 1.000000e+00 : f32
    %148 = vector.broadcast %cst_63 : f32 to vector<8x128xf32>
    %149 = arith.addf %148, %147 : vector<8x128xf32>
    %150 = tpu.reciprocal %149 : vector<8x128xf32> -> vector<8x128xf32>
    %151 = arith.mulf %146, %150 : vector<8x128xf32>
    %152 = arith.mulf %145, %107 : vector<8x128xf32>
    %cst_64 = arith.constant 1.000000e+00 : f32
    %153 = vector.broadcast %cst_64 : f32 to vector<8x128xf32>
    %154 = arith.subf %153, %145 : vector<8x128xf32>
    %155 = arith.mulf %154, %151 : vector<8x128xf32>
    %156 = arith.addf %152, %155 : vector<8x128xf32>
    %157 = arith.index_cast %111 : i32 to index
    %c0_65 = arith.constant 0 : index
    %158 = vector.load %arg15[%157, %c0_65] : memref<64x128xf32, #tpu.memory_space<vmem>>, vector<8x128xf32>
    tpu.vector_store %arg15[%157, %c0_65], %156 {strides = array<i32>} : memref<64x128xf32, #tpu.memory_space<vmem>>, vector<8x128xf32>,
    %c3_i32 = arith.constant 3 : i32
    %c8_i32_66 = arith.constant 8 : i32
    %159 = arith.muli %c3_i32, %c8_i32_66 : i32
    %160 = tpu.assume_multiple %159, 8 : i32
    %c0_67 = arith.constant 0 : index
    %c0_68 = arith.constant 0 : index
    %161 = vector.load %arg4[%c0_67, %c0_68] : memref<128x256xf32, #tpu.memory_space<vmem>>, vector<128x256xf32>
    %cst_69 = arith.constant dense<0.000000e+00> : vector<8x256xf32>
    %162 = tpu.matmul %133, %161, %cst_69 {dimension_numbers = #tpu.dot_dimension_numbers<[1], [0], [0], [1], [0, 0, 1, 1], [], []>} : vector<8x128xf32>, vector<128x256xf32>, vector<8x256xf32> -> vector<8x256xf32>
    %163 = arith.index_cast %160 : i32 to index
    %c0_70 = arith.constant 0 : index
    %164 = vector.load %arg14[%163, %c0_70] : memref<64x256xf32, #tpu.memory_space<vmem>>, vector<8x256xf32>
    %165 = arith.addf %162, %164 : vector<8x256xf32>
    %166 = vector.extract_strided_slice %165 {offsets = [0, 0], sizes = [8, 128], strides = [1, 1]} : vector<8x256xf32> to vector<8x128xf32>
    %167 = arith.negf %166 : vector<8x128xf32>
    %168 = math.exp %167 : vector<8x128xf32>
    %cst_71 = arith.constant 1.000000e+00 : f32
    %169 = vector.broadcast %cst_71 : f32 to vector<8x128xf32>
    %170 = arith.addf %169, %168 : vector<8x128xf32>
    %171 = arith.divf %169, %170 : vector<8x128xf32>
    %172 = vector.extract_strided_slice %165 {offsets = [0, 128], sizes = [8, 128], strides = [1, 1]} : vector<8x256xf32> to vector<8x128xf32>
    %173 = math.absf %172 : vector<8x128xf32>
    %cst_72 = arith.constant 1.000000e+00 : f32
    %174 = vector.broadcast %cst_72 : f32 to vector<8x128xf32>
    %175 = arith.addf %174, %173 : vector<8x128xf32>
    %176 = tpu.reciprocal %175 : vector<8x128xf32> -> vector<8x128xf32>
    %177 = arith.mulf %172, %176 : vector<8x128xf32>
    %178 = arith.mulf %171, %133 : vector<8x128xf32>
    %cst_73 = arith.constant 1.000000e+00 : f32
    %179 = vector.broadcast %cst_73 : f32 to vector<8x128xf32>
    %180 = arith.subf %179, %171 : vector<8x128xf32>
    %181 = arith.mulf %180, %177 : vector<8x128xf32>
    %182 = arith.addf %178, %181 : vector<8x128xf32>
    %c0_74 = arith.constant 0 : index
    %c0_75 = arith.constant 0 : index
    %183 = vector.load %arg6[%c0_74, %c0_75] : memref<128x256xf32, #tpu.memory_space<vmem>>, vector<128x256xf32>
    %cst_76 = arith.constant dense<0.000000e+00> : vector<8x256xf32>
    %184 = tpu.matmul %182, %183, %cst_76 {dimension_numbers = #tpu.dot_dimension_numbers<[1], [0], [0], [1], [0, 0, 1, 1], [], []>} : vector<8x128xf32>, vector<128x256xf32>, vector<8x256xf32> -> vector<8x256xf32>
    %c0_77 = arith.constant 0 : index
    %c0_78 = arith.constant 0 : index
    %185 = vector.load %arg7[%c0_77, %c0_78] : memref<128x256xf32, #tpu.memory_space<vmem>>, vector<128x256xf32>
    %cst_79 = arith.constant dense<0.000000e+00> : vector<8x256xf32>
    %186 = tpu.matmul %156, %185, %cst_79 {dimension_numbers = #tpu.dot_dimension_numbers<[1], [0], [0], [1], [0, 0, 1, 1], [], []>} : vector<8x128xf32>, vector<128x256xf32>, vector<8x256xf32> -> vector<8x256xf32>
    %187 = arith.addf %184, %186 : vector<8x256xf32>
    %188 = arith.addf %187, %9 : vector<8x256xf32>
    %189 = vector.extract_strided_slice %188 {offsets = [0, 0], sizes = [8, 128], strides = [1, 1]} : vector<8x256xf32> to vector<8x128xf32>
    %190 = arith.negf %189 : vector<8x128xf32>
    %191 = math.exp %190 : vector<8x128xf32>
    %cst_80 = arith.constant 1.000000e+00 : f32
    %192 = vector.broadcast %cst_80 : f32 to vector<8x128xf32>
    %193 = arith.addf %192, %191 : vector<8x128xf32>
    %194 = arith.divf %192, %193 : vector<8x128xf32>
    %195 = vector.extract_strided_slice %188 {offsets = [0, 128], sizes = [8, 128], strides = [1, 1]} : vector<8x256xf32> to vector<8x128xf32>
    %196 = math.absf %195 : vector<8x128xf32>
    %cst_81 = arith.constant 1.000000e+00 : f32
    %197 = vector.broadcast %cst_81 : f32 to vector<8x128xf32>
    %198 = arith.addf %197, %196 : vector<8x128xf32>
    %199 = tpu.reciprocal %198 : vector<8x128xf32> -> vector<8x128xf32>
    %200 = arith.mulf %195, %199 : vector<8x128xf32>
    %201 = arith.mulf %194, %156 : vector<8x128xf32>
    %cst_82 = arith.constant 1.000000e+00 : f32
    %202 = vector.broadcast %cst_82 : f32 to vector<8x128xf32>
    %203 = arith.subf %202, %194 : vector<8x128xf32>
    %204 = arith.mulf %203, %200 : vector<8x128xf32>
    %205 = arith.addf %201, %204 : vector<8x128xf32>
    %206 = arith.index_cast %160 : i32 to index
    %c0_83 = arith.constant 0 : index
    %207 = vector.load %arg15[%206, %c0_83] : memref<64x128xf32, #tpu.memory_space<vmem>>, vector<8x128xf32>
    tpu.vector_store %arg15[%206, %c0_83], %205 {strides = array<i32>} : memref<64x128xf32, #tpu.memory_space<vmem>>, vector<8x128xf32>,
    %c4_i32 = arith.constant 4 : i32
    %c8_i32_84 = arith.constant 8 : i32
    %208 = arith.muli %c4_i32, %c8_i32_84 : i32
    %209 = tpu.assume_multiple %208, 8 : i32
    %c0_85 = arith.constant 0 : index
    %c0_86 = arith.constant 0 : index
    %210 = vector.load %arg4[%c0_85, %c0_86] : memref<128x256xf32, #tpu.memory_space<vmem>>, vector<128x256xf32>
    %cst_87 = arith.constant dense<0.000000e+00> : vector<8x256xf32>
    %211 = tpu.matmul %182, %210, %cst_87 {dimension_numbers = #tpu.dot_dimension_numbers<[1], [0], [0], [1], [0, 0, 1, 1], [], []>} : vector<8x128xf32>, vector<128x256xf32>, vector<8x256xf32> -> vector<8x256xf32>
    %212 = arith.index_cast %209 : i32 to index
    %c0_88 = arith.constant 0 : index
    %213 = vector.load %arg14[%212, %c0_88] : memref<64x256xf32, #tpu.memory_space<vmem>>, vector<8x256xf32>
    %214 = arith.addf %211, %213 : vector<8x256xf32>
    %215 = vector.extract_strided_slice %214 {offsets = [0, 0], sizes = [8, 128], strides = [1, 1]} : vector<8x256xf32> to vector<8x128xf32>
    %216 = arith.negf %215 : vector<8x128xf32>
    %217 = math.exp %216 : vector<8x128xf32>
    %cst_89 = arith.constant 1.000000e+00 : f32
    %218 = vector.broadcast %cst_89 : f32 to vector<8x128xf32>
    %219 = arith.addf %218, %217 : vector<8x128xf32>
    %220 = arith.divf %218, %219 : vector<8x128xf32>
    %221 = vector.extract_strided_slice %214 {offsets = [0, 128], sizes = [8, 128], strides = [1, 1]} : vector<8x256xf32> to vector<8x128xf32>
    %222 = math.absf %221 : vector<8x128xf32>
    %cst_90 = arith.constant 1.000000e+00 : f32
    %223 = vector.broadcast %cst_90 : f32 to vector<8x128xf32>
    %224 = arith.addf %223, %222 : vector<8x128xf32>
    %225 = tpu.reciprocal %224 : vector<8x128xf32> -> vector<8x128xf32>
    %226 = arith.mulf %221, %225 : vector<8x128xf32>
    %227 = arith.mulf %220, %182 : vector<8x128xf32>
    %cst_91 = arith.constant 1.000000e+00 : f32
    %228 = vector.broadcast %cst_91 : f32 to vector<8x128xf32>
    %229 = arith.subf %228, %220 : vector<8x128xf32>
    %230 = arith.mulf %229, %226 : vector<8x128xf32>
    %231 = arith.addf %227, %230 : vector<8x128xf32>
    %c0_92 = arith.constant 0 : index
    %c0_93 = arith.constant 0 : index
    %232 = vector.load %arg6[%c0_92, %c0_93] : memref<128x256xf32, #tpu.memory_space<vmem>>, vector<128x256xf32>
    %cst_94 = arith.constant dense<0.000000e+00> : vector<8x256xf32>
    %233 = tpu.matmul %231, %232, %cst_94 {dimension_numbers = #tpu.dot_dimension_numbers<[1], [0], [0], [1], [0, 0, 1, 1], [], []>} : vector<8x128xf32>, vector<128x256xf32>, vector<8x256xf32> -> vector<8x256xf32>
    %c0_95 = arith.constant 0 : index
    %c0_96 = arith.constant 0 : index
    %234 = vector.load %arg7[%c0_95, %c0_96] : memref<128x256xf32, #tpu.memory_space<vmem>>, vector<128x256xf32>
    %cst_97 = arith.constant dense<0.000000e+00> : vector<8x256xf32>
    %235 = tpu.matmul %205, %234, %cst_97 {dimension_numbers = #tpu.dot_dimension_numbers<[1], [0], [0], [1], [0, 0, 1, 1], [], []>} : vector<8x128xf32>, vector<128x256xf32>, vector<8x256xf32> -> vector<8x256xf32>
    %236 = arith.addf %233, %235 : vector<8x256xf32>
    %237 = arith.addf %236, %9 : vector<8x256xf32>
    %238 = vector.extract_strided_slice %237 {offsets = [0, 0], sizes = [8, 128], strides = [1, 1]} : vector<8x256xf32> to vector<8x128xf32>
    %239 = arith.negf %238 : vector<8x128xf32>
    %240 = math.exp %239 : vector<8x128xf32>
    %cst_98 = arith.constant 1.000000e+00 : f32
    %241 = vector.broadcast %cst_98 : f32 to vector<8x128xf32>
    %242 = arith.addf %241, %240 : vector<8x128xf32>
    %243 = arith.divf %241, %242 : vector<8x128xf32>
    %244 = vector.extract_strided_slice %237 {offsets = [0, 128], sizes = [8, 128], strides = [1, 1]} : vector<8x256xf32> to vector<8x128xf32>
    %245 = math.absf %244 : vector<8x128xf32>
    %cst_99 = arith.constant 1.000000e+00 : f32
    %246 = vector.broadcast %cst_99 : f32 to vector<8x128xf32>
    %247 = arith.addf %246, %245 : vector<8x128xf32>
    %248 = tpu.reciprocal %247 : vector<8x128xf32> -> vector<8x128xf32>
    %249 = arith.mulf %244, %248 : vector<8x128xf32>
    %250 = arith.mulf %243, %205 : vector<8x128xf32>
    %cst_100 = arith.constant 1.000000e+00 : f32
    %251 = vector.broadcast %cst_100 : f32 to vector<8x128xf32>
    %252 = arith.subf %251, %243 : vector<8x128xf32>
    %253 = arith.mulf %252, %249 : vector<8x128xf32>
    %254 = arith.addf %250, %253 : vector<8x128xf32>
    %255 = arith.index_cast %209 : i32 to index
    %c0_101 = arith.constant 0 : index
    %256 = vector.load %arg15[%255, %c0_101] : memref<64x128xf32, #tpu.memory_space<vmem>>, vector<8x128xf32>
    tpu.vector_store %arg15[%255, %c0_101], %254 {strides = array<i32>} : memref<64x128xf32, #tpu.memory_space<vmem>>, vector<8x128xf32>,
    %c5_i32 = arith.constant 5 : i32
    %c8_i32_102 = arith.constant 8 : i32
    %257 = arith.muli %c5_i32, %c8_i32_102 : i32
    %258 = tpu.assume_multiple %257, 8 : i32
    %c0_103 = arith.constant 0 : index
    %c0_104 = arith.constant 0 : index
    %259 = vector.load %arg4[%c0_103, %c0_104] : memref<128x256xf32, #tpu.memory_space<vmem>>, vector<128x256xf32>
    %cst_105 = arith.constant dense<0.000000e+00> : vector<8x256xf32>
    %260 = tpu.matmul %231, %259, %cst_105 {dimension_numbers = #tpu.dot_dimension_numbers<[1], [0], [0], [1], [0, 0, 1, 1], [], []>} : vector<8x128xf32>, vector<128x256xf32>, vector<8x256xf32> -> vector<8x256xf32>
    %261 = arith.index_cast %258 : i32 to index
    %c0_106 = arith.constant 0 : index
    %262 = vector.load %arg14[%261, %c0_106] : memref<64x256xf32, #tpu.memory_space<vmem>>, vector<8x256xf32>
    %263 = arith.addf %260, %262 : vector<8x256xf32>
    %264 = vector.extract_strided_slice %263 {offsets = [0, 0], sizes = [8, 128], strides = [1, 1]} : vector<8x256xf32> to vector<8x128xf32>
    %265 = arith.negf %264 : vector<8x128xf32>
    %266 = math.exp %265 : vector<8x128xf32>
    %cst_107 = arith.constant 1.000000e+00 : f32
    %267 = vector.broadcast %cst_107 : f32 to vector<8x128xf32>
    %268 = arith.addf %267, %266 : vector<8x128xf32>
    %269 = arith.divf %267, %268 : vector<8x128xf32>
    %270 = vector.extract_strided_slice %263 {offsets = [0, 128], sizes = [8, 128], strides = [1, 1]} : vector<8x256xf32> to vector<8x128xf32>
    %271 = math.absf %270 : vector<8x128xf32>
    %cst_108 = arith.constant 1.000000e+00 : f32
    %272 = vector.broadcast %cst_108 : f32 to vector<8x128xf32>
    %273 = arith.addf %272, %271 : vector<8x128xf32>
    %274 = tpu.reciprocal %273 : vector<8x128xf32> -> vector<8x128xf32>
    %275 = arith.mulf %270, %274 : vector<8x128xf32>
    %276 = arith.mulf %269, %231 : vector<8x128xf32>
    %cst_109 = arith.constant 1.000000e+00 : f32
    %277 = vector.broadcast %cst_109 : f32 to vector<8x128xf32>
    %278 = arith.subf %277, %269 : vector<8x128xf32>
    %279 = arith.mulf %278, %275 : vector<8x128xf32>
    %280 = arith.addf %276, %279 : vector<8x128xf32>
    %c0_110 = arith.constant 0 : index
    %c0_111 = arith.constant 0 : index
    %281 = vector.load %arg6[%c0_110, %c0_111] : memref<128x256xf32, #tpu.memory_space<vmem>>, vector<128x256xf32>
    %cst_112 = arith.constant dense<0.000000e+00> : vector<8x256xf32>
    %282 = tpu.matmul %280, %281, %cst_112 {dimension_numbers = #tpu.dot_dimension_numbers<[1], [0], [0], [1], [0, 0, 1, 1], [], []>} : vector<8x128xf32>, vector<128x256xf32>, vector<8x256xf32> -> vector<8x256xf32>
    %c0_113 = arith.constant 0 : index
    %c0_114 = arith.constant 0 : index
    %283 = vector.load %arg7[%c0_113, %c0_114] : memref<128x256xf32, #tpu.memory_space<vmem>>, vector<128x256xf32>
    %cst_115 = arith.constant dense<0.000000e+00> : vector<8x256xf32>
    %284 = tpu.matmul %254, %283, %cst_115 {dimension_numbers = #tpu.dot_dimension_numbers<[1], [0], [0], [1], [0, 0, 1, 1], [], []>} : vector<8x128xf32>, vector<128x256xf32>, vector<8x256xf32> -> vector<8x256xf32>
    %285 = arith.addf %282, %284 : vector<8x256xf32>
    %286 = arith.addf %285, %9 : vector<8x256xf32>
    %287 = vector.extract_strided_slice %286 {offsets = [0, 0], sizes = [8, 128], strides = [1, 1]} : vector<8x256xf32> to vector<8x128xf32>
    %288 = arith.negf %287 : vector<8x128xf32>
    %289 = math.exp %288 : vector<8x128xf32>
    %cst_116 = arith.constant 1.000000e+00 : f32
    %290 = vector.broadcast %cst_116 : f32 to vector<8x128xf32>
    %291 = arith.addf %290, %289 : vector<8x128xf32>
    %292 = arith.divf %290, %291 : vector<8x128xf32>
    %293 = vector.extract_strided_slice %286 {offsets = [0, 128], sizes = [8, 128], strides = [1, 1]} : vector<8x256xf32> to vector<8x128xf32>
    %294 = math.absf %293 : vector<8x128xf32>
    %cst_117 = arith.constant 1.000000e+00 : f32
    %295 = vector.broadcast %cst_117 : f32 to vector<8x128xf32>
    %296 = arith.addf %295, %294 : vector<8x128xf32>
    %297 = tpu.reciprocal %296 : vector<8x128xf32> -> vector<8x128xf32>
    %298 = arith.mulf %293, %297 : vector<8x128xf32>
    %299 = arith.mulf %292, %254 : vector<8x128xf32>
    %cst_118 = arith.constant 1.000000e+00 : f32
    %300 = vector.broadcast %cst_118 : f32 to vector<8x128xf32>
    %301 = arith.subf %300, %292 : vector<8x128xf32>
    %302 = arith.mulf %301, %298 : vector<8x128xf32>
    %303 = arith.addf %299, %302 : vector<8x128xf32>
    %304 = arith.index_cast %258 : i32 to index
    %c0_119 = arith.constant 0 : index
    %305 = vector.load %arg15[%304, %c0_119] : memref<64x128xf32, #tpu.memory_space<vmem>>, vector<8x128xf32>
    tpu.vector_store %arg15[%304, %c0_119], %303 {strides = array<i32>} : memref<64x128xf32, #tpu.memory_space<vmem>>, vector<8x128xf32>,
    %c6_i32 = arith.constant 6 : i32
    %c8_i32_120 = arith.constant 8 : i32
    %306 = arith.muli %c6_i32, %c8_i32_120 : i32
    %307 = tpu.assume_multiple %306, 8 : i32
    %c0_121 = arith.constant 0 : index
    %c0_122 = arith.constant 0 : index
    %308 = vector.load %arg4[%c0_121, %c0_122] : memref<128x256xf32, #tpu.memory_space<vmem>>, vector<128x256xf32>
    %cst_123 = arith.constant dense<0.000000e+00> : vector<8x256xf32>
    %309 = tpu.matmul %280, %308, %cst_123 {dimension_numbers = #tpu.dot_dimension_numbers<[1], [0], [0], [1], [0, 0, 1, 1], [], []>} : vector<8x128xf32>, vector<128x256xf32>, vector<8x256xf32> -> vector<8x256xf32>
    %310 = arith.index_cast %307 : i32 to index
    %c0_124 = arith.constant 0 : index
    %311 = vector.load %arg14[%310, %c0_124] : memref<64x256xf32, #tpu.memory_space<vmem>>, vector<8x256xf32>
    %312 = arith.addf %309, %311 : vector<8x256xf32>
    %313 = vector.extract_strided_slice %312 {offsets = [0, 0], sizes = [8, 128], strides = [1, 1]} : vector<8x256xf32> to vector<8x128xf32>
    %314 = arith.negf %313 : vector<8x128xf32>
    %315 = math.exp %314 : vector<8x128xf32>
    %cst_125 = arith.constant 1.000000e+00 : f32
    %316 = vector.broadcast %cst_125 : f32 to vector<8x128xf32>
    %317 = arith.addf %316, %315 : vector<8x128xf32>
    %318 = arith.divf %316, %317 : vector<8x128xf32>
    %319 = vector.extract_strided_slice %312 {offsets = [0, 128], sizes = [8, 128], strides = [1, 1]} : vector<8x256xf32> to vector<8x128xf32>
    %320 = math.absf %319 : vector<8x128xf32>
    %cst_126 = arith.constant 1.000000e+00 : f32
    %321 = vector.broadcast %cst_126 : f32 to vector<8x128xf32>
    %322 = arith.addf %321, %320 : vector<8x128xf32>
    %323 = tpu.reciprocal %322 : vector<8x128xf32> -> vector<8x128xf32>
    %324 = arith.mulf %319, %323 : vector<8x128xf32>
    %325 = arith.mulf %318, %280 : vector<8x128xf32>
    %cst_127 = arith.constant 1.000000e+00 : f32
    %326 = vector.broadcast %cst_127 : f32 to vector<8x128xf32>
    %327 = arith.subf %326, %318 : vector<8x128xf32>
    %328 = arith.mulf %327, %324 : vector<8x128xf32>
    %329 = arith.addf %325, %328 : vector<8x128xf32>
    %c0_128 = arith.constant 0 : index
    %c0_129 = arith.constant 0 : index
    %330 = vector.load %arg6[%c0_128, %c0_129] : memref<128x256xf32, #tpu.memory_space<vmem>>, vector<128x256xf32>
    %cst_130 = arith.constant dense<0.000000e+00> : vector<8x256xf32>
    %331 = tpu.matmul %329, %330, %cst_130 {dimension_numbers = #tpu.dot_dimension_numbers<[1], [0], [0], [1], [0, 0, 1, 1], [], []>} : vector<8x128xf32>, vector<128x256xf32>, vector<8x256xf32> -> vector<8x256xf32>
    %c0_131 = arith.constant 0 : index
    %c0_132 = arith.constant 0 : index
    %332 = vector.load %arg7[%c0_131, %c0_132] : memref<128x256xf32, #tpu.memory_space<vmem>>, vector<128x256xf32>
    %cst_133 = arith.constant dense<0.000000e+00> : vector<8x256xf32>
    %333 = tpu.matmul %303, %332, %cst_133 {dimension_numbers = #tpu.dot_dimension_numbers<[1], [0], [0], [1], [0, 0, 1, 1], [], []>} : vector<8x128xf32>, vector<128x256xf32>, vector<8x256xf32> -> vector<8x256xf32>
    %334 = arith.addf %331, %333 : vector<8x256xf32>
    %335 = arith.addf %334, %9 : vector<8x256xf32>
    %336 = vector.extract_strided_slice %335 {offsets = [0, 0], sizes = [8, 128], strides = [1, 1]} : vector<8x256xf32> to vector<8x128xf32>
    %337 = arith.negf %336 : vector<8x128xf32>
    %338 = math.exp %337 : vector<8x128xf32>
    %cst_134 = arith.constant 1.000000e+00 : f32
    %339 = vector.broadcast %cst_134 : f32 to vector<8x128xf32>
    %340 = arith.addf %339, %338 : vector<8x128xf32>
    %341 = arith.divf %339, %340 : vector<8x128xf32>
    %342 = vector.extract_strided_slice %335 {offsets = [0, 128], sizes = [8, 128], strides = [1, 1]} : vector<8x256xf32> to vector<8x128xf32>
    %343 = math.absf %342 : vector<8x128xf32>
    %cst_135 = arith.constant 1.000000e+00 : f32
    %344 = vector.broadcast %cst_135 : f32 to vector<8x128xf32>
    %345 = arith.addf %344, %343 : vector<8x128xf32>
    %346 = tpu.reciprocal %345 : vector<8x128xf32> -> vector<8x128xf32>
    %347 = arith.mulf %342, %346 : vector<8x128xf32>
    %348 = arith.mulf %341, %303 : vector<8x128xf32>
    %cst_136 = arith.constant 1.000000e+00 : f32
    %349 = vector.broadcast %cst_136 : f32 to vector<8x128xf32>
    %350 = arith.subf %349, %341 : vector<8x128xf32>
    %351 = arith.mulf %350, %347 : vector<8x128xf32>
    %352 = arith.addf %348, %351 : vector<8x128xf32>
    %353 = arith.index_cast %307 : i32 to index
    %c0_137 = arith.constant 0 : index
    %354 = vector.load %arg15[%353, %c0_137] : memref<64x128xf32, #tpu.memory_space<vmem>>, vector<8x128xf32>
    tpu.vector_store %arg15[%353, %c0_137], %352 {strides = array<i32>} : memref<64x128xf32, #tpu.memory_space<vmem>>, vector<8x128xf32>,
    %c7_i32 = arith.constant 7 : i32
    %c8_i32_138 = arith.constant 8 : i32
    %355 = arith.muli %c7_i32, %c8_i32_138 : i32
    %356 = tpu.assume_multiple %355, 8 : i32
    %c0_139 = arith.constant 0 : index
    %c0_140 = arith.constant 0 : index
    %357 = vector.load %arg4[%c0_139, %c0_140] : memref<128x256xf32, #tpu.memory_space<vmem>>, vector<128x256xf32>
    %cst_141 = arith.constant dense<0.000000e+00> : vector<8x256xf32>
    %358 = tpu.matmul %329, %357, %cst_141 {dimension_numbers = #tpu.dot_dimension_numbers<[1], [0], [0], [1], [0, 0, 1, 1], [], []>} : vector<8x128xf32>, vector<128x256xf32>, vector<8x256xf32> -> vector<8x256xf32>
    %359 = arith.index_cast %356 : i32 to index
    %c0_142 = arith.constant 0 : index
    %360 = vector.load %arg14[%359, %c0_142] : memref<64x256xf32, #tpu.memory_space<vmem>>, vector<8x256xf32>
    %361 = arith.addf %358, %360 : vector<8x256xf32>
    %362 = vector.extract_strided_slice %361 {offsets = [0, 0], sizes = [8, 128], strides = [1, 1]} : vector<8x256xf32> to vector<8x128xf32>
    %363 = arith.negf %362 : vector<8x128xf32>
    %364 = math.exp %363 : vector<8x128xf32>
    %cst_143 = arith.constant 1.000000e+00 : f32
    %365 = vector.broadcast %cst_143 : f32 to vector<8x128xf32>
    %366 = arith.addf %365, %364 : vector<8x128xf32>
    %367 = arith.divf %365, %366 : vector<8x128xf32>
    %368 = vector.extract_strided_slice %361 {offsets = [0, 128], sizes = [8, 128], strides = [1, 1]} : vector<8x256xf32> to vector<8x128xf32>
    %369 = math.absf %368 : vector<8x128xf32>
    %cst_144 = arith.constant 1.000000e+00 : f32
    %370 = vector.broadcast %cst_144 : f32 to vector<8x128xf32>
    %371 = arith.addf %370, %369 : vector<8x128xf32>
    %372 = tpu.reciprocal %371 : vector<8x128xf32> -> vector<8x128xf32>
    %373 = arith.mulf %368, %372 : vector<8x128xf32>
    %374 = arith.mulf %367, %329 : vector<8x128xf32>
    %cst_145 = arith.constant 1.000000e+00 : f32
    %375 = vector.broadcast %cst_145 : f32 to vector<8x128xf32>
    %376 = arith.subf %375, %367 : vector<8x128xf32>
    %377 = arith.mulf %376, %373 : vector<8x128xf32>
    %378 = arith.addf %374, %377 : vector<8x128xf32>
    %c0_146 = arith.constant 0 : index
    %c0_147 = arith.constant 0 : index
    %379 = vector.load %arg6[%c0_146, %c0_147] : memref<128x256xf32, #tpu.memory_space<vmem>>, vector<128x256xf32>
    %cst_148 = arith.constant dense<0.000000e+00> : vector<8x256xf32>
    %380 = tpu.matmul %378, %379, %cst_148 {dimension_numbers = #tpu.dot_dimension_numbers<[1], [0], [0], [1], [0, 0, 1, 1], [], []>} : vector<8x128xf32>, vector<128x256xf32>, vector<8x256xf32> -> vector<8x256xf32>
    %c0_149 = arith.constant 0 : index
    %c0_150 = arith.constant 0 : index
    %381 = vector.load %arg7[%c0_149, %c0_150] : memref<128x256xf32, #tpu.memory_space<vmem>>, vector<128x256xf32>
    %cst_151 = arith.constant dense<0.000000e+00> : vector<8x256xf32>
    %382 = tpu.matmul %352, %381, %cst_151 {dimension_numbers = #tpu.dot_dimension_numbers<[1], [0], [0], [1], [0, 0, 1, 1], [], []>} : vector<8x128xf32>, vector<128x256xf32>, vector<8x256xf32> -> vector<8x256xf32>
    %383 = arith.addf %380, %382 : vector<8x256xf32>
    %384 = arith.addf %383, %9 : vector<8x256xf32>
    %385 = vector.extract_strided_slice %384 {offsets = [0, 0], sizes = [8, 128], strides = [1, 1]} : vector<8x256xf32> to vector<8x128xf32>
    %386 = arith.negf %385 : vector<8x128xf32>
    %387 = math.exp %386 : vector<8x128xf32>
    %cst_152 = arith.constant 1.000000e+00 : f32
    %388 = vector.broadcast %cst_152 : f32 to vector<8x128xf32>
    %389 = arith.addf %388, %387 : vector<8x128xf32>
    %390 = arith.divf %388, %389 : vector<8x128xf32>
    %391 = vector.extract_strided_slice %384 {offsets = [0, 128], sizes = [8, 128], strides = [1, 1]} : vector<8x256xf32> to vector<8x128xf32>
    %392 = math.absf %391 : vector<8x128xf32>
    %cst_153 = arith.constant 1.000000e+00 : f32
    %393 = vector.broadcast %cst_153 : f32 to vector<8x128xf32>
    %394 = arith.addf %393, %392 : vector<8x128xf32>
    %395 = tpu.reciprocal %394 : vector<8x128xf32> -> vector<8x128xf32>
    %396 = arith.mulf %391, %395 : vector<8x128xf32>
    %397 = arith.mulf %390, %352 : vector<8x128xf32>
    %cst_154 = arith.constant 1.000000e+00 : f32
    %398 = vector.broadcast %cst_154 : f32 to vector<8x128xf32>
    %399 = arith.subf %398, %390 : vector<8x128xf32>
    %400 = arith.mulf %399, %396 : vector<8x128xf32>
    %401 = arith.addf %397, %400 : vector<8x128xf32>
    %402 = arith.index_cast %356 : i32 to index
    %c0_155 = arith.constant 0 : index
    %403 = vector.load %arg15[%402, %c0_155] : memref<64x128xf32, #tpu.memory_space<vmem>>, vector<8x128xf32>
    tpu.vector_store %arg15[%402, %c0_155], %401 {strides = array<i32>} : memref<64x128xf32, #tpu.memory_space<vmem>>, vector<8x128xf32>,
    %c8_i32_156 = arith.constant 8 : i32
    %c0_157 = arith.constant 0 : index
    %c0_158 = arith.constant 0 : index
    %404 = vector.load %arg15[%c0_157, %c0_158] : memref<64x128xf32, #tpu.memory_space<vmem>>, vector<64x128xf32>
    %c0_159 = arith.constant 0 : index
    %c0_160 = arith.constant 0 : index
    %405 = vector.load %arg9[%c0_159, %c0_160] : memref<128x64xf32, #tpu.memory_space<vmem>>, vector<128x64xf32>
    %cst_161 = arith.constant dense<0.000000e+00> : vector<64x64xf32>
    %406 = tpu.matmul %404, %405, %cst_161 {dimension_numbers = #tpu.dot_dimension_numbers<[1], [0], [0], [1], [0, 0, 1, 1], [], []>} : vector<64x128xf32>, vector<128x64xf32>, vector<64x64xf32> -> vector<64x64xf32>
    %c0_162 = arith.constant 0 : index
    %c0_163 = arith.constant 0 : index
    %407 = vector.load %arg10[%c0_162, %c0_163] : memref<1x64xf32, #tpu.memory_space<vmem>>, vector<1x64xf32>
    %408 = vector.broadcast %407 : vector<1x64xf32> to vector<64x64xf32>
    %409 = arith.addf %406, %408 : vector<64x64xf32>
    %cst_164 = arith.constant 0.000000e+00 : f32
    %410 = vector.broadcast %cst_164 : f32 to vector<64x64xf32>
    %411 = arith.maximumf %409, %410 : vector<64x64xf32>
    %c0_165 = arith.constant 0 : index
    %c0_166 = arith.constant 0 : index
    %412 = vector.load %arg11[%c0_165, %c0_166] : memref<64x8xf32, #tpu.memory_space<vmem>>, vector<64x8xf32>
    %cst_167 = arith.constant dense<0.000000e+00> : vector<64x8xf32>
    %413 = tpu.matmul %411, %412, %cst_167 {dimension_numbers = #tpu.dot_dimension_numbers<[1], [0], [0], [1], [0, 0, 1, 1], [], []>} : vector<64x64xf32>, vector<64x8xf32>, vector<64x8xf32> -> vector<64x8xf32>
    %c0_168 = arith.constant 0 : index
    %c0_169 = arith.constant 0 : index
    %414 = vector.load %arg12[%c0_168, %c0_169] : memref<1x8xf32, #tpu.memory_space<vmem>>, vector<1x8xf32>
    %415 = vector.broadcast %414 : vector<1x8xf32> to vector<64x8xf32>
    %416 = arith.addf %413, %415 : vector<64x8xf32>
    %cst_170 = arith.constant dense<0xFF800000> : vector<64xf32>
    %417 = vector.multi_reduction <maximumf>, %416, %cst_170 [1] : vector<64x8xf32> to vector<64xf32>
    %418 = vector.shape_cast %417 : vector<64xf32> to vector<64x1xf32>
    %419 = vector.broadcast %418 : vector<64x1xf32> to vector<64x8xf32>
    %420 = arith.subf %416, %419 : vector<64x8xf32>
    %421 = math.exp %420 : vector<64x8xf32>
    %cst_171 = arith.constant dense<0.000000e+00> : vector<64xf32>
    %422 = vector.multi_reduction <add>, %421, %cst_171 [1] : vector<64x8xf32> to vector<64xf32>
    %423 = vector.shape_cast %422 : vector<64xf32> to vector<64x1xf32>
    %424 = math.log %423 : vector<64x1xf32>
    %425 = vector.broadcast %424 : vector<64x1xf32> to vector<64x8xf32>
    %426 = arith.subf %420, %425 : vector<64x8xf32>
    %c0_172 = arith.constant 0 : index
    %c0_173 = arith.constant 0 : index
    %427 = vector.load %arg13[%c0_172, %c0_173] : memref<64x8xf32, #tpu.memory_space<vmem>>, vector<64x8xf32>
    tpu.vector_store %arg13[%c0_172, %c0_173], %426 {strides = array<i32>} : memref<64x8xf32, #tpu.memory_space<vmem>>, vector<64x8xf32>,
    return
  }
}

</mosaic_0001>

<llo_original>
// kernel: _network_forward_impl.1
$region0: #{_network_forward_impl.1}
  #allocation0 [shape = 'u32[]', space=smem, size = 0x4, offset = 0x4, fixed_abs, tag = 'smem constant byte address 0x4 - core index']
  #allocation1 [shape = 'u32[144,128]{1,0:T(1,128)}', space=vmem, size = 0x12000, scoped, tag = 'internal scratch']
  #allocation2 [shape = 'f32[64,256]{1,0:T(8,128)}', space=vmem, size = 0x10000, scoped, tag = 'scratch operand']
  #allocation3 [shape = 'f32[64,128]{1,0:T(8,128)}', space=vmem, size = 0x8000, scoped, tag = 'scratch operand']
  %s0 = inlined_call_operand.vmem [shape: f32[64,64], index: 0, kind: input, shape index: {}]
  %s1 = inlined_call_operand.vmem [shape: f32[8,128], index: 1, kind: input, shape index: {}]
  %s2 = inlined_call_operand.vmem [shape: f32[8,128], index: 2, kind: input, shape index: {}]
  %s3 = inlined_call_operand.vmem [shape: f32[64,256], index: 3, kind: input, shape index: {}]
  %s4 = inlined_call_operand.vmem [shape: f32[128,256], index: 4, kind: input, shape index: {}]
  %s5 = inlined_call_operand.vmem [shape: f32[1,256], index: 5, kind: input, shape index: {}]
  %s6 = inlined_call_operand.hbm [shape: f32[128,256], index: 6, kind: input, shape index: {}]
  %s7 = inlined_call_operand.hbm [shape: f32[128,256], index: 7, kind: input, shape index: {}]
  %s8 = inlined_call_operand.vmem [shape: f32[1,256], index: 8, kind: input, shape index: {}]
  %s9 = inlined_call_operand.vmem [shape: f32[128,64], index: 9, kind: input, shape index: {}]
  %s10 = inlined_call_operand.vmem [shape: f32[1,64], index: 10, kind: input, shape index: {}]
  %s11 = inlined_call_operand.vmem [shape: f32[64,8], index: 11, kind: input, shape index: {}]
  %s12 = inlined_call_operand.vmem [shape: f32[1,8], index: 12, kind: input, shape index: {}]
  %s13 = inlined_call_operand.vmem [shape: f32[64,8], index: 13, kind: output, shape index: {}]
  %s14 = sld [smem:[#allocation0]]
  $region70: #{_network_forward_impl.1} parent=0
    _
  %s16 = ssub.s32 1, %s14
  %s17 = scalar_select 0, %s16, %s14
  $region1: #{_network_forward_impl.1} parent=0
    #allocation4 [shape = 'u8[131072]{0}', space=vmem, size = 0x20000, scoped, tag = 'input window, operand 6, single buffered']
    #allocation5 [shape = 's32[1]{0}', space=sflag, size = 0x4, scoped, tag = 'scoped memory for _network_forward_impl.1']
    #allocation6 [shape = 'u8[131072]{0}', space=vmem, size = 0x20000, scoped, tag = 'input window, operand 7, single buffered']
    #allocation7 [shape = 's32[1]{0}', space=sflag, size = 0x4, scoped, tag = 'scoped memory for _network_forward_impl.1']
    %18 = vsyncpa [#allocation5], 0
    %19 = vsyncpa [#allocation7], 0
    // Predicated region
    $region2: #{_network_forward_impl.1} parent=1 // pred_check
      _
    $region3: #{_network_forward_impl.1} parent=1 // pred_check_branch
      %21 = sbr.rel (0) target = $region5
    $region4: #{_network_forward_impl.1} parent=1 // pred_region
      _
    $region5: #{_network_forward_impl.1} parent=1 // pred_fallthru
      _
    // Predicated region
    $region6: #{_network_forward_impl.1} parent=1 // pred_check
      _
    $region7: #{_network_forward_impl.1} parent=1 // pred_check_branch
      %23 = sbr.rel (0) target = $region9
    $region8: #{_network_forward_impl.1} parent=1 // pred_region
      _
    $region9: #{_network_forward_impl.1} parent=1 // pred_fallthru
      _
    // Predicated region
    $region10: #{_network_forward_impl.1} parent=1 // pred_check
      _
    $region11: #{_network_forward_impl.1} parent=1 // pred_check_branch
      %25 = sbr.rel (0) target = $region13
    $region12: #{_network_forward_impl.1} parent=1 // pred_region
      _
    $region13: #{_network_forward_impl.1} parent=1 // pred_fallthru
      _
    // Predicated region
    $region14: #{_network_forward_impl.1} parent=1 // pred_check
      _
    $region15: #{_network_forward_impl.1} parent=1 // pred_check_branch
      %27 = sbr.rel (0) target = $region17
    $region16: #{_network_forward_impl.1} parent=1 // pred_region
      _
    $region17: #{_network_forward_impl.1} parent=1 // pred_fallthru
      _
    // Predicated region
    $region18: #{_network_forward_impl.1} parent=1 // pred_check
      _
    $region19: #{_network_forward_impl.1} parent=1 // pred_check_branch
      %29 = sbr.rel (0) target = $region21
    $region20: #{_network_forward_impl.1} parent=1 // pred_region
      _
    $region21: #{_network_forward_impl.1} parent=1 // pred_fallthru
      _
    // Predicated region
    $region22: #{_network_forward_impl.1} parent=1 // pred_check
      _
    $region23: #{_network_forward_impl.1} parent=1 // pred_check_branch
      %31 = sbr.rel (0) target = $region25
    $region24: #{_network_forward_impl.1} parent=1 // pred_region
      _
    $region25: #{_network_forward_impl.1} parent=1 // pred_fallthru
      _
    // Predicated region
    $region26: #{_network_forward_impl.1} parent=1 // pred_check
      _
    $region27: #{_network_forward_impl.1} parent=1 // pred_check_branch
      %33 = sbr.rel (0) target = $region29
    $region28: #{_network_forward_impl.1} parent=1 // pred_region
      %s35 = ssub.s32 4096, 4096
      %36 = vsyncadd [#allocation5], %s35
      %s37 = sshll.u32 [#allocation4], 4
      %s38 = int_to_ptr.vmem [resolvable:$true] %s37
      %43 = dma.hbm_to_vmem [thread:$0]  %s6, 4096, %s38, [#allocation5], 256, 256, 16
    $region29: #{_network_forward_impl.1} parent=1 // pred_fallthru
      _
    // Predicated region
    $region30: #{_network_forward_impl.1} parent=1 // pred_check
      _
    $region31: #{_network_forward_impl.1} parent=1 // pred_check_branch
      %45 = sbr.rel (0) target = $region33
    $region32: #{_network_forward_impl.1} parent=1 // pred_region
      %s47 = ssub.s32 4096, 4096
      %48 = vsyncadd [#allocation7], %s47
      %s49 = sshll.u32 [#allocation6], 4
      %s50 = int_to_ptr.vmem [resolvable:$true] %s49
      %55 = dma.hbm_to_vmem [thread:$0]  %s7, 4096, %s50, [#allocation7], 256, 256, 16
    $region33: #{_network_forward_impl.1} parent=1 // pred_fallthru
      _
    // Predicated region
    $region34: #{_network_forward_impl.1} parent=1 // pred_check
      _
    $region35: #{_network_forward_impl.1} parent=1 // pred_check_branch
      %57 = sbr.rel (0) target = $region37
    $region36: #{_network_forward_impl.1} parent=1 // pred_region
      _
    $region37: #{_network_forward_impl.1} parent=1 // pred_fallthru
      _
    // Predicated region
    $region38: #{_network_forward_impl.1} parent=1 // pred_check
      _
    $region39: #{_network_forward_impl.1} parent=1 // pred_check_branch
      %59 = sbr.rel (0) target = $region41
    $region40: #{_network_forward_impl.1} parent=1 // pred_region
      _
    $region41: #{_network_forward_impl.1} parent=1 // pred_fallthru
      _
    // Predicated region
    $region42: #{_network_forward_impl.1} parent=1 // pred_check
      _
    $region43: #{_network_forward_impl.1} parent=1 // pred_check_branch
      %61 = sbr.rel (0) target = $region45
    $region44: #{_network_forward_impl.1} parent=1 // pred_region
      _
    $region45: #{_network_forward_impl.1} parent=1 // pred_fallthru
      _
    // Predicated region
    $region46: #{_network_forward_impl.1} parent=1 // pred_check
      _
    $region47: #{_network_forward_impl.1} parent=1 // pred_check_branch
      %63 = sbr.rel (0) target = $region49
    $region48: #{_network_forward_impl.1} parent=1 // pred_region
      _
    $region49: #{_network_forward_impl.1} parent=1 // pred_fallthru
      _
    // Predicated region
    $region50: #{_network_forward_impl.1} parent=1 // pred_check
      _
    $region51: #{_network_forward_impl.1} parent=1 // pred_check_branch
      %65 = sbr.rel (0) target = $region53
    $region52: #{_network_forward_impl.1} parent=1 // pred_region
      _
    $region53: #{_network_forward_impl.1} parent=1 // pred_fallthru
      _
    // Predicated region
    $region54: #{_network_forward_impl.1} parent=1 // pred_check
      _
    $region55: #{_network_forward_impl.1} parent=1 // pred_check_branch
      %67 = sbr.rel (0) target = $region57
    $region56: #{_network_forward_impl.1} parent=1 // pred_region
      %68 = dma.done [#allocation5], 4096
    $region57: #{_network_forward_impl.1} parent=1 // pred_fallthru
      _
    // Predicated region
    $region58: #{_network_forward_impl.1} parent=1 // pred_check
      _
    $region59: #{_network_forward_impl.1} parent=1 // pred_check_branch
      %70 = sbr.rel (0) target = $region61
    $region60: #{_network_forward_impl.1} parent=1 // pred_region
      %71 = dma.done [#allocation7], 4096
    $region61: #{_network_forward_impl.1} parent=1 // pred_fallthru
      _
    %v72 = vld [vmem:[%s0] sm:$0xff]
    %v73 = vld [vmem:[%s0 + $0x8] sm:$0xff]
    %v74 = vld [vmem:[%s0 + $0x10] sm:$0xff]
    %v75 = vld [vmem:[%s0 + $0x18] sm:$0xff]
    %v76 = vld [vmem:[%s0 + $0x20] sm:$0xff]
    %v77 = vld [vmem:[%s0 + $0x28] sm:$0xff]
    %v78 = vld [vmem:[%s0 + $0x30] sm:$0xff]
    %v79 = vld [vmem:[%s0 + $0x38] sm:$0xff]
    %v80 = vld [vmem:[%s3] sm:$0xff]
    %v81 = vld [vmem:[%s3 + $0x8] sm:$0xff]
    %v82 = vld [vmem:[%s3 + $0x10] sm:$0xff]
    %v83 = vld [vmem:[%s3 + $0x18] sm:$0xff]
    %v84 = vld [vmem:[%s3 + $0x20] sm:$0xff]
    %v85 = vld [vmem:[%s3 + $0x28] sm:$0xff]
    %v86 = vld [vmem:[%s3 + $0x30] sm:$0xff]
    %v87 = vld [vmem:[%s3 + $0x38] sm:$0xff]
    %v88 = vld [vmem:[%s3 + $0x40] sm:$0xff]
    %v89 = vld [vmem:[%s3 + $0x48] sm:$0xff]
    %v90 = vld [vmem:[%s3 + $0x50] sm:$0xff]
    %v91 = vld [vmem:[%s3 + $0x58] sm:$0xff]
    %v92 = vld [vmem:[%s3 + $0x60] sm:$0xff]
    %v93 = vld [vmem:[%s3 + $0x68] sm:$0xff]
    %v94 = vld [vmem:[%s3 + $0x70] sm:$0xff]
    %v95 = vld [vmem:[%s3 + $0x78] sm:$0xff]
    %v96 = vld [vmem:[%s5] sm:$0x3]
    %v98 = vlaneseq
    %v99 = vshrl.u32 %v98, 7
    %v100 = vsub.s32 0, %v99
    %v101 = vrot.slane %v96, %v100
    %v102 = vlaneseq
    %v103 = vshrl.u32 %v102, 7
    %v104 = vsub.s32 1, %v103
    %v105 = vrot.slane %v96, %v104
    %vm108 = vcmask 523264
    %v110 = vsel %vm108, %v72, 0
    %v113 = vsel %vm108, %v73, 0
    %v116 = vsel %vm108, %v74, 0
    %v119 = vsel %vm108, %v75, 0
    %v122 = vsel %vm108, %v76, 0
    %v125 = vsel %vm108, %v77, 0
    %v128 = vsel %vm108, %v78, 0
    %v131 = vsel %vm108, %v79, 0
    %133 = vmatprep.subr.mxu0 %v81
    %134 = vmatpush1.msra.mxu0 %v80
    %135 = vmatprep.subr.mxu0 %v83
    %136 = vmatpush1.msra.mxu0 %v82
    %137 = vmatprep.subr.mxu0 %v85
    %138 = vmatpush1.msra.mxu0 %v84
    %139 = vmatprep.subr.mxu0 %v87
    %140 = vmatpush1.msra.mxu0 %v86
    %141 = vmatprep.subr.mxu0 %v89
    %142 = vmatpush1.msra.mxu0 %v88
    %143 = vmatprep.subr.mxu0 %v91
    %144 = vmatpush1.msra.mxu0 %v90
    %145 = vmatprep.subr.mxu0 %v93
    %146 = vmatpush1.msra.mxu0 %v92
    %147 = vmatprep.subr.mxu0 %v95
    %148 = vmatpush1.msra.mxu0 %v94
    %149 = vmatprep.subr.mxu0 0.0
    %150 = vmatpush1.msra.mxu0 0.0
    %151 = vmatprep.subr.mxu0 0.0
    %152 = vmatpush1.msra.mxu0 0.0
    %153 = vmatprep.subr.mxu0 0.0
    %154 = vmatpush1.msra.mxu0 0.0
    %155 = vmatprep.subr.mxu0 0.0
    %156 = vmatpush1.msra.mxu0 0.0
    %157 = vmatprep.subr.mxu0 0.0
    %158 = vmatpush1.msra.mxu0 0.0
    %159 = vmatprep.subr.mxu0 0.0
    %160 = vmatpush1.msra.mxu0 0.0
    %161 = vmatprep.subr.mxu0 0.0
    %162 = vmatpush1.msra.mxu0 0.0
    %163 = vmatprep.subr.mxu0 0.0
    %164 = vmatpush1.msra.mxu0 0.0
    %165 = vmatprep.subr.mxu0 0.0
    %166 = vmatpush1.msra.mxu0 0.0
    %167 = vmatprep.subr.mxu0 0.0
    %168 = vmatpush1.msra.mxu0 0.0
    %169 = vmatprep.subr.mxu0 0.0
    %170 = vmatpush1.msra.mxu0 0.0
    %171 = vmatprep.subr.mxu0 0.0
    %172 = vmatpush1.msra.mxu0 0.0
    %173 = vmatprep.subr.mxu0 0.0
    %174 = vmatpush1.msra.mxu0 0.0
    %175 = vmatprep.subr.mxu0 0.0
    %176 = vmatpush1.msra.mxu0 0.0
    %177 = vmatprep.subr.mxu0 0.0
    %178 = vmatpush1.msra.mxu0 0.0
    %179 = vmatprep.subr.mxu0 0.0
    %180 = vmatpush1.msra.mxu0 0.0
    %181 = vmatprep.subr.mxu0 0.0
    %182 = vmatpush1.msra.mxu0 0.0
    %183 = vmatprep.subr.mxu0 0.0
    %184 = vmatpush1.msra.mxu0 0.0
    %185 = vmatprep.subr.mxu0 0.0
    %186 = vmatpush1.msra.mxu0 0.0
    %187 = vmatprep.subr.mxu0 0.0
    %188 = vmatpush1.msra.mxu0 0.0
    %189 = vmatprep.subr.mxu0 0.0
    %190 = vmatpush1.msra.mxu0 0.0
    %191 = vmatprep.subr.mxu0 0.0
    %192 = vmatpush1.msra.mxu0 0.0
    %193 = vmatprep.subr.mxu0 0.0
    %194 = vmatpush1.msra.mxu0 0.0
    %195 = vmatprep.subr.mxu0 0.0
    %196 = vmatpush1.msra.mxu0 0.0
    %197 = vmatprep.mubr.f32.mxu0 0.0
    %198 = vmatmul.mubr.f32.gmra.mrb[0].mxu0 %v110
    %v199 = vpop.f32.mrb[0].mxu0
    %v200 = vadd.f32 %v101, %v199
    %v201 = vpop.f32.mrb[0].mxu0
    %v202 = vadd.f32 %v105, %v201
    %203 = vmatprep.mubr.f32.mxu0 0.0
    %204 = vmatmul.mubr.f32.gmra.mrb[0].mxu0 %v113
    %v205 = vpop.f32.mrb[0].mxu0
    %v206 = vadd.f32 %v101, %v205
    %v207 = vpop.f32.mrb[0].mxu0
    %v208 = vadd.f32 %v105, %v207
    %209 = vmatprep.mubr.f32.mxu0 0.0
    %210 = vmatmul.mubr.f32.gmra.mrb[0].mxu0 %v116
    %v211 = vpop.f32.mrb[0].mxu0
    %v212 = vadd.f32 %v101, %v211
    %v213 = vpop.f32.mrb[0].mxu0
    %v214 = vadd.f32 %v105, %v213
    %215 = vmatprep.mubr.f32.mxu0 0.0
    %216 = vmatmul.mubr.f32.gmra.mrb[0].mxu0 %v119
    %v217 = vpop.f32.mrb[0].mxu0
    %v218 = vadd.f32 %v101, %v217
    %v219 = vpop.f32.mrb[0].mxu0
    %v220 = vadd.f32 %v105, %v219
    %221 = vmatprep.mubr.f32.mxu0 0.0
    %222 = vmatmul.mubr.f32.gmra.mrb[0].mxu0 %v122
    %v223 = vpop.f32.mrb[0].mxu0
    %v224 = vadd.f32 %v101, %v223
    %v225 = vpop.f32.mrb[0].mxu0
    %v226 = vadd.f32 %v105, %v225
    %227 = vmatprep.mubr.f32.mxu0 0.0
    %228 = vmatmul.mubr.f32.gmra.mrb[0].mxu0 %v125
    %v229 = vpop.f32.mrb[0].mxu0
    %v230 = vadd.f32 %v101, %v229
    %v231 = vpop.f32.mrb[0].mxu0
    %v232 = vadd.f32 %v105, %v231
    %233 = vmatprep.mubr.f32.mxu0 0.0
    %234 = vmatmul.mubr.f32.gmra.mrb[0].mxu0 %v128
    %v235 = vpop.f32.mrb[0].mxu0
    %v236 = vadd.f32 %v101, %v235
    %v237 = vpop.f32.mrb[0].mxu0
    %v238 = vadd.f32 %v105, %v237
    %239 = vmatprep.mubr.f32.mxu0 0.0
    %240 = vmatmul.mubr.f32.gmra.mrb[0].mxu0 %v131
    %v241 = vpop.f32.mrb[0].mxu0
    %v242 = vadd.f32 %v101, %v241
    %v243 = vpop.f32.mrb[0].mxu0
    %v244 = vadd.f32 %v105, %v243
    %245 = vdwg.mxu0
    %246 = vst [vmem:[#allocation2] sm:$0xff] %v200
    %247 = vst [vmem:[#allocation2 + $0x8] sm:$0xff] %v202
    %248 = vst [vmem:[#allocation2 + $0x10] sm:$0xff] %v206
    %249 = vst [vmem:[#allocation2 + $0x18] sm:$0xff] %v208
    %250 = vst [vmem:[#allocation2 + $0x20] sm:$0xff] %v212
    %251 = vst [vmem:[#allocation2 + $0x28] sm:$0xff] %v214
    %252 = vst [vmem:[#allocation2 + $0x30] sm:$0xff] %v218
    %253 = vst [vmem:[#allocation2 + $0x38] sm:$0xff] %v220
    %254 = vst [vmem:[#allocation2 + $0x40] sm:$0xff] %v224
    %255 = vst [vmem:[#allocation2 + $0x48] sm:$0xff] %v226
    %256 = vst [vmem:[#allocation2 + $0x50] sm:$0xff] %v230
    %257 = vst [vmem:[#allocation2 + $0x58] sm:$0xff] %v232
    %258 = vst [vmem:[#allocation2 + $0x60] sm:$0xff] %v236
    %259 = vst [vmem:[#allocation2 + $0x68] sm:$0xff] %v238
    %260 = vst [vmem:[#allocation2 + $0x70] sm:$0xff] %v242
    %261 = vst [vmem:[#allocation2 + $0x78] sm:$0xff] %v244
    %v262 = vld [vmem:[%s8] sm:$0x3]
    %v264 = vlaneseq
    %v265 = vshrl.u32 %v264, 7
    %v266 = vsub.s32 0, %v265
    %v267 = vrot.slane %v262, %v266
    %v268 = vlaneseq
    %v269 = vshrl.u32 %v268, 7
    %v270 = vsub.s32 1, %v269
    %v271 = vrot.slane %v262, %v270
    %v274 = vld [vmem:[%s1] sm:$0xff]
    %v275 = vld [vmem:[%s2] sm:$0xff]
    %v276 = vld [vmem:[%s4] sm:$0xff]
    %v277 = vld [vmem:[%s4 + $0x8] sm:$0xff]
    %v278 = vld [vmem:[%s4 + $0x10] sm:$0xff]
    %v279 = vld [vmem:[%s4 + $0x18] sm:$0xff]
    %v280 = vld [vmem:[%s4 + $0x20] sm:$0xff]
    %v281 = vld [vmem:[%s4 + $0x28] sm:$0xff]
    %v282 = vld [vmem:[%s4 + $0x30] sm:$0xff]
    %v283 = vld [vmem:[%s4 + $0x38] sm:$0xff]
    %v284 = vld [vmem:[%s4 + $0x40] sm:$0xff]
    %v285 = vld [vmem:[%s4 + $0x48] sm:$0xff]
    %v286 = vld [vmem:[%s4 + $0x50] sm:$0xff]
    %v287 = vld [vmem:[%s4 + $0x58] sm:$0xff]
    %v288 = vld [vmem:[%s4 + $0x60] sm:$0xff]
    %v289 = vld [vmem:[%s4 + $0x68] sm:$0xff]
    %v290 = vld [vmem:[%s4 + $0x70] sm:$0xff]
    %v291 = vld [vmem:[%s4 + $0x78] sm:$0xff]
    %v292 = vld [vmem:[%s4 + $0x80] sm:$0xff]
    %v293 = vld [vmem:[%s4 + $0x88] sm:$0xff]
    %v294 = vld [vmem:[%s4 + $0x90] sm:$0xff]
    %v295 = vld [vmem:[%s4 + $0x98] sm:$0xff]
    %v296 = vld [vmem:[%s4 + $0xa0] sm:$0xff]
    %v297 = vld [vmem:[%s4 + $0xa8] sm:$0xff]
    %v298 = vld [vmem:[%s4 + $0xb0] sm:$0xff]
    %v299 = vld [vmem:[%s4 + $0xb8] sm:$0xff]
    %v300 = vld [vmem:[%s4 + $0xc0] sm:$0xff]
    %v301 = vld [vmem:[%s4 + $0xc8] sm:$0xff]
    %v302 = vld [vmem:[%s4 + $0xd0] sm:$0xff]
    %v303 = vld [vmem:[%s4 + $0xd8] sm:$0xff]
    %v304 = vld [vmem:[%s4 + $0xe0] sm:$0xff]
    %v305 = vld [vmem:[%s4 + $0xe8] sm:$0xff]
    %v306 = vld [vmem:[%s4 + $0xf0] sm:$0xff]
    %v307 = vld [vmem:[%s4 + $0xf8] sm:$0xff]
    %s308 = smul.u32 0, 2
    %s309 = smul.addr %s308, 8
    %s310 = scalar_lea.vmem [#allocation2], %s309
    %v311 = vld [vmem:[%s310] sm:$0xff]
    %v312 = vld [vmem:[%s310 + $0x8] sm:$0xff]
    %313 = vmatprep.subr.mxu0 %v277
    %314 = vmatpush1.msra.mxu0 %v276
    %315 = vmatprep.subr.mxu0 %v279
    %316 = vmatpush1.msra.mxu0 %v278
    %317 = vmatprep.subr.mxu0 %v281
    %318 = vmatpush1.msra.mxu0 %v280
    %319 = vmatprep.subr.mxu0 %v283
    %320 = vmatpush1.msra.mxu0 %v282
    %321 = vmatprep.subr.mxu0 %v285
    %322 = vmatpush1.msra.mxu0 %v284
    %323 = vmatprep.subr.mxu0 %v287
    %324 = vmatpush1.msra.mxu0 %v286
    %325 = vmatprep.subr.mxu0 %v289
    %326 = vmatpush1.msra.mxu0 %v288
    %327 = vmatprep.subr.mxu0 %v291
    %328 = vmatpush1.msra.mxu0 %v290
    %329 = vmatprep.subr.mxu0 %v293
    %330 = vmatpush1.msra.mxu0 %v292
    %331 = vmatprep.subr.mxu0 %v295
    %332 = vmatpush1.msra.mxu0 %v294
    %333 = vmatprep.subr.mxu0 %v297
    %334 = vmatpush1.msra.mxu0 %v296
    %335 = vmatprep.subr.mxu0 %v299
    %336 = vmatpush1.msra.mxu0 %v298
    %337 = vmatprep.subr.mxu0 %v301
    %338 = vmatpush1.msra.mxu0 %v300
    %339 = vmatprep.subr.mxu0 %v303
    %340 = vmatpush1.msra.mxu0 %v302
    %341 = vmatprep.subr.mxu0 %v305
    %342 = vmatpush1.msra.mxu0 %v304
    %343 = vmatprep.subr.mxu0 %v307
    %344 = vmatpush1.msra.mxu0 %v306
    %345 = vmatprep.subr.mxu0 0.0
    %346 = vmatpush1.msra.mxu0 0.0
    %347 = vmatprep.subr.mxu0 0.0
    %348 = vmatpush1.msra.mxu0 0.0
    %349 = vmatprep.subr.mxu0 0.0
    %350 = vmatpush1.msra.mxu0 0.0
    %351 = vmatprep.subr.mxu0 0.0
    %352 = vmatpush1.msra.mxu0 0.0
    %353 = vmatprep.subr.mxu0 0.0
    %354 = vmatpush1.msra.mxu0 0.0
    %355 = vmatprep.subr.mxu0 0.0
    %356 = vmatpush1.msra.mxu0 0.0
    %357 = vmatprep.subr.mxu0 0.0
    %358 = vmatpush1.msra.mxu0 0.0
    %359 = vmatprep.subr.mxu0 0.0
    %360 = vmatpush1.msra.mxu0 0.0
    %361 = vmatprep.subr.mxu0 0.0
    %362 = vmatpush1.msra.mxu0 0.0
    %363 = vmatprep.subr.mxu0 0.0
    %364 = vmatpush1.msra.mxu0 0.0
    %365 = vmatprep.subr.mxu0 0.0
    %366 = vmatpush1.msra.mxu0 0.0
    %367 = vmatprep.subr.mxu0 0.0
    %368 = vmatpush1.msra.mxu0 0.0
    %369 = vmatprep.subr.mxu0 0.0
    %370 = vmatpush1.msra.mxu0 0.0
    %371 = vmatprep.subr.mxu0 0.0
    %372 = vmatpush1.msra.mxu0 0.0
    %373 = vmatprep.subr.mxu0 0.0
    %374 = vmatpush1.msra.mxu0 0.0
    %375 = vmatprep.subr.mxu0 0.0
    %376 = vmatpush1.msra.mxu0 0.0
    %377 = vmatprep.mubr.f32.mxu0 0.0
    %378 = vmatmul.mubr.f32.gmra.mrb[0].mxu0 %v274
    %v379 = vpop.f32.mrb[0].mxu0
    %v380 = vadd.f32 %v311, %v379
    %v381 = vpop.f32.mrb[0].mxu0
    %v382 = vadd.f32 %v312, %v381
    %383 = vdwg.mxu0
    %v384 = vxor.u32 %v380, 2147483648
    %v385 = vmul.f32 %v384, 1.442695
    %v386 = vpow.pop %v385
    %v387 = vadd.f32 %v386, 1.0
    %v388 = vrcp.pop %v387
    %v389 = vmul.f32 1.0, %v388
    %v390 = vand.u32 2147483647, %v382
    %v391 = vadd.f32 %v390, 1.0
    %v392 = vrcp.pop %v391
    %v393 = vmul.f32 %v382, %v392
    %v394 = vmul.f32 %v389, %v274
    %v395 = vsub.f32 1.0, %v389
    %v396 = vmul.f32 %v395, %v393
    %v397 = vadd.f32 %v394, %v396
    %v398 = vld [vmem:[#allocation4] sm:$0xff]
    %v399 = vld [vmem:[#allocation4 + $0x8] sm:$0xff]
    %v400 = vld [vmem:[#allocation4 + $0x10] sm:$0xff]
    %v401 = vld [vmem:[#allocation4 + $0x18] sm:$0xff]
    %v402 = vld [vmem:[#allocation4 + $0x20] sm:$0xff]
    %v403 = vld [vmem:[#allocation4 + $0x28] sm:$0xff]
    %v404 = vld [vmem:[#allocation4 + $0x30] sm:$0xff]
    %v405 = vld [vmem:[#allocation4 + $0x38] sm:$0xff]
    %v406 = vld [vmem:[#allocation4 + $0x40] sm:$0xff]
    %v407 = vld [vmem:[#allocation4 + $0x48] sm:$0xff]
    %v408 = vld [vmem:[#allocation4 + $0x50] sm:$0xff]
    %v409 = vld [vmem:[#allocation4 + $0x58] sm:$0xff]
    %v410 = vld [vmem:[#allocation4 + $0x60] sm:$0xff]
    %v411 = vld [vmem:[#allocation4 + $0x68] sm:$0xff]
    %v412 = vld [vmem:[#allocation4 + $0x70] sm:$0xff]
    %v413 = vld [vmem:[#allocation4 + $0x78] sm:$0xff]
    %v414 = vld [vmem:[#allocation4 + $0x80] sm:$0xff]
    %v415 = vld [vmem:[#allocation4 + $0x88] sm:$0xff]
    %v416 = vld [vmem:[#allocation4 + $0x90] sm:$0xff]
    %v417 = vld [vmem:[#allocation4 + $0x98] sm:$0xff]
    %v418 = vld [vmem:[#allocation4 + $0xa0] sm:$0xff]
    %v419 = vld [vmem:[#allocation4 + $0xa8] sm:$0xff]
    %v420 = vld [vmem:[#allocation4 + $0xb0] sm:$0xff]
    %v421 = vld [vmem:[#allocation4 + $0xb8] sm:$0xff]
    %v422 = vld [vmem:[#allocation4 + $0xc0] sm:$0xff]
    %v423 = vld [vmem:[#allocation4 + $0xc8] sm:$0xff]
    %v424 = vld [vmem:[#allocation4 + $0xd0] sm:$0xff]
    %v425 = vld [vmem:[#allocation4 + $0xd8] sm:$0xff]
    %v426 = vld [vmem:[#allocation4 + $0xe0] sm:$0xff]
    %v427 = vld [vmem:[#allocation4 + $0xe8] sm:$0xff]
    %v428 = vld [vmem:[#allocation4 + $0xf0] sm:$0xff]
    %v429 = vld [vmem:[#allocation4 + $0xf8] sm:$0xff]
    %v430 = vld [vmem:[#allocation6] sm:$0xff]
    %v431 = vld [vmem:[#allocation6 + $0x8] sm:$0xff]
    %v432 = vld [vmem:[#allocation6 + $0x10] sm:$0xff]
    %v433 = vld [vmem:[#allocation6 + $0x18] sm:$0xff]
    %v434 = vld [vmem:[#allocation6 + $0x20] sm:$0xff]
    %v435 = vld [vmem:[#allocation6 + $0x28] sm:$0xff]
    %v436 = vld [vmem:[#allocation6 + $0x30] sm:$0xff]
    %v437 = vld [vmem:[#allocation6 + $0x38] sm:$0xff]
    %v438 = vld [vmem:[#allocation6 + $0x40] sm:$0xff]
    %v439 = vld [vmem:[#allocation6 + $0x48] sm:$0xff]
    %v440 = vld [vmem:[#allocation6 + $0x50] sm:$0xff]
    %v441 = vld [vmem:[#allocation6 + $0x58] sm:$0xff]
    %v442 = vld [vmem:[#allocation6 + $0x60] sm:$0xff]
    %v443 = vld [vmem:[#allocation6 + $0x68] sm:$0xff]
    %v444 = vld [vmem:[#allocation6 + $0x70] sm:$0xff]
    %v445 = vld [vmem:[#allocation6 + $0x78] sm:$0xff]
    %v446 = vld [vmem:[#allocation6 + $0x80] sm:$0xff]
    %v447 = vld [vmem:[#allocation6 + $0x88] sm:$0xff]
    %v448 = vld [vmem:[#allocation6 + $0x90] sm:$0xff]
    %v449 = vld [vmem:[#allocation6 + $0x98] sm:$0xff]
    %v450 = vld [vmem:[#allocation6 + $0xa0] sm:$0xff]
    %v451 = vld [vmem:[#allocation6 + $0xa8] sm:$0xff]
    %v452 = vld [vmem:[#allocation6 + $0xb0] sm:$0xff]
    %v453 = vld [vmem:[#allocation6 + $0xb8] sm:$0xff]
    %v454 = vld [vmem:[#allocation6 + $0xc0] sm:$0xff]
    %v455 = vld [vmem:[#allocation6 + $0xc8] sm:$0xff]
    %v456 = vld [vmem:[#allocation6 + $0xd0] sm:$0xff]
    %v457 = vld [vmem:[#allocation6 + $0xd8] sm:$0xff]
    %v458 = vld [vmem:[#allocation6 + $0xe0] sm:$0xff]
    %v459 = vld [vmem:[#allocation6 + $0xe8] sm:$0xff]
    %v460 = vld [vmem:[#allocation6 + $0xf0] sm:$0xff]
    %v461 = vld [vmem:[#allocation6 + $0xf8] sm:$0xff]
    %462 = vmatprep.subr.mxu0 %v431
    %463 = vmatpush1.msra.mxu0 %v430
    %464 = vmatprep.subr.mxu0 %v433
    %465 = vmatpush1.msra.mxu0 %v432
    %466 = vmatprep.subr.mxu0 %v435
    %467 = vmatpush1.msra.mxu0 %v434
    %468 = vmatprep.subr.mxu0 %v437
    %469 = vmatpush1.msra.mxu0 %v436
    %470 = vmatprep.subr.mxu0 %v439
    %471 = vmatpush1.msra.mxu0 %v438
    %472 = vmatprep.subr.mxu0 %v441
    %473 = vmatpush1.msra.mxu0 %v440
    %474 = vmatprep.subr.mxu0 %v443
    %475 = vmatpush1.msra.mxu0 %v442
    %476 = vmatprep.subr.mxu0 %v445
    %477 = vmatpush1.msra.mxu0 %v444
    %478 = vmatprep.subr.mxu0 %v447
    %479 = vmatpush1.msra.mxu0 %v446
    %480 = vmatprep.subr.mxu0 %v449
    %481 = vmatpush1.msra.mxu0 %v448
    %482 = vmatprep.subr.mxu0 %v451
    %483 = vmatpush1.msra.mxu0 %v450
    %484 = vmatprep.subr.mxu0 %v453
    %485 = vmatpush1.msra.mxu0 %v452
    %486 = vmatprep.subr.mxu0 %v455
    %487 = vmatpush1.msra.mxu0 %v454
    %488 = vmatprep.subr.mxu0 %v457
    %489 = vmatpush1.msra.mxu0 %v456
    %490 = vmatprep.subr.mxu0 %v459
    %491 = vmatpush1.msra.mxu0 %v458
    %492 = vmatprep.subr.mxu0 %v461
    %493 = vmatpush1.msra.mxu0 %v460
    %494 = vmatprep.subr.mxu0 0.0
    %495 = vmatpush1.msra.mxu0 0.0
    %496 = vmatprep.subr.mxu0 0.0
    %497 = vmatpush1.msra.mxu0 0.0
    %498 = vmatprep.subr.mxu0 0.0
    %499 = vmatpush1.msra.mxu0 0.0
    %500 = vmatprep.subr.mxu0 0.0
    %501 = vmatpush1.msra.mxu0 0.0
    %502 = vmatprep.subr.mxu0 0.0
    %503 = vmatpush1.msra.mxu0 0.0
    %504 = vmatprep.subr.mxu0 0.0
    %505 = vmatpush1.msra.mxu0 0.0
    %506 = vmatprep.subr.mxu0 0.0
    %507 = vmatpush1.msra.mxu0 0.0
    %508 = vmatprep.subr.mxu0 0.0
    %509 = vmatpush1.msra.mxu0 0.0
    %510 = vmatprep.subr.mxu0 0.0
    %511 = vmatpush1.msra.mxu0 0.0
    %512 = vmatprep.subr.mxu0 0.0
    %513 = vmatpush1.msra.mxu0 0.0
    %514 = vmatprep.subr.mxu0 0.0
    %515 = vmatpush1.msra.mxu0 0.0
    %516 = vmatprep.subr.mxu0 0.0
    %517 = vmatpush1.msra.mxu0 0.0
    %518 = vmatprep.subr.mxu0 0.0
    %519 = vmatpush1.msra.mxu0 0.0
    %520 = vmatprep.subr.mxu0 0.0
    %521 = vmatpush1.msra.mxu0 0.0
    %522 = vmatprep.subr.mxu0 0.0
    %523 = vmatpush1.msra.mxu0 0.0
    %524 = vmatprep.subr.mxu0 0.0
    %525 = vmatpush1.msra.mxu0 0.0
    %526 = vmatprep.mubr.f32.mxu0 0.0
    %527 = vmatmul.mubr.f32.gmra.mrb[0].mxu0 %v275
    %v528 = vpop.f32.mrb[0].mxu0
    %v529 = vadd.f32 0.0, %v528
    %v530 = vpop.f32.mrb[0].mxu0
    %v531 = vadd.f32 0.0, %v530
    %532 = vdwg.mxu0
    %533 = vmatprep.subr.mxu0 %v399
    %534 = vmatpush1.msra.mxu0 %v398
    %535 = vmatprep.subr.mxu0 %v401
    %536 = vmatpush1.msra.mxu0 %v400
    %537 = vmatprep.subr.mxu0 %v403
    %538 = vmatpush1.msra.mxu0 %v402
    %539 = vmatprep.subr.mxu0 %v405
    %540 = vmatpush1.msra.mxu0 %v404
    %541 = vmatprep.subr.mxu0 %v407
    %542 = vmatpush1.msra.mxu0 %v406
    %543 = vmatprep.subr.mxu0 %v409
    %544 = vmatpush1.msra.mxu0 %v408
    %545 = vmatprep.subr.mxu0 %v411
    %546 = vmatpush1.msra.mxu0 %v410
    %547 = vmatprep.subr.mxu0 %v413
    %548 = vmatpush1.msra.mxu0 %v412
    %549 = vmatprep.subr.mxu0 %v415
    %550 = vmatpush1.msra.mxu0 %v414
    %551 = vmatprep.subr.mxu0 %v417
    %552 = vmatpush1.msra.mxu0 %v416
    %553 = vmatprep.subr.mxu0 %v419
    %554 = vmatpush1.msra.mxu0 %v418
    %555 = vmatprep.subr.mxu0 %v421
    %556 = vmatpush1.msra.mxu0 %v420
    %557 = vmatprep.subr.mxu0 %v423
    %558 = vmatpush1.msra.mxu0 %v422
    %559 = vmatprep.subr.mxu0 %v425
    %560 = vmatpush1.msra.mxu0 %v424
    %561 = vmatprep.subr.mxu0 %v427
    %562 = vmatpush1.msra.mxu0 %v426
    %563 = vmatprep.subr.mxu0 %v429
    %564 = vmatpush1.msra.mxu0 %v428
    %565 = vmatprep.subr.mxu0 0.0
    %566 = vmatpush1.msra.mxu0 0.0
    %567 = vmatprep.subr.mxu0 0.0
    %568 = vmatpush1.msra.mxu0 0.0
    %569 = vmatprep.subr.mxu0 0.0
    %570 = vmatpush1.msra.mxu0 0.0
    %571 = vmatprep.subr.mxu0 0.0
    %572 = vmatpush1.msra.mxu0 0.0
    %573 = vmatprep.subr.mxu0 0.0
    %574 = vmatpush1.msra.mxu0 0.0
    %575 = vmatprep.subr.mxu0 0.0
    %576 = vmatpush1.msra.mxu0 0.0
    %577 = vmatprep.subr.mxu0 0.0
    %578 = vmatpush1.msra.mxu0 0.0
    %579 = vmatprep.subr.mxu0 0.0
    %580 = vmatpush1.msra.mxu0 0.0
    %581 = vmatprep.subr.mxu0 0.0
    %582 = vmatpush1.msra.mxu0 0.0
    %583 = vmatprep.subr.mxu0 0.0
    %584 = vmatpush1.msra.mxu0 0.0
    %585 = vmatprep.subr.mxu0 0.0
    %586 = vmatpush1.msra.mxu0 0.0
    %587 = vmatprep.subr.mxu0 0.0
    %588 = vmatpush1.msra.mxu0 0.0
    %589 = vmatprep.subr.mxu0 0.0
    %590 = vmatpush1.msra.mxu0 0.0
    %591 = vmatprep.subr.mxu0 0.0
    %592 = vmatpush1.msra.mxu0 0.0
    %593 = vmatprep.subr.mxu0 0.0
    %594 = vmatpush1.msra.mxu0 0.0
    %595 = vmatprep.subr.mxu0 0.0
    %596 = vmatpush1.msra.mxu0 0.0
    %597 = vmatprep.mubr.f32.mxu0 0.0
    %598 = vmatmul.mubr.f32.gmra.mrb[0].mxu0 %v397
    %v599 = vpop.f32.mrb[0].mxu0
    %v600 = vadd.f32 %v529, %v599
    %v601 = vpop.f32.mrb[0].mxu0
    %v602 = vadd.f32 %v531, %v601
    %603 = vdwg.mxu0
    %v604 = vadd.f32 %v600, %v267
    %v605 = vadd.f32 %v602, %v271
    %v606 = vxor.u32 %v604, 2147483648
    %v607 = vmul.f32 %v606, 1.442695
    %v608 = vpow.pop %v607
    %v609 = vadd.f32 %v608, 1.0
    %v610 = vrcp.pop %v609
    %v611 = vmul.f32 1.0, %v610
    %v612 = vand.u32 2147483647, %v605
    %v613 = vadd.f32 %v612, 1.0
    %v614 = vrcp.pop %v613
    %v615 = vmul.f32 %v605, %v614
    %v616 = vmul.f32 %v611, %v275
    %v617 = vsub.f32 1.0, %v611
    %v618 = vmul.f32 %v617, %v615
    %v619 = vadd.f32 %v616, %v618
    %620 = vst [vmem:[#allocation3] sm:$0xff] %v619
    %v621 = vld [vmem:[%s4] sm:$0xff]
    %v622 = vld [vmem:[%s4 + $0x8] sm:$0xff]
    %v623 = vld [vmem:[%s4 + $0x10] sm:$0xff]
    %v624 = vld [vmem:[%s4 + $0x18] sm:$0xff]
    %v625 = vld [vmem:[%s4 + $0x20] sm:$0xff]
    %v626 = vld [vmem:[%s4 + $0x28] sm:$0xff]
    %v627 = vld [vmem:[%s4 + $0x30] sm:$0xff]
    %v628 = vld [vmem:[%s4 + $0x38] sm:$0xff]
    %v629 = vld [vmem:[%s4 + $0x40] sm:$0xff]
    %v630 = vld [vmem:[%s4 + $0x48] sm:$0xff]
    %v631 = vld [vmem:[%s4 + $0x50] sm:$0xff]
    %v632 = vld [vmem:[%s4 + $0x58] sm:$0xff]
    %v633 = vld [vmem:[%s4 + $0x60] sm:$0xff]
    %v634 = vld [vmem:[%s4 + $0x68] sm:$0xff]
    %v635 = vld [vmem:[%s4 + $0x70] sm:$0xff]
    %v636 = vld [vmem:[%s4 + $0x78] sm:$0xff]
    %v637 = vld [vmem:[%s4 + $0x80] sm:$0xff]
    %v638 = vld [vmem:[%s4 + $0x88] sm:$0xff]
    %v639 = vld [vmem:[%s4 + $0x90] sm:$0xff]
    %v640 = vld [vmem:[%s4 + $0x98] sm:$0xff]
    %v641 = vld [vmem:[%s4 + $0xa0] sm:$0xff]
    %v642 = vld [vmem:[%s4 + $0xa8] sm:$0xff]
    %v643 = vld [vmem:[%s4 + $0xb0] sm:$0xff]
    %v644 = vld [vmem:[%s4 + $0xb8] sm:$0xff]
    %v645 = vld [vmem:[%s4 + $0xc0] sm:$0xff]
    %v646 = vld [vmem:[%s4 + $0xc8] sm:$0xff]
    %v647 = vld [vmem:[%s4 + $0xd0] sm:$0xff]
    %v648 = vld [vmem:[%s4 + $0xd8] sm:$0xff]
    %v649 = vld [vmem:[%s4 + $0xe0] sm:$0xff]
    %v650 = vld [vmem:[%s4 + $0xe8] sm:$0xff]
    %v651 = vld [vmem:[%s4 + $0xf0] sm:$0xff]
    %v652 = vld [vmem:[%s4 + $0xf8] sm:$0xff]
    %s653 = smul.u32 1, 2
    %s654 = smul.addr %s653, 8
    %s655 = scalar_lea.vmem [#allocation2], %s654
    %v656 = vld [vmem:[%s655] sm:$0xff]
    %v657 = vld [vmem:[%s655 + $0x8] sm:$0xff]
    %658 = vmatprep.subr.mxu0 %v622
    %659 = vmatpush1.msra.mxu0 %v621
    %660 = vmatprep.subr.mxu0 %v624
    %661 = vmatpush1.msra.mxu0 %v623
    %662 = vmatprep.subr.mxu0 %v626
    %663 = vmatpush1.msra.mxu0 %v625
    %664 = vmatprep.subr.mxu0 %v628
    %665 = vmatpush1.msra.mxu0 %v627
    %666 = vmatprep.subr.mxu0 %v630
    %667 = vmatpush1.msra.mxu0 %v629
    %668 = vmatprep.subr.mxu0 %v632
    %669 = vmatpush1.msra.mxu0 %v631
    %670 = vmatprep.subr.mxu0 %v634
    %671 = vmatpush1.msra.mxu0 %v633
    %672 = vmatprep.subr.mxu0 %v636
    %673 = vmatpush1.msra.mxu0 %v635
    %674 = vmatprep.subr.mxu0 %v638
    %675 = vmatpush1.msra.mxu0 %v637
    %676 = vmatprep.subr.mxu0 %v640
    %677 = vmatpush1.msra.mxu0 %v639
    %678 = vmatprep.subr.mxu0 %v642
    %679 = vmatpush1.msra.mxu0 %v641
    %680 = vmatprep.subr.mxu0 %v644
    %681 = vmatpush1.msra.mxu0 %v643
    %682 = vmatprep.subr.mxu0 %v646
    %683 = vmatpush1.msra.mxu0 %v645
    %684 = vmatprep.subr.mxu0 %v648
    %685 = vmatpush1.msra.mxu0 %v647
    %686 = vmatprep.subr.mxu0 %v650
    %687 = vmatpush1.msra.mxu0 %v649
    %688 = vmatprep.subr.mxu0 %v652
    %689 = vmatpush1.msra.mxu0 %v651
    %690 = vmatprep.subr.mxu0 0.0
    %691 = vmatpush1.msra.mxu0 0.0
    %692 = vmatprep.subr.mxu0 0.0
    %693 = vmatpush1.msra.mxu0 0.0
    %694 = vmatprep.subr.mxu0 0.0
    %695 = vmatpush1.msra.mxu0 0.0
    %696 = vmatprep.subr.mxu0 0.0
    %697 = vmatpush1.msra.mxu0 0.0
    %698 = vmatprep.subr.mxu0 0.0
    %699 = vmatpush1.msra.mxu0 0.0
    %700 = vmatprep.subr.mxu0 0.0
    %701 = vmatpush1.msra.mxu0 0.0
    %702 = vmatprep.subr.mxu0 0.0
    %703 = vmatpush1.msra.mxu0 0.0
    %704 = vmatprep.subr.mxu0 0.0
    %705 = vmatpush1.msra.mxu0 0.0
    %706 = vmatprep.subr.mxu0 0.0
    %707 = vmatpush1.msra.mxu0 0.0
    %708 = vmatprep.subr.mxu0 0.0
    %709 = vmatpush1.msra.mxu0 0.0
    %710 = vmatprep.subr.mxu0 0.0
    %711 = vmatpush1.msra.mxu0 0.0
    %712 = vmatprep.subr.mxu0 0.0
    %713 = vmatpush1.msra.mxu0 0.0
    %714 = vmatprep.subr.mxu0 0.0
    %715 = vmatpush1.msra.mxu0 0.0
    %716 = vmatprep.subr.mxu0 0.0
    %717 = vmatpush1.msra.mxu0 0.0
    %718 = vmatprep.subr.mxu0 0.0
    %719 = vmatpush1.msra.mxu0 0.0
    %720 = vmatprep.subr.mxu0 0.0
    %721 = vmatpush1.msra.mxu0 0.0
    %722 = vmatprep.mubr.f32.mxu0 0.0
    %723 = vmatmul.mubr.f32.gmra.mrb[0].mxu0 %v397
    %v724 = vpop.f32.mrb[0].mxu0
    %v725 = vadd.f32 %v656, %v724
    %v726 = vpop.f32.mrb[0].mxu0
    %v727 = vadd.f32 %v657, %v726
    %728 = vdwg.mxu0
    %v729 = vxor.u32 %v725, 2147483648
    %v730 = vmul.f32 %v729, 1.442695
    %v731 = vpow.pop %v730
    %v732 = vadd.f32 %v731, 1.0
    %v733 = vrcp.pop %v732
    %v734 = vmul.f32 1.0, %v733
    %v735 = vand.u32 2147483647, %v727
    %v736 = vadd.f32 %v735, 1.0
    %v737 = vrcp.pop %v736
    %v738 = vmul.f32 %v727, %v737
    %v739 = vmul.f32 %v734, %v397
    %v740 = vsub.f32 1.0, %v734
    %v741 = vmul.f32 %v740, %v738
    %v742 = vadd.f32 %v739, %v741
    %v743 = vld [vmem:[#allocation4] sm:$0xff]
    %v744 = vld [vmem:[#allocation4 + $0x8] sm:$0xff]
    %v745 = vld [vmem:[#allocation4 + $0x10] sm:$0xff]
    %v746 = vld [vmem:[#allocation4 + $0x18] sm:$0xff]
    %v747 = vld [vmem:[#allocation4 + $0x20] sm:$0xff]
    %v748 = vld [vmem:[#allocation4 + $0x28] sm:$0xff]
    %v749 = vld [vmem:[#allocation4 + $0x30] sm:$0xff]
    %v750 = vld [vmem:[#allocation4 + $0x38] sm:$0xff]
    %v751 = vld [vmem:[#allocation4 + $0x40] sm:$0xff]
    %v752 = vld [vmem:[#allocation4 + $0x48] sm:$0xff]
    %v753 = vld [vmem:[#allocation4 + $0x50] sm:$0xff]
    %v754 = vld [vmem:[#allocation4 + $0x58] sm:$0xff]
    %v755 = vld [vmem:[#allocation4 + $0x60] sm:$0xff]
    %v756 = vld [vmem:[#allocation4 + $0x68] sm:$0xff]
    %v757 = vld [vmem:[#allocation4 + $0x70] sm:$0xff]
    %v758 = vld [vmem:[#allocation4 + $0x78] sm:$0xff]
    %v759 = vld [vmem:[#allocation4 + $0x80] sm:$0xff]
    %v760 = vld [vmem:[#allocation4 + $0x88] sm:$0xff]
    %v761 = vld [vmem:[#allocation4 + $0x90] sm:$0xff]
    %v762 = vld [vmem:[#allocation4 + $0x98] sm:$0xff]
    %v763 = vld [vmem:[#allocation4 + $0xa0] sm:$0xff]
    %v764 = vld [vmem:[#allocation4 + $0xa8] sm:$0xff]
    %v765 = vld [vmem:[#allocation4 + $0xb0] sm:$0xff]
    %v766 = vld [vmem:[#allocation4 + $0xb8] sm:$0xff]
    %v767 = vld [vmem:[#allocation4 + $0xc0] sm:$0xff]
    %v768 = vld [vmem:[#allocation4 + $0xc8] sm:$0xff]
    %v769 = vld [vmem:[#allocation4 + $0xd0] sm:$0xff]
    %v770 = vld [vmem:[#allocation4 + $0xd8] sm:$0xff]
    %v771 = vld [vmem:[#allocation4 + $0xe0] sm:$0xff]
    %v772 = vld [vmem:[#allocation4 + $0xe8] sm:$0xff]
    %v773 = vld [vmem:[#allocation4 + $0xf0] sm:$0xff]
    %v774 = vld [vmem:[#allocation4 + $0xf8] sm:$0xff]
    %v775 = vld [vmem:[#allocation6] sm:$0xff]
    %v776 = vld [vmem:[#allocation6 + $0x8] sm:$0xff]
    %v777 = vld [vmem:[#allocation6 + $0x10] sm:$0xff]
    %v778 = vld [vmem:[#allocation6 + $0x18] sm:$0xff]
    %v779 = vld [vmem:[#allocation6 + $0x20] sm:$0xff]
    %v780 = vld [vmem:[#allocation6 + $0x28] sm:$0xff]
    %v781 = vld [vmem:[#allocation6 + $0x30] sm:$0xff]
    %v782 = vld [vmem:[#allocation6 + $0x38] sm:$0xff]
    %v783 = vld [vmem:[#allocation6 + $0x40] sm:$0xff]
    %v784 = vld [vmem:[#allocation6 + $0x48] sm:$0xff]
    %v785 = vld [vmem:[#allocation6 + $0x50] sm:$0xff]
    %v786 = vld [vmem:[#allocation6 + $0x58] sm:$0xff]
    %v787 = vld [vmem:[#allocation6 + $0x60] sm:$0xff]
    %v788 = vld [vmem:[#allocation6 + $0x68] sm:$0xff]
    %v789 = vld [vmem:[#allocation6 + $0x70] sm:$0xff]
    %v790 = vld [vmem:[#allocation6 + $0x78] sm:$0xff]
    %v791 = vld [vmem:[#allocation6 + $0x80] sm:$0xff]
    %v792 = vld [vmem:[#allocation6 + $0x88] sm:$0xff]
    %v793 = vld [vmem:[#allocation6 + $0x90] sm:$0xff]
    %v794 = vld [vmem:[#allocation6 + $0x98] sm:$0xff]
    %v795 = vld [vmem:[#allocation6 + $0xa0] sm:$0xff]
    %v796 = vld [vmem:[#allocation6 + $0xa8] sm:$0xff]
    %v797 = vld [vmem:[#allocation6 + $0xb0] sm:$0xff]
    %v798 = vld [vmem:[#allocation6 + $0xb8] sm:$0xff]
    %v799 = vld [vmem:[#allocation6 + $0xc0] sm:$0xff]
    %v800 = vld [vmem:[#allocation6 + $0xc8] sm:$0xff]
    %v801 = vld [vmem:[#allocation6 + $0xd0] sm:$0xff]
    %v802 = vld [vmem:[#allocation6 + $0xd8] sm:$0xff]
    %v803 = vld [vmem:[#allocation6 + $0xe0] sm:$0xff]
    %v804 = vld [vmem:[#allocation6 + $0xe8] sm:$0xff]
    %v805 = vld [vmem:[#allocation6 + $0xf0] sm:$0xff]
    %v806 = vld [vmem:[#allocation6 + $0xf8] sm:$0xff]
    %807 = vmatprep.subr.mxu0 %v776
    %808 = vmatpush1.msra.mxu0 %v775
    %809 = vmatprep.subr.mxu0 %v778
    %810 = vmatpush1.msra.mxu0 %v777
    %811 = vmatprep.subr.mxu0 %v780
    %812 = vmatpush1.msra.mxu0 %v779
    %813 = vmatprep.subr.mxu0 %v782
    %814 = vmatpush1.msra.mxu0 %v781
    %815 = vmatprep.subr.mxu0 %v784
    %816 = vmatpush1.msra.mxu0 %v783
    %817 = vmatprep.subr.mxu0 %v786
    %818 = vmatpush1.msra.mxu0 %v785
    %819 = vmatprep.subr.mxu0 %v788
    %820 = vmatpush1.msra.mxu0 %v787
    %821 = vmatprep.subr.mxu0 %v790
    %822 = vmatpush1.msra.mxu0 %v789
    %823 = vmatprep.subr.mxu0 %v792
    %824 = vmatpush1.msra.mxu0 %v791
    %825 = vmatprep.subr.mxu0 %v794
    %826 = vmatpush1.msra.mxu0 %v793
    %827 = vmatprep.subr.mxu0 %v796
    %828 = vmatpush1.msra.mxu0 %v795
    %829 = vmatprep.subr.mxu0 %v798
    %830 = vmatpush1.msra.mxu0 %v797
    %831 = vmatprep.subr.mxu0 %v800
    %832 = vmatpush1.msra.mxu0 %v799
    %833 = vmatprep.subr.mxu0 %v802
    %834 = vmatpush1.msra.mxu0 %v801
    %835 = vmatprep.subr.mxu0 %v804
    %836 = vmatpush1.msra.mxu0 %v803
    %837 = vmatprep.subr.mxu0 %v806
    %838 = vmatpush1.msra.mxu0 %v805
    %839 = vmatprep.subr.mxu0 0.0
    %840 = vmatpush1.msra.mxu0 0.0
    %841 = vmatprep.subr.mxu0 0.0
    %842 = vmatpush1.msra.mxu0 0.0
    %843 = vmatprep.subr.mxu0 0.0
    %844 = vmatpush1.msra.mxu0 0.0
    %845 = vmatprep.subr.mxu0 0.0
    %846 = vmatpush1.msra.mxu0 0.0
    %847 = vmatprep.subr.mxu0 0.0
    %848 = vmatpush1.msra.mxu0 0.0
    %849 = vmatprep.subr.mxu0 0.0
    %850 = vmatpush1.msra.mxu0 0.0
    %851 = vmatprep.subr.mxu0 0.0
    %852 = vmatpush1.msra.mxu0 0.0
    %853 = vmatprep.subr.mxu0 0.0
    %854 = vmatpush1.msra.mxu0 0.0
    %855 = vmatprep.subr.mxu0 0.0
    %856 = vmatpush1.msra.mxu0 0.0
    %857 = vmatprep.subr.mxu0 0.0
    %858 = vmatpush1.msra.mxu0 0.0
    %859 = vmatprep.subr.mxu0 0.0
    %860 = vmatpush1.msra.mxu0 0.0
    %861 = vmatprep.subr.mxu0 0.0
    %862 = vmatpush1.msra.mxu0 0.0
    %863 = vmatprep.subr.mxu0 0.0
    %864 = vmatpush1.msra.mxu0 0.0
    %865 = vmatprep.subr.mxu0 0.0
    %866 = vmatpush1.msra.mxu0 0.0
    %867 = vmatprep.subr.mxu0 0.0
    %868 = vmatpush1.msra.mxu0 0.0
    %869 = vmatprep.subr.mxu0 0.0
    %870 = vmatpush1.msra.mxu0 0.0
    %871 = vmatprep.mubr.f32.mxu0 0.0
    %872 = vmatmul.mubr.f32.gmra.mrb[0].mxu0 %v619
    %v873 = vpop.f32.mrb[0].mxu0
    %v874 = vadd.f32 0.0, %v873
    %v875 = vpop.f32.mrb[0].mxu0
    %v876 = vadd.f32 0.0, %v875
    %877 = vdwg.mxu0
    %878 = vmatprep.subr.mxu0 %v744
    %879 = vmatpush1.msra.mxu0 %v743
    %880 = vmatprep.subr.mxu0 %v746
    %881 = vmatpush1.msra.mxu0 %v745
    %882 = vmatprep.subr.mxu0 %v748
    %883 = vmatpush1.msra.mxu0 %v747
    %884 = vmatprep.subr.mxu0 %v750
    %885 = vmatpush1.msra.mxu0 %v749
    %886 = vmatprep.subr.mxu0 %v752
    %887 = vmatpush1.msra.mxu0 %v751
    %888 = vmatprep.subr.mxu0 %v754
    %889 = vmatpush1.msra.mxu0 %v753
    %890 = vmatprep.subr.mxu0 %v756
    %891 = vmatpush1.msra.mxu0 %v755
    %892 = vmatprep.subr.mxu0 %v758
    %893 = vmatpush1.msra.mxu0 %v757
    %894 = vmatprep.subr.mxu0 %v760
    %895 = vmatpush1.msra.mxu0 %v759
    %896 = vmatprep.subr.mxu0 %v762
    %897 = vmatpush1.msra.mxu0 %v761
    %898 = vmatprep.subr.mxu0 %v764
    %899 = vmatpush1.msra.mxu0 %v763
    %900 = vmatprep.subr.mxu0 %v766
    %901 = vmatpush1.msra.mxu0 %v765
    %902 = vmatprep.subr.mxu0 %v768
    %903 = vmatpush1.msra.mxu0 %v767
    %904 = vmatprep.subr.mxu0 %v770
    %905 = vmatpush1.msra.mxu0 %v769
    %906 = vmatprep.subr.mxu0 %v772
    %907 = vmatpush1.msra.mxu0 %v771
    %908 = vmatprep.subr.mxu0 %v774
    %909 = vmatpush1.msra.mxu0 %v773
    %910 = vmatprep.subr.mxu0 0.0
    %911 = vmatpush1.msra.mxu0 0.0
    %912 = vmatprep.subr.mxu0 0.0
    %913 = vmatpush1.msra.mxu0 0.0
    %914 = vmatprep.subr.mxu0 0.0
    %915 = vmatpush1.msra.mxu0 0.0
    %916 = vmatprep.subr.mxu0 0.0
    %917 = vmatpush1.msra.mxu0 0.0
    %918 = vmatprep.subr.mxu0 0.0
    %919 = vmatpush1.msra.mxu0 0.0
    %920 = vmatprep.subr.mxu0 0.0
    %921 = vmatpush1.msra.mxu0 0.0
    %922 = vmatprep.subr.mxu0 0.0
    %923 = vmatpush1.msra.mxu0 0.0
    %924 = vmatprep.subr.mxu0 0.0
    %925 = vmatpush1.msra.mxu0 0.0
    %926 = vmatprep.subr.mxu0 0.0
    %927 = vmatpush1.msra.mxu0 0.0
    %928 = vmatprep.subr.mxu0 0.0
    %929 = vmatpush1.msra.mxu0 0.0
    %930 = vmatprep.subr.mxu0 0.0
    %931 = vmatpush1.msra.mxu0 0.0
    %932 = vmatprep.subr.mxu0 0.0
    %933 = vmatpush1.msra.mxu0 0.0
    %934 = vmatprep.subr.mxu0 0.0
    %935 = vmatpush1.msra.mxu0 0.0
    %936 = vmatprep.subr.mxu0 0.0
    %937 = vmatpush1.msra.mxu0 0.0
    %938 = vmatprep.subr.mxu0 0.0
    %939 = vmatpush1.msra.mxu0 0.0
    %940 = vmatprep.subr.mxu0 0.0
    %941 = vmatpush1.msra.mxu0 0.0
    %942 = vmatprep.mubr.f32.mxu0 0.0
    %943 = vmatmul.mubr.f32.gmra.mrb[0].mxu0 %v742
    %v944 = vpop.f32.mrb[0].mxu0
    %v945 = vadd.f32 %v874, %v944
    %v946 = vpop.f32.mrb[0].mxu0
    %v947 = vadd.f32 %v876, %v946
    %948 = vdwg.mxu0
    %v949 = vadd.f32 %v945, %v267
    %v950 = vadd.f32 %v947, %v271
    %v951 = vxor.u32 %v949, 2147483648
    %v952 = vmul.f32 %v951, 1.442695
    %v953 = vpow.pop %v952
    %v954 = vadd.f32 %v953, 1.0
    %v955 = vrcp.pop %v954
    %v956 = vmul.f32 1.0, %v955
    %v957 = vand.u32 2147483647, %v950
    %v958 = vadd.f32 %v957, 1.0
    %v959 = vrcp.pop %v958
    %v960 = vmul.f32 %v950, %v959
    %v961 = vmul.f32 %v956, %v619
    %v962 = vsub.f32 1.0, %v956
    %v963 = vmul.f32 %v962, %v960
    %v964 = vadd.f32 %v961, %v963
    %s965 = scalar_lea.vmem [#allocation3], 8
    %966 = vst [vmem:[%s965] sm:$0xff] %v964
    %v967 = vld [vmem:[%s4] sm:$0xff]
    %v968 = vld [vmem:[%s4 + $0x8] sm:$0xff]
    %v969 = vld [vmem:[%s4 + $0x10] sm:$0xff]
    %v970 = vld [vmem:[%s4 + $0x18] sm:$0xff]
    %v971 = vld [vmem:[%s4 + $0x20] sm:$0xff]
    %v972 = vld [vmem:[%s4 + $0x28] sm:$0xff]
    %v973 = vld [vmem:[%s4 + $0x30] sm:$0xff]
    %v974 = vld [vmem:[%s4 + $0x38] sm:$0xff]
    %v975 = vld [vmem:[%s4 + $0x40] sm:$0xff]
    %v976 = vld [vmem:[%s4 + $0x48] sm:$0xff]
    %v977 = vld [vmem:[%s4 + $0x50] sm:$0xff]
    %v978 = vld [vmem:[%s4 + $0x58] sm:$0xff]
    %v979 = vld [vmem:[%s4 + $0x60] sm:$0xff]
    %v980 = vld [vmem:[%s4 + $0x68] sm:$0xff]
    %v981 = vld [vmem:[%s4 + $0x70] sm:$0xff]
    %v982 = vld [vmem:[%s4 + $0x78] sm:$0xff]
    %v983 = vld [vmem:[%s4 + $0x80] sm:$0xff]
    %v984 = vld [vmem:[%s4 + $0x88] sm:$0xff]
    %v985 = vld [vmem:[%s4 + $0x90] sm:$0xff]
    %v986 = vld [vmem:[%s4 + $0x98] sm:$0xff]
    %v987 = vld [vmem:[%s4 + $0xa0] sm:$0xff]
    %v988 = vld [vmem:[%s4 + $0xa8] sm:$0xff]
    %v989 = vld [vmem:[%s4 + $0xb0] sm:$0xff]
    %v990 = vld [vmem:[%s4 + $0xb8] sm:$0xff]
    %v991 = vld [vmem:[%s4 + $0xc0] sm:$0xff]
    %v992 = vld [vmem:[%s4 + $0xc8] sm:$0xff]
    %v993 = vld [vmem:[%s4 + $0xd0] sm:$0xff]
    %v994 = vld [vmem:[%s4 + $0xd8] sm:$0xff]
    %v995 = vld [vmem:[%s4 + $0xe0] sm:$0xff]
    %v996 = vld [vmem:[%s4 + $0xe8] sm:$0xff]
    %v997 = vld [vmem:[%s4 + $0xf0] sm:$0xff]
    %v998 = vld [vmem:[%s4 + $0xf8] sm:$0xff]
    %s999 = smul.u32 2, 2
    %s1000 = smul.addr %s999, 8
    %s1001 = scalar_lea.vmem [#allocation2], %s1000
    %v1002 = vld [vmem:[%s1001] sm:$0xff]
    %v1003 = vld [vmem:[%s1001 + $0x8] sm:$0xff]
    %1004 = vmatprep.subr.mxu0 %v968
    %1005 = vmatpush1.msra.mxu0 %v967
    %1006 = vmatprep.subr.mxu0 %v970
    %1007 = vmatpush1.msra.mxu0 %v969
    %1008 = vmatprep.subr.mxu0 %v972
    %1009 = vmatpush1.msra.mxu0 %v971
    %1010 = vmatprep.subr.mxu0 %v974
    %1011 = vmatpush1.msra.mxu0 %v973
    %1012 = vmatprep.subr.mxu0 %v976
    %1013 = vmatpush1.msra.mxu0 %v975
    %1014 = vmatprep.subr.mxu0 %v978
    %1015 = vmatpush1.msra.mxu0 %v977
    %1016 = vmatprep.subr.mxu0 %v980
    %1017 = vmatpush1.msra.mxu0 %v979
    %1018 = vmatprep.subr.mxu0 %v982
    %1019 = vmatpush1.msra.mxu0 %v981
    %1020 = vmatprep.subr.mxu0 %v984
    %1021 = vmatpush1.msra.mxu0 %v983
    %1022 = vmatprep.subr.mxu0 %v986
    %1023 = vmatpush1.msra.mxu0 %v985
    %1024 = vmatprep.subr.mxu0 %v988
    %1025 = vmatpush1.msra.mxu0 %v987
    %1026 = vmatprep.subr.mxu0 %v990
    %1027 = vmatpush1.msra.mxu0 %v989
    %1028 = vmatprep.subr.mxu0 %v992
    %1029 = vmatpush1.msra.mxu0 %v991
    %1030 = vmatprep.subr.mxu0 %v994
    %1031 = vmatpush1.msra.mxu0 %v993
    %1032 = vmatprep.subr.mxu0 %v996
    %1033 = vmatpush1.msra.mxu0 %v995
    %1034 = vmatprep.subr.mxu0 %v998
    %1035 = vmatpush1.msra.mxu0 %v997
    %1036 = vmatprep.subr.mxu0 0.0
    %1037 = vmatpush1.msra.mxu0 0.0
    %1038 = vmatprep.subr.mxu0 0.0
    %1039 = vmatpush1.msra.mxu0 0.0
    %1040 = vmatprep.subr.mxu0 0.0
    %1041 = vmatpush1.msra.mxu0 0.0
    %1042 = vmatprep.subr.mxu0 0.0
    %1043 = vmatpush1.msra.mxu0 0.0
    %1044 = vmatprep.subr.mxu0 0.0
    %1045 = vmatpush1.msra.mxu0 0.0
    %1046 = vmatprep.subr.mxu0 0.0
    %1047 = vmatpush1.msra.mxu0 0.0
    %1048 = vmatprep.subr.mxu0 0.0
    %1049 = vmatpush1.msra.mxu0 0.0
    %1050 = vmatprep.subr.mxu0 0.0
    %1051 = vmatpush1.msra.mxu0 0.0
    %1052 = vmatprep.subr.mxu0 0.0
    %1053 = vmatpush1.msra.mxu0 0.0
    %1054 = vmatprep.subr.mxu0 0.0
    %1055 = vmatpush1.msra.mxu0 0.0
    %1056 = vmatprep.subr.mxu0 0.0
    %1057 = vmatpush1.msra.mxu0 0.0
    %1058 = vmatprep.subr.mxu0 0.0
    %1059 = vmatpush1.msra.mxu0 0.0
    %1060 = vmatprep.subr.mxu0 0.0
    %1061 = vmatpush1.msra.mxu0 0.0
    %1062 = vmatprep.subr.mxu0 0.0
    %1063 = vmatpush1.msra.mxu0 0.0
    %1064 = vmatprep.subr.mxu0 0.0
    %1065 = vmatpush1.msra.mxu0 0.0
    %1066 = vmatprep.subr.mxu0 0.0
    %1067 = vmatpush1.msra.mxu0 0.0
    %1068 = vmatprep.mubr.f32.mxu0 0.0
    %1069 = vmatmul.mubr.f32.gmra.mrb[0].mxu0 %v742
    %v1070 = vpop.f32.mrb[0].mxu0
    %v1071 = vadd.f32 %v1002, %v1070
    %v1072 = vpop.f32.mrb[0].mxu0
    %v1073 = vadd.f32 %v1003, %v1072
    %1074 = vdwg.mxu0
    %v1075 = vxor.u32 %v1071, 2147483648
    %v1076 = vmul.f32 %v1075, 1.442695
    %v1077 = vpow.pop %v1076
    %v1078 = vadd.f32 %v1077, 1.0
    %v1079 = vrcp.pop %v1078
    %v1080 = vmul.f32 1.0, %v1079
    %v1081 = vand.u32 2147483647, %v1073
    %v1082 = vadd.f32 %v1081, 1.0
    %v1083 = vrcp.pop %v1082
    %v1084 = vmul.f32 %v1073, %v1083
    %v1085 = vmul.f32 %v1080, %v742
    %v1086 = vsub.f32 1.0, %v1080
    %v1087 = vmul.f32 %v1086, %v1084
    %v1088 = vadd.f32 %v1085, %v1087
    %v1089 = vld [vmem:[#allocation4] sm:$0xff]
    %v1090 = vld [vmem:[#allocation4 + $0x8] sm:$0xff]
    %v1091 = vld [vmem:[#allocation4 + $0x10] sm:$0xff]
    %v1092 = vld [vmem:[#allocation4 + $0x18] sm:$0xff]
    %v1093 = vld [vmem:[#allocation4 + $0x20] sm:$0xff]
    %v1094 = vld [vmem:[#allocation4 + $0x28] sm:$0xff]
    %v1095 = vld [vmem:[#allocation4 + $0x30] sm:$0xff]
    %v1096 = vld [vmem:[#allocation4 + $0x38] sm:$0xff]
    %v1097 = vld [vmem:[#allocation4 + $0x40] sm:$0xff]
    %v1098 = vld [vmem:[#allocation4 + $0x48] sm:$0xff]
    %v1099 = vld [vmem:[#allocation4 + $0x50] sm:$0xff]
    %v1100 = vld [vmem:[#allocation4 + $0x58] sm:$0xff]
    %v1101 = vld [vmem:[#allocation4 + $0x60] sm:$0xff]
    %v1102 = vld [vmem:[#allocation4 + $0x68] sm:$0xff]
    %v1103 = vld [vmem:[#allocation4 + $0x70] sm:$0xff]
    %v1104 = vld [vmem:[#allocation4 + $0x78] sm:$0xff]
    %v1105 = vld [vmem:[#allocation4 + $0x80] sm:$0xff]
    %v1106 = vld [vmem:[#allocation4 + $0x88] sm:$0xff]
    %v1107 = vld [vmem:[#allocation4 + $0x90] sm:$0xff]
    %v1108 = vld [vmem:[#allocation4 + $0x98] sm:$0xff]
    %v1109 = vld [vmem:[#allocation4 + $0xa0] sm:$0xff]
    %v1110 = vld [vmem:[#allocation4 + $0xa8] sm:$0xff]
    %v1111 = vld [vmem:[#allocation4 + $0xb0] sm:$0xff]
    %v1112 = vld [vmem:[#allocation4 + $0xb8] sm:$0xff]
    %v1113 = vld [vmem:[#allocation4 + $0xc0] sm:$0xff]
    %v1114 = vld [vmem:[#allocation4 + $0xc8] sm:$0xff]
    %v1115 = vld [vmem:[#allocation4 + $0xd0] sm:$0xff]
    %v1116 = vld [vmem:[#allocation4 + $0xd8] sm:$0xff]
    %v1117 = vld [vmem:[#allocation4 + $0xe0] sm:$0xff]
    %v1118 = vld [vmem:[#allocation4 + $0xe8] sm:$0xff]
    %v1119 = vld [vmem:[#allocation4 + $0xf0] sm:$0xff]
    %v1120 = vld [vmem:[#allocation4 + $0xf8] sm:$0xff]
    %v1121 = vld [vmem:[#allocation6] sm:$0xff]
    %v1122 = vld [vmem:[#allocation6 + $0x8] sm:$0xff]
    %v1123 = vld [vmem:[#allocation6 + $0x10] sm:$0xff]
    %v1124 = vld [vmem:[#allocation6 + $0x18] sm:$0xff]
    %v1125 = vld [vmem:[#allocation6 + $0x20] sm:$0xff]
    %v1126 = vld [vmem:[#allocation6 + $0x28] sm:$0xff]
    %v1127 = vld [vmem:[#allocation6 + $0x30] sm:$0xff]
    %v1128 = vld [vmem:[#allocation6 + $0x38] sm:$0xff]
    %v1129 = vld [vmem:[#allocation6 + $0x40] sm:$0xff]
    %v1130 = vld [vmem:[#allocation6 + $0x48] sm:$0xff]
    %v1131 = vld [vmem:[#allocation6 + $0x50] sm:$0xff]
    %v1132 = vld [vmem:[#allocation6 + $0x58] sm:$0xff]
    %v1133 = vld [vmem:[#allocation6 + $0x60] sm:$0xff]
    %v1134 = vld [vmem:[#allocation6 + $0x68] sm:$0xff]
    %v1135 = vld [vmem:[#allocation6 + $0x70] sm:$0xff]
    %v1136 = vld [vmem:[#allocation6 + $0x78] sm:$0xff]
    %v1137 = vld [vmem:[#allocation6 + $0x80] sm:$0xff]
    %v1138 = vld [vmem:[#allocation6 + $0x88] sm:$0xff]
    %v1139 = vld [vmem:[#allocation6 + $0x90] sm:$0xff]
    %v1140 = vld [vmem:[#allocation6 + $0x98] sm:$0xff]
    %v1141 = vld [vmem:[#allocation6 + $0xa0] sm:$0xff]
    %v1142 = vld [vmem:[#allocation6 + $0xa8] sm:$0xff]
    %v1143 = vld [vmem:[#allocation6 + $0xb0] sm:$0xff]
    %v1144 = vld [vmem:[#allocation6 + $0xb8] sm:$0xff]
    %v1145 = vld [vmem:[#allocation6 + $0xc0] sm:$0xff]
    %v1146 = vld [vmem:[#allocation6 + $0xc8] sm:$0xff]
    %v1147 = vld [vmem:[#allocation6 + $0xd0] sm:$0xff]
    %v1148 = vld [vmem:[#allocation6 + $0xd8] sm:$0xff]
    %v1149 = vld [vmem:[#allocation6 + $0xe0] sm:$0xff]
    %v1150 = vld [vmem:[#allocation6 + $0xe8] sm:$0xff]
    %v1151 = vld [vmem:[#allocation6 + $0xf0] sm:$0xff]
    %v1152 = vld [vmem:[#allocation6 + $0xf8] sm:$0xff]
    %1153 = vmatprep.subr.mxu0 %v1122
    %1154 = vmatpush1.msra.mxu0 %v1121
    %1155 = vmatprep.subr.mxu0 %v1124
    %1156 = vmatpush1.msra.mxu0 %v1123
    %1157 = vmatprep.subr.mxu0 %v1126
    %1158 = vmatpush1.msra.mxu0 %v1125
    %1159 = vmatprep.subr.mxu0 %v1128
    %1160 = vmatpush1.msra.mxu0 %v1127
    %1161 = vmatprep.subr.mxu0 %v1130
    %1162 = vmatpush1.msra.mxu0 %v1129
    %1163 = vmatprep.subr.mxu0 %v1132
    %1164 = vmatpush1.msra.mxu0 %v1131
    %1165 = vmatprep.subr.mxu0 %v1134
    %1166 = vmatpush1.msra.mxu0 %v1133
    %1167 = vmatprep.subr.mxu0 %v1136
    %1168 = vmatpush1.msra.mxu0 %v1135
    %1169 = vmatprep.subr.mxu0 %v1138
    %1170 = vmatpush1.msra.mxu0 %v1137
    %1171 = vmatprep.subr.mxu0 %v1140
    %1172 = vmatpush1.msra.mxu0 %v1139
    %1173 = vmatprep.subr.mxu0 %v1142
    %1174 = vmatpush1.msra.mxu0 %v1141
    %1175 = vmatprep.subr.mxu0 %v1144
    %1176 = vmatpush1.msra.mxu0 %v1143
    %1177 = vmatprep.subr.mxu0 %v1146
    %1178 = vmatpush1.msra.mxu0 %v1145
    %1179 = vmatprep.subr.mxu0 %v1148
    %1180 = vmatpush1.msra.mxu0 %v1147
    %1181 = vmatprep.subr.mxu0 %v1150
    %1182 = vmatpush1.msra.mxu0 %v1149
    %1183 = vmatprep.subr.mxu0 %v1152
    %1184 = vmatpush1.msra.mxu0 %v1151
    %1185 = vmatprep.subr.mxu0 0.0
    %1186 = vmatpush1.msra.mxu0 0.0
    %1187 = vmatprep.subr.mxu0 0.0
    %1188 = vmatpush1.msra.mxu0 0.0
    %1189 = vmatprep.subr.mxu0 0.0
    %1190 = vmatpush1.msra.mxu0 0.0
    %1191 = vmatprep.subr.mxu0 0.0
    %1192 = vmatpush1.msra.mxu0 0.0
    %1193 = vmatprep.subr.mxu0 0.0
    %1194 = vmatpush1.msra.mxu0 0.0
    %1195 = vmatprep.subr.mxu0 0.0
    %1196 = vmatpush1.msra.mxu0 0.0
    %1197 = vmatprep.subr.mxu0 0.0
    %1198 = vmatpush1.msra.mxu0 0.0
    %1199 = vmatprep.subr.mxu0 0.0
    %1200 = vmatpush1.msra.mxu0 0.0
    %1201 = vmatprep.subr.mxu0 0.0
    %1202 = vmatpush1.msra.mxu0 0.0
    %1203 = vmatprep.subr.mxu0 0.0
    %1204 = vmatpush1.msra.mxu0 0.0
    %1205 = vmatprep.subr.mxu0 0.0
    %1206 = vmatpush1.msra.mxu0 0.0
    %1207 = vmatprep.subr.mxu0 0.0
    %1208 = vmatpush1.msra.mxu0 0.0
    %1209 = vmatprep.subr.mxu0 0.0
    %1210 = vmatpush1.msra.mxu0 0.0
    %1211 = vmatprep.subr.mxu0 0.0
    %1212 = vmatpush1.msra.mxu0 0.0
    %1213 = vmatprep.subr.mxu0 0.0
    %1214 = vmatpush1.msra.mxu0 0.0
    %1215 = vmatprep.subr.mxu0 0.0
    %1216 = vmatpush1.msra.mxu0 0.0
    %1217 = vmatprep.mubr.f32.mxu0 0.0
    %1218 = vmatmul.mubr.f32.gmra.mrb[0].mxu0 %v964
    %v1219 = vpop.f32.mrb[0].mxu0
    %v1220 = vadd.f32 0.0, %v1219
    %v1221 = vpop.f32.mrb[0].mxu0
    %v1222 = vadd.f32 0.0, %v1221
    %1223 = vdwg.mxu0
    %1224 = vmatprep.subr.mxu0 %v1090
    %1225 = vmatpush1.msra.mxu0 %v1089
    %1226 = vmatprep.subr.mxu0 %v1092
    %1227 = vmatpush1.msra.mxu0 %v1091
    %1228 = vmatprep.subr.mxu0 %v1094
    %1229 = vmatpush1.msra.mxu0 %v1093
    %1230 = vmatprep.subr.mxu0 %v1096
    %1231 = vmatpush1.msra.mxu0 %v1095
    %1232 = vmatprep.subr.mxu0 %v1098
    %1233 = vmatpush1.msra.mxu0 %v1097
    %1234 = vmatprep.subr.mxu0 %v1100
    %1235 = vmatpush1.msra.mxu0 %v1099
    %1236 = vmatprep.subr.mxu0 %v1102
    %1237 = vmatpush1.msra.mxu0 %v1101
    %1238 = vmatprep.subr.mxu0 %v1104
    %1239 = vmatpush1.msra.mxu0 %v1103
    %1240 = vmatprep.subr.mxu0 %v1106
    %1241 = vmatpush1.msra.mxu0 %v1105
    %1242 = vmatprep.subr.mxu0 %v1108
    %1243 = vmatpush1.msra.mxu0 %v1107
    %1244 = vmatprep.subr.mxu0 %v1110
    %1245 = vmatpush1.msra.mxu0 %v1109
    %1246 = vmatprep.subr.mxu0 %v1112
    %1247 = vmatpush1.msra.mxu0 %v1111
    %1248 = vmatprep.subr.mxu0 %v1114
    %1249 = vmatpush1.msra.mxu0 %v1113
    %1250 = vmatprep.subr.mxu0 %v1116
    %1251 = vmatpush1.msra.mxu0 %v1115
    %1252 = vmatprep.subr.mxu0 %v1118
    %1253 = vmatpush1.msra.mxu0 %v1117
    %1254 = vmatprep.subr.mxu0 %v1120
    %1255 = vmatpush1.msra.mxu0 %v1119
    %1256 = vmatprep.subr.mxu0 0.0
    %1257 = vmatpush1.msra.mxu0 0.0
    %1258 = vmatprep.subr.mxu0 0.0
    %1259 = vmatpush1.msra.mxu0 0.0
    %1260 = vmatprep.subr.mxu0 0.0
    %1261 = vmatpush1.msra.mxu0 0.0
    %1262 = vmatprep.subr.mxu0 0.0
    %1263 = vmatpush1.msra.mxu0 0.0
    %1264 = vmatprep.subr.mxu0 0.0
    %1265 = vmatpush1.msra.mxu0 0.0
    %1266 = vmatprep.subr.mxu0 0.0
    %1267 = vmatpush1.msra.mxu0 0.0
    %1268 = vmatprep.subr.mxu0 0.0
    %1269 = vmatpush1.msra.mxu0 0.0
    %1270 = vmatprep.subr.mxu0 0.0
    %1271 = vmatpush1.msra.mxu0 0.0
    %1272 = vmatprep.subr.mxu0 0.0
    %1273 = vmatpush1.msra.mxu0 0.0
    %1274 = vmatprep.subr.mxu0 0.0
    %1275 = vmatpush1.msra.mxu0 0.0
    %1276 = vmatprep.subr.mxu0 0.0
    %1277 = vmatpush1.msra.mxu0 0.0
    %1278 = vmatprep.subr.mxu0 0.0
    %1279 = vmatpush1.msra.mxu0 0.0
    %1280 = vmatprep.subr.mxu0 0.0
    %1281 = vmatpush1.msra.mxu0 0.0
    %1282 = vmatprep.subr.mxu0 0.0
    %1283 = vmatpush1.msra.mxu0 0.0
    %1284 = vmatprep.subr.mxu0 0.0
    %1285 = vmatpush1.msra.mxu0 0.0
    %1286 = vmatprep.subr.mxu0 0.0
    %1287 = vmatpush1.msra.mxu0 0.0
    %1288 = vmatprep.mubr.f32.mxu0 0.0
    %1289 = vmatmul.mubr.f32.gmra.mrb[0].mxu0 %v1088
    %v1290 = vpop.f32.mrb[0].mxu0
    %v1291 = vadd.f32 %v1220, %v1290
    %v1292 = vpop.f32.mrb[0].mxu0
    %v1293 = vadd.f32 %v1222, %v1292
    %1294 = vdwg.mxu0
    %v1295 = vadd.f32 %v1291, %v267
    %v1296 = vadd.f32 %v1293, %v271
    %v1297 = vxor.u32 %v1295, 2147483648
    %v1298 = vmul.f32 %v1297, 1.442695
    %v1299 = vpow.pop %v1298
    %v1300 = vadd.f32 %v1299, 1.0
    %v1301 = vrcp.pop %v1300
    %v1302 = vmul.f32 1.0, %v1301
    %v1303 = vand.u32 2147483647, %v1296
    %v1304 = vadd.f32 %v1303, 1.0
    %v1305 = vrcp.pop %v1304
    %v1306 = vmul.f32 %v1296, %v1305
    %v1307 = vmul.f32 %v1302, %v964
    %v1308 = vsub.f32 1.0, %v1302
    %v1309 = vmul.f32 %v1308, %v1306
    %v1310 = vadd.f32 %v1307, %v1309
    %s1311 = scalar_lea.vmem [#allocation3], 16
    %1312 = vst [vmem:[%s1311] sm:$0xff] %v1310
    %v1313 = vld [vmem:[%s4] sm:$0xff]
    %v1314 = vld [vmem:[%s4 + $0x8] sm:$0xff]
    %v1315 = vld [vmem:[%s4 + $0x10] sm:$0xff]
    %v1316 = vld [vmem:[%s4 + $0x18] sm:$0xff]
    %v1317 = vld [vmem:[%s4 + $0x20] sm:$0xff]
    %v1318 = vld [vmem:[%s4 + $0x28] sm:$0xff]
    %v1319 = vld [vmem:[%s4 + $0x30] sm:$0xff]
    %v1320 = vld [vmem:[%s4 + $0x38] sm:$0xff]
    %v1321 = vld [vmem:[%s4 + $0x40] sm:$0xff]
    %v1322 = vld [vmem:[%s4 + $0x48] sm:$0xff]
    %v1323 = vld [vmem:[%s4 + $0x50] sm:$0xff]
    %v1324 = vld [vmem:[%s4 + $0x58] sm:$0xff]
    %v1325 = vld [vmem:[%s4 + $0x60] sm:$0xff]
    %v1326 = vld [vmem:[%s4 + $0x68] sm:$0xff]
    %v1327 = vld [vmem:[%s4 + $0x70] sm:$0xff]
    %v1328 = vld [vmem:[%s4 + $0x78] sm:$0xff]
    %v1329 = vld [vmem:[%s4 + $0x80] sm:$0xff]
    %v1330 = vld [vmem:[%s4 + $0x88] sm:$0xff]
    %v1331 = vld [vmem:[%s4 + $0x90] sm:$0xff]
    %v1332 = vld [vmem:[%s4 + $0x98] sm:$0xff]
    %v1333 = vld [vmem:[%s4 + $0xa0] sm:$0xff]
    %v1334 = vld [vmem:[%s4 + $0xa8] sm:$0xff]
    %v1335 = vld [vmem:[%s4 + $0xb0] sm:$0xff]
    %v1336 = vld [vmem:[%s4 + $0xb8] sm:$0xff]
    %v1337 = vld [vmem:[%s4 + $0xc0] sm:$0xff]
    %v1338 = vld [vmem:[%s4 + $0xc8] sm:$0xff]
    %v1339 = vld [vmem:[%s4 + $0xd0] sm:$0xff]
    %v1340 = vld [vmem:[%s4 + $0xd8] sm:$0xff]
    %v1341 = vld [vmem:[%s4 + $0xe0] sm:$0xff]
    %v1342 = vld [vmem:[%s4 + $0xe8] sm:$0xff]
    %v1343 = vld [vmem:[%s4 + $0xf0] sm:$0xff]
    %v1344 = vld [vmem:[%s4 + $0xf8] sm:$0xff]
    %s1345 = smul.u32 3, 2
    %s1346 = smul.addr %s1345, 8
    %s1347 = scalar_lea.vmem [#allocation2], %s1346
    %v1348 = vld [vmem:[%s1347] sm:$0xff]
    %v1349 = vld [vmem:[%s1347 + $0x8] sm:$0xff]
    %1350 = vmatprep.subr.mxu0 %v1314
    %1351 = vmatpush1.msra.mxu0 %v1313
    %1352 = vmatprep.subr.mxu0 %v1316
    %1353 = vmatpush1.msra.mxu0 %v1315
    %1354 = vmatprep.subr.mxu0 %v1318
    %1355 = vmatpush1.msra.mxu0 %v1317
    %1356 = vmatprep.subr.mxu0 %v1320
    %1357 = vmatpush1.msra.mxu0 %v1319
    %1358 = vmatprep.subr.mxu0 %v1322
    %1359 = vmatpush1.msra.mxu0 %v1321
    %1360 = vmatprep.subr.mxu0 %v1324
    %1361 = vmatpush1.msra.mxu0 %v1323
    %1362 = vmatprep.subr.mxu0 %v1326
    %1363 = vmatpush1.msra.mxu0 %v1325
    %1364 = vmatprep.subr.mxu0 %v1328
    %1365 = vmatpush1.msra.mxu0 %v1327
    %1366 = vmatprep.subr.mxu0 %v1330
    %1367 = vmatpush1.msra.mxu0 %v1329
    %1368 = vmatprep.subr.mxu0 %v1332
    %1369 = vmatpush1.msra.mxu0 %v1331
    %1370 = vmatprep.subr.mxu0 %v1334
    %1371 = vmatpush1.msra.mxu0 %v1333
    %1372 = vmatprep.subr.mxu0 %v1336
    %1373 = vmatpush1.msra.mxu0 %v1335
    %1374 = vmatprep.subr.mxu0 %v1338
    %1375 = vmatpush1.msra.mxu0 %v1337
    %1376 = vmatprep.subr.mxu0 %v1340
    %1377 = vmatpush1.msra.mxu0 %v1339
    %1378 = vmatprep.subr.mxu0 %v1342
    %1379 = vmatpush1.msra.mxu0 %v1341
    %1380 = vmatprep.subr.mxu0 %v1344
    %1381 = vmatpush1.msra.mxu0 %v1343
    %1382 = vmatprep.subr.mxu0 0.0
    %1383 = vmatpush1.msra.mxu0 0.0
    %1384 = vmatprep.subr.mxu0 0.0
    %1385 = vmatpush1.msra.mxu0 0.0
    %1386 = vmatprep.subr.mxu0 0.0
    %1387 = vmatpush1.msra.mxu0 0.0
    %1388 = vmatprep.subr.mxu0 0.0
    %1389 = vmatpush1.msra.mxu0 0.0
    %1390 = vmatprep.subr.mxu0 0.0
    %1391 = vmatpush1.msra.mxu0 0.0
    %1392 = vmatprep.subr.mxu0 0.0
    %1393 = vmatpush1.msra.mxu0 0.0
    %1394 = vmatprep.subr.mxu0 0.0
    %1395 = vmatpush1.msra.mxu0 0.0
    %1396 = vmatprep.subr.mxu0 0.0
    %1397 = vmatpush1.msra.mxu0 0.0
    %1398 = vmatprep.subr.mxu0 0.0
    %1399 = vmatpush1.msra.mxu0 0.0
    %1400 = vmatprep.subr.mxu0 0.0
    %1401 = vmatpush1.msra.mxu0 0.0
    %1402 = vmatprep.subr.mxu0 0.0
    %1403 = vmatpush1.msra.mxu0 0.0
    %1404 = vmatprep.subr.mxu0 0.0
    %1405 = vmatpush1.msra.mxu0 0.0
    %1406 = vmatprep.subr.mxu0 0.0
    %1407 = vmatpush1.msra.mxu0 0.0
    %1408 = vmatprep.subr.mxu0 0.0
    %1409 = vmatpush1.msra.mxu0 0.0
    %1410 = vmatprep.subr.mxu0 0.0
    %1411 = vmatpush1.msra.mxu0 0.0
    %1412 = vmatprep.subr.mxu0 0.0
    %1413 = vmatpush1.msra.mxu0 0.0
    %1414 = vmatprep.mubr.f32.mxu0 0.0
    %1415 = vmatmul.mubr.f32.gmra.mrb[0].mxu0 %v1088
    %v1416 = vpop.f32.mrb[0].mxu0
    %v1417 = vadd.f32 %v1348, %v1416
    %v1418 = vpop.f32.mrb[0].mxu0
    %v1419 = vadd.f32 %v1349, %v1418
    %1420 = vdwg.mxu0
    %v1421 = vxor.u32 %v1417, 2147483648
    %v1422 = vmul.f32 %v1421, 1.442695
    %v1423 = vpow.pop %v1422
    %v1424 = vadd.f32 %v1423, 1.0
    %v1425 = vrcp.pop %v1424
    %v1426 = vmul.f32 1.0, %v1425
    %v1427 = vand.u32 2147483647, %v1419
    %v1428 = vadd.f32 %v1427, 1.0
    %v1429 = vrcp.pop %v1428
    %v1430 = vmul.f32 %v1419, %v1429
    %v1431 = vmul.f32 %v1426, %v1088
    %v1432 = vsub.f32 1.0, %v1426
    %v1433 = vmul.f32 %v1432, %v1430
    %v1434 = vadd.f32 %v1431, %v1433
    %v1435 = vld [vmem:[#allocation4] sm:$0xff]
    %v1436 = vld [vmem:[#allocation4 + $0x8] sm:$0xff]
    %v1437 = vld [vmem:[#allocation4 + $0x10] sm:$0xff]
    %v1438 = vld [vmem:[#allocation4 + $0x18] sm:$0xff]
    %v1439 = vld [vmem:[#allocation4 + $0x20] sm:$0xff]
    %v1440 = vld [vmem:[#allocation4 + $0x28] sm:$0xff]
    %v1441 = vld [vmem:[#allocation4 + $0x30] sm:$0xff]
    %v1442 = vld [vmem:[#allocation4 + $0x38] sm:$0xff]
    %v1443 = vld [vmem:[#allocation4 + $0x40] sm:$0xff]
    %v1444 = vld [vmem:[#allocation4 + $0x48] sm:$0xff]
    %v1445 = vld [vmem:[#allocation4 + $0x50] sm:$0xff]
    %v1446 = vld [vmem:[#allocation4 + $0x58] sm:$0xff]
    %v1447 = vld [vmem:[#allocation4 + $0x60] sm:$0xff]
    %v1448 = vld [vmem:[#allocation4 + $0x68] sm:$0xff]
    %v1449 = vld [vmem:[#allocation4 + $0x70] sm:$0xff]
    %v1450 = vld [vmem:[#allocation4 + $0x78] sm:$0xff]
    %v1451 = vld [vmem:[#allocation4 + $0x80] sm:$0xff]
    %v1452 = vld [vmem:[#allocation4 + $0x88] sm:$0xff]
    %v1453 = vld [vmem:[#allocation4 + $0x90] sm:$0xff]
    %v1454 = vld [vmem:[#allocation4 + $0x98] sm:$0xff]
    %v1455 = vld [vmem:[#allocation4 + $0xa0] sm:$0xff]
    %v1456 = vld [vmem:[#allocation4 + $0xa8] sm:$0xff]
    %v1457 = vld [vmem:[#allocation4 + $0xb0] sm:$0xff]
    %v1458 = vld [vmem:[#allocation4 + $0xb8] sm:$0xff]
    %v1459 = vld [vmem:[#allocation4 + $0xc0] sm:$0xff]
    %v1460 = vld [vmem:[#allocation4 + $0xc8] sm:$0xff]
    %v1461 = vld [vmem:[#allocation4 + $0xd0] sm:$0xff]
    %v1462 = vld [vmem:[#allocation4 + $0xd8] sm:$0xff]
    %v1463 = vld [vmem:[#allocation4 + $0xe0] sm:$0xff]
    %v1464 = vld [vmem:[#allocation4 + $0xe8] sm:$0xff]
    %v1465 = vld [vmem:[#allocation4 + $0xf0] sm:$0xff]
    %v1466 = vld [vmem:[#allocation4 + $0xf8] sm:$0xff]
    %v1467 = vld [vmem:[#allocation6] sm:$0xff]
    %v1468 = vld [vmem:[#allocation6 + $0x8] sm:$0xff]
    %v1469 = vld [vmem:[#allocation6 + $0x10] sm:$0xff]
    %v1470 = vld [vmem:[#allocation6 + $0x18] sm:$0xff]
    %v1471 = vld [vmem:[#allocation6 + $0x20] sm:$0xff]
    %v1472 = vld [vmem:[#allocation6 + $0x28] sm:$0xff]
    %v1473 = vld [vmem:[#allocation6 + $0x30] sm:$0xff]
    %v1474 = vld [vmem:[#allocation6 + $0x38] sm:$0xff]
    %v1475 = vld [vmem:[#allocation6 + $0x40] sm:$0xff]
    %v1476 = vld [vmem:[#allocation6 + $0x48] sm:$0xff]
    %v1477 = vld [vmem:[#allocation6 + $0x50] sm:$0xff]
    %v1478 = vld [vmem:[#allocation6 + $0x58] sm:$0xff]
    %v1479 = vld [vmem:[#allocation6 + $0x60] sm:$0xff]
    %v1480 = vld [vmem:[#allocation6 + $0x68] sm:$0xff]
    %v1481 = vld [vmem:[#allocation6 + $0x70] sm:$0xff]
    %v1482 = vld [vmem:[#allocation6 + $0x78] sm:$0xff]
    %v1483 = vld [vmem:[#allocation6 + $0x80] sm:$0xff]
    %v1484 = vld [vmem:[#allocation6 + $0x88] sm:$0xff]
    %v1485 = vld [vmem:[#allocation6 + $0x90] sm:$0xff]
    %v1486 = vld [vmem:[#allocation6 + $0x98] sm:$0xff]
    %v1487 = vld [vmem:[#allocation6 + $0xa0] sm:$0xff]
    %v1488 = vld [vmem:[#allocation6 + $0xa8] sm:$0xff]
    %v1489 = vld [vmem:[#allocation6 + $0xb0] sm:$0xff]
    %v1490 = vld [vmem:[#allocation6 + $0xb8] sm:$0xff]
    %v1491 = vld [vmem:[#allocation6 + $0xc0] sm:$0xff]
    %v1492 = vld [vmem:[#allocation6 + $0xc8] sm:$0xff]
    %v1493 = vld [vmem:[#allocation6 + $0xd0] sm:$0xff]
    %v1494 = vld [vmem:[#allocation6 + $0xd8] sm:$0xff]
    %v1495 = vld [vmem:[#allocation6 + $0xe0] sm:$0xff]
    %v1496 = vld [vmem:[#allocation6 + $0xe8] sm:$0xff]
    %v1497 = vld [vmem:[#allocation6 + $0xf0] sm:$0xff]
    %v1498 = vld [vmem:[#allocation6 + $0xf8] sm:$0xff]
    %1499 = vmatprep.subr.mxu0 %v1468
    %1500 = vmatpush1.msra.mxu0 %v1467
    %1501 = vmatprep.subr.mxu0 %v1470
    %1502 = vmatpush1.msra.mxu0 %v1469
    %1503 = vmatprep.subr.mxu0 %v1472
    %1504 = vmatpush1.msra.mxu0 %v1471
    %1505 = vmatprep.subr.mxu0 %v1474
    %1506 = vmatpush1.msra.mxu0 %v1473
    %1507 = vmatprep.subr.mxu0 %v1476
    %1508 = vmatpush1.msra.mxu0 %v1475
    %1509 = vmatprep.subr.mxu0 %v1478
    %1510 = vmatpush1.msra.mxu0 %v1477
    %1511 = vmatprep.subr.mxu0 %v1480
    %1512 = vmatpush1.msra.mxu0 %v1479
    %1513 = vmatprep.subr.mxu0 %v1482
    %1514 = vmatpush1.msra.mxu0 %v1481
    %1515 = vmatprep.subr.mxu0 %v1484
    %1516 = vmatpush1.msra.mxu0 %v1483
    %1517 = vmatprep.subr.mxu0 %v1486
    %1518 = vmatpush1.msra.mxu0 %v1485
    %1519 = vmatprep.subr.mxu0 %v1488
    %1520 = vmatpush1.msra.mxu0 %v1487
    %1521 = vmatprep.subr.mxu0 %v1490
    %1522 = vmatpush1.msra.mxu0 %v1489
    %1523 = vmatprep.subr.mxu0 %v1492
    %1524 = vmatpush1.msra.mxu0 %v1491
    %1525 = vmatprep.subr.mxu0 %v1494
    %1526 = vmatpush1.msra.mxu0 %v1493
    %1527 = vmatprep.subr.mxu0 %v1496
    %1528 = vmatpush1.msra.mxu0 %v1495
    %1529 = vmatprep.subr.mxu0 %v1498
    %1530 = vmatpush1.msra.mxu0 %v1497
    %1531 = vmatprep.subr.mxu0 0.0
    %1532 = vmatpush1.msra.mxu0 0.0
    %1533 = vmatprep.subr.mxu0 0.0
    %1534 = vmatpush1.msra.mxu0 0.0
    %1535 = vmatprep.subr.mxu0 0.0
    %1536 = vmatpush1.msra.mxu0 0.0
    %1537 = vmatprep.subr.mxu0 0.0
    %1538 = vmatpush1.msra.mxu0 0.0
    %1539 = vmatprep.subr.mxu0 0.0
    %1540 = vmatpush1.msra.mxu0 0.0
    %1541 = vmatprep.subr.mxu0 0.0
    %1542 = vmatpush1.msra.mxu0 0.0
    %1543 = vmatprep.subr.mxu0 0.0
    %1544 = vmatpush1.msra.mxu0 0.0
    %1545 = vmatprep.subr.mxu0 0.0
    %1546 = vmatpush1.msra.mxu0 0.0
    %1547 = vmatprep.subr.mxu0 0.0
    %1548 = vmatpush1.msra.mxu0 0.0
    %1549 = vmatprep.subr.mxu0 0.0
    %1550 = vmatpush1.msra.mxu0 0.0
    %1551 = vmatprep.subr.mxu0 0.0
    %1552 = vmatpush1.msra.mxu0 0.0
    %1553 = vmatprep.subr.mxu0 0.0
    %1554 = vmatpush1.msra.mxu0 0.0
    %1555 = vmatprep.subr.mxu0 0.0
    %1556 = vmatpush1.msra.mxu0 0.0
    %1557 = vmatprep.subr.mxu0 0.0
    %1558 = vmatpush1.msra.mxu0 0.0
    %1559 = vmatprep.subr.mxu0 0.0
    %1560 = vmatpush1.msra.mxu0 0.0
    %1561 = vmatprep.subr.mxu0 0.0
    %1562 = vmatpush1.msra.mxu0 0.0
    %1563 = vmatprep.mubr.f32.mxu0 0.0
    %1564 = vmatmul.mubr.f32.gmra.mrb[0].mxu0 %v1310
    %v1565 = vpop.f32.mrb[0].mxu0
    %v1566 = vadd.f32 0.0, %v1565
    %v1567 = vpop.f32.mrb[0].mxu0
    %v1568 = vadd.f32 0.0, %v1567
    %1569 = vdwg.mxu0
    %1570 = vmatprep.subr.mxu0 %v1436
    %1571 = vmatpush1.msra.mxu0 %v1435
    %1572 = vmatprep.subr.mxu0 %v1438
    %1573 = vmatpush1.msra.mxu0 %v1437
    %1574 = vmatprep.subr.mxu0 %v1440
    %1575 = vmatpush1.msra.mxu0 %v1439
    %1576 = vmatprep.subr.mxu0 %v1442
    %1577 = vmatpush1.msra.mxu0 %v1441
    %1578 = vmatprep.subr.mxu0 %v1444
    %1579 = vmatpush1.msra.mxu0 %v1443
    %1580 = vmatprep.subr.mxu0 %v1446
    %1581 = vmatpush1.msra.mxu0 %v1445
    %1582 = vmatprep.subr.mxu0 %v1448
    %1583 = vmatpush1.msra.mxu0 %v1447
    %1584 = vmatprep.subr.mxu0 %v1450
    %1585 = vmatpush1.msra.mxu0 %v1449
    %1586 = vmatprep.subr.mxu0 %v1452
    %1587 = vmatpush1.msra.mxu0 %v1451
    %1588 = vmatprep.subr.mxu0 %v1454
    %1589 = vmatpush1.msra.mxu0 %v1453
    %1590 = vmatprep.subr.mxu0 %v1456
    %1591 = vmatpush1.msra.mxu0 %v1455
    %1592 = vmatprep.subr.mxu0 %v1458
    %1593 = vmatpush1.msra.mxu0 %v1457
    %1594 = vmatprep.subr.mxu0 %v1460
    %1595 = vmatpush1.msra.mxu0 %v1459
    %1596 = vmatprep.subr.mxu0 %v1462
    %1597 = vmatpush1.msra.mxu0 %v1461
    %1598 = vmatprep.subr.mxu0 %v1464
    %1599 = vmatpush1.msra.mxu0 %v1463
    %1600 = vmatprep.subr.mxu0 %v1466
    %1601 = vmatpush1.msra.mxu0 %v1465
    %1602 = vmatprep.subr.mxu0 0.0
    %1603 = vmatpush1.msra.mxu0 0.0
    %1604 = vmatprep.subr.mxu0 0.0
    %1605 = vmatpush1.msra.mxu0 0.0
    %1606 = vmatprep.subr.mxu0 0.0
    %1607 = vmatpush1.msra.mxu0 0.0
    %1608 = vmatprep.subr.mxu0 0.0
    %1609 = vmatpush1.msra.mxu0 0.0
    %1610 = vmatprep.subr.mxu0 0.0
    %1611 = vmatpush1.msra.mxu0 0.0
    %1612 = vmatprep.subr.mxu0 0.0
    %1613 = vmatpush1.msra.mxu0 0.0
    %1614 = vmatprep.subr.mxu0 0.0
    %1615 = vmatpush1.msra.mxu0 0.0
    %1616 = vmatprep.subr.mxu0 0.0
    %1617 = vmatpush1.msra.mxu0 0.0
    %1618 = vmatprep.subr.mxu0 0.0
    %1619 = vmatpush1.msra.mxu0 0.0
    %1620 = vmatprep.subr.mxu0 0.0
    %1621 = vmatpush1.msra.mxu0 0.0
    %1622 = vmatprep.subr.mxu0 0.0
    %1623 = vmatpush1.msra.mxu0 0.0
    %1624 = vmatprep.subr.mxu0 0.0
    %1625 = vmatpush1.msra.mxu0 0.0
    %1626 = vmatprep.subr.mxu0 0.0
    %1627 = vmatpush1.msra.mxu0 0.0
    %1628 = vmatprep.subr.mxu0 0.0
    %1629 = vmatpush1.msra.mxu0 0.0
    %1630 = vmatprep.subr.mxu0 0.0
    %1631 = vmatpush1.msra.mxu0 0.0
    %1632 = vmatprep.subr.mxu0 0.0
    %1633 = vmatpush1.msra.mxu0 0.0
    %1634 = vmatprep.mubr.f32.mxu0 0.0
    %1635 = vmatmul.mubr.f32.gmra.mrb[0].mxu0 %v1434
    %v1636 = vpop.f32.mrb[0].mxu0
    %v1637 = vadd.f32 %v1566, %v1636
    %v1638 = vpop.f32.mrb[0].mxu0
    %v1639 = vadd.f32 %v1568, %v1638
    %1640 = vdwg.mxu0
    %v1641 = vadd.f32 %v1637, %v267
    %v1642 = vadd.f32 %v1639, %v271
    %v1643 = vxor.u32 %v1641, 2147483648
    %v1644 = vmul.f32 %v1643, 1.442695
    %v1645 = vpow.pop %v1644
    %v1646 = vadd.f32 %v1645, 1.0
    %v1647 = vrcp.pop %v1646
    %v1648 = vmul.f32 1.0, %v1647
    %v1649 = vand.u32 2147483647, %v1642
    %v1650 = vadd.f32 %v1649, 1.0
    %v1651 = vrcp.pop %v1650
    %v1652 = vmul.f32 %v1642, %v1651
    %v1653 = vmul.f32 %v1648, %v1310
    %v1654 = vsub.f32 1.0, %v1648
    %v1655 = vmul.f32 %v1654, %v1652
    %v1656 = vadd.f32 %v1653, %v1655
    %s1657 = scalar_lea.vmem [#allocation3], 24
    %1658 = vst [vmem:[%s1657] sm:$0xff] %v1656
    %v1659 = vld [vmem:[%s4] sm:$0xff]
    %v1660 = vld [vmem:[%s4 + $0x8] sm:$0xff]
    %v1661 = vld [vmem:[%s4 + $0x10] sm:$0xff]
    %v1662 = vld [vmem:[%s4 + $0x18] sm:$0xff]
    %v1663 = vld [vmem:[%s4 + $0x20] sm:$0xff]
    %v1664 = vld [vmem:[%s4 + $0x28] sm:$0xff]
    %v1665 = vld [vmem:[%s4 + $0x30] sm:$0xff]
    %v1666 = vld [vmem:[%s4 + $0x38] sm:$0xff]
    %v1667 = vld [vmem:[%s4 + $0x40] sm:$0xff]
    %v1668 = vld [vmem:[%s4 + $0x48] sm:$0xff]
    %v1669 = vld [vmem:[%s4 + $0x50] sm:$0xff]
    %v1670 = vld [vmem:[%s4 + $0x58] sm:$0xff]
    %v1671 = vld [vmem:[%s4 + $0x60] sm:$0xff]
    %v1672 = vld [vmem:[%s4 + $0x68] sm:$0xff]
    %v1673 = vld [vmem:[%s4 + $0x70] sm:$0xff]
    %v1674 = vld [vmem:[%s4 + $0x78] sm:$0xff]
    %v1675 = vld [vmem:[%s4 + $0x80] sm:$0xff]
    %v1676 = vld [vmem:[%s4 + $0x88] sm:$0xff]
    %v1677 = vld [vmem:[%s4 + $0x90] sm:$0xff]
    %v1678 = vld [vmem:[%s4 + $0x98] sm:$0xff]
    %v1679 = vld [vmem:[%s4 + $0xa0] sm:$0xff]
    %v1680 = vld [vmem:[%s4 + $0xa8] sm:$0xff]
    %v1681 = vld [vmem:[%s4 + $0xb0] sm:$0xff]
    %v1682 = vld [vmem:[%s4 + $0xb8] sm:$0xff]
    %v1683 = vld [vmem:[%s4 + $0xc0] sm:$0xff]
    %v1684 = vld [vmem:[%s4 + $0xc8] sm:$0xff]
    %v1685 = vld [vmem:[%s4 + $0xd0] sm:$0xff]
    %v1686 = vld [vmem:[%s4 + $0xd8] sm:$0xff]
    %v1687 = vld [vmem:[%s4 + $0xe0] sm:$0xff]
    %v1688 = vld [vmem:[%s4 + $0xe8] sm:$0xff]
    %v1689 = vld [vmem:[%s4 + $0xf0] sm:$0xff]
    %v1690 = vld [vmem:[%s4 + $0xf8] sm:$0xff]
    %s1691 = smul.u32 4, 2
    %s1692 = smul.addr %s1691, 8
    %s1693 = scalar_lea.vmem [#allocation2], %s1692
    %v1694 = vld [vmem:[%s1693] sm:$0xff]
    %v1695 = vld [vmem:[%s1693 + $0x8] sm:$0xff]
    %1696 = vmatprep.subr.mxu0 %v1660
    %1697 = vmatpush1.msra.mxu0 %v1659
    %1698 = vmatprep.subr.mxu0 %v1662
    %1699 = vmatpush1.msra.mxu0 %v1661
    %1700 = vmatprep.subr.mxu0 %v1664
    %1701 = vmatpush1.msra.mxu0 %v1663
    %1702 = vmatprep.subr.mxu0 %v1666
    %1703 = vmatpush1.msra.mxu0 %v1665
    %1704 = vmatprep.subr.mxu0 %v1668
    %1705 = vmatpush1.msra.mxu0 %v1667
    %1706 = vmatprep.subr.mxu0 %v1670
    %1707 = vmatpush1.msra.mxu0 %v1669
    %1708 = vmatprep.subr.mxu0 %v1672
    %1709 = vmatpush1.msra.mxu0 %v1671
    %1710 = vmatprep.subr.mxu0 %v1674
    %1711 = vmatpush1.msra.mxu0 %v1673
    %1712 = vmatprep.subr.mxu0 %v1676
    %1713 = vmatpush1.msra.mxu0 %v1675
    %1714 = vmatprep.subr.mxu0 %v1678
    %1715 = vmatpush1.msra.mxu0 %v1677
    %1716 = vmatprep.subr.mxu0 %v1680
    %1717 = vmatpush1.msra.mxu0 %v1679
    %1718 = vmatprep.subr.mxu0 %v1682
    %1719 = vmatpush1.msra.mxu0 %v1681
    %1720 = vmatprep.subr.mxu0 %v1684
    %1721 = vmatpush1.msra.mxu0 %v1683
    %1722 = vmatprep.subr.mxu0 %v1686
    %1723 = vmatpush1.msra.mxu0 %v1685
    %1724 = vmatprep.subr.mxu0 %v1688
    %1725 = vmatpush1.msra.mxu0 %v1687
    %1726 = vmatprep.subr.mxu0 %v1690
    %1727 = vmatpush1.msra.mxu0 %v1689
    %1728 = vmatprep.subr.mxu0 0.0
    %1729 = vmatpush1.msra.mxu0 0.0
    %1730 = vmatprep.subr.mxu0 0.0
    %1731 = vmatpush1.msra.mxu0 0.0
    %1732 = vmatprep.subr.mxu0 0.0
    %1733 = vmatpush1.msra.mxu0 0.0
    %1734 = vmatprep.subr.mxu0 0.0
    %1735 = vmatpush1.msra.mxu0 0.0
    %1736 = vmatprep.subr.mxu0 0.0
    %1737 = vmatpush1.msra.mxu0 0.0
    %1738 = vmatprep.subr.mxu0 0.0
    %1739 = vmatpush1.msra.mxu0 0.0
    %1740 = vmatprep.subr.mxu0 0.0
    %1741 = vmatpush1.msra.mxu0 0.0
    %1742 = vmatprep.subr.mxu0 0.0
    %1743 = vmatpush1.msra.mxu0 0.0
    %1744 = vmatprep.subr.mxu0 0.0
    %1745 = vmatpush1.msra.mxu0 0.0
    %1746 = vmatprep.subr.mxu0 0.0
    %1747 = vmatpush1.msra.mxu0 0.0
    %1748 = vmatprep.subr.mxu0 0.0
    %1749 = vmatpush1.msra.mxu0 0.0
    %1750 = vmatprep.subr.mxu0 0.0
    %1751 = vmatpush1.msra.mxu0 0.0
    %1752 = vmatprep.subr.mxu0 0.0
    %1753 = vmatpush1.msra.mxu0 0.0
    %1754 = vmatprep.subr.mxu0 0.0
    %1755 = vmatpush1.msra.mxu0 0.0
    %1756 = vmatprep.subr.mxu0 0.0
    %1757 = vmatpush1.msra.mxu0 0.0
    %1758 = vmatprep.subr.mxu0 0.0
    %1759 = vmatpush1.msra.mxu0 0.0
    %1760 = vmatprep.mubr.f32.mxu0 0.0
    %1761 = vmatmul.mubr.f32.gmra.mrb[0].mxu0 %v1434
    %v1762 = vpop.f32.mrb[0].mxu0
    %v1763 = vadd.f32 %v1694, %v1762
    %v1764 = vpop.f32.mrb[0].mxu0
    %v1765 = vadd.f32 %v1695, %v1764
    %1766 = vdwg.mxu0
    %v1767 = vxor.u32 %v1763, 2147483648
    %v1768 = vmul.f32 %v1767, 1.442695
    %v1769 = vpow.pop %v1768
    %v1770 = vadd.f32 %v1769, 1.0
    %v1771 = vrcp.pop %v1770
    %v1772 = vmul.f32 1.0, %v1771
    %v1773 = vand.u32 2147483647, %v1765
    %v1774 = vadd.f32 %v1773, 1.0
    %v1775 = vrcp.pop %v1774
    %v1776 = vmul.f32 %v1765, %v1775
    %v1777 = vmul.f32 %v1772, %v1434
    %v1778 = vsub.f32 1.0, %v1772
    %v1779 = vmul.f32 %v1778, %v1776
    %v1780 = vadd.f32 %v1777, %v1779
    %v1781 = vld [vmem:[#allocation4] sm:$0xff]
    %v1782 = vld [vmem:[#allocation4 + $0x8] sm:$0xff]
    %v1783 = vld [vmem:[#allocation4 + $0x10] sm:$0xff]
    %v1784 = vld [vmem:[#allocation4 + $0x18] sm:$0xff]
    %v1785 = vld [vmem:[#allocation4 + $0x20] sm:$0xff]
    %v1786 = vld [vmem:[#allocation4 + $0x28] sm:$0xff]
    %v1787 = vld [vmem:[#allocation4 + $0x30] sm:$0xff]
    %v1788 = vld [vmem:[#allocation4 + $0x38] sm:$0xff]
    %v1789 = vld [vmem:[#allocation4 + $0x40] sm:$0xff]
    %v1790 = vld [vmem:[#allocation4 + $0x48] sm:$0xff]
    %v1791 = vld [vmem:[#allocation4 + $0x50] sm:$0xff]
    %v1792 = vld [vmem:[#allocation4 + $0x58] sm:$0xff]
    %v1793 = vld [vmem:[#allocation4 + $0x60] sm:$0xff]
    %v1794 = vld [vmem:[#allocation4 + $0x68] sm:$0xff]
    %v1795 = vld [vmem:[#allocation4 + $0x70] sm:$0xff]
    %v1796 = vld [vmem:[#allocation4 + $0x78] sm:$0xff]
    %v1797 = vld [vmem:[#allocation4 + $0x80] sm:$0xff]
    %v1798 = vld [vmem:[#allocation4 + $0x88] sm:$0xff]
    %v1799 = vld [vmem:[#allocation4 + $0x90] sm:$0xff]
    %v1800 = vld [vmem:[#allocation4 + $0x98] sm:$0xff]
    %v1801 = vld [vmem:[#allocation4 + $0xa0] sm:$0xff]
    %v1802 = vld [vmem:[#allocation4 + $0xa8] sm:$0xff]
    %v1803 = vld [vmem:[#allocation4 + $0xb0] sm:$0xff]
    %v1804 = vld [vmem:[#allocation4 + $0xb8] sm:$0xff]
    %v1805 = vld [vmem:[#allocation4 + $0xc0] sm:$0xff]
    %v1806 = vld [vmem:[#allocation4 + $0xc8] sm:$0xff]
    %v1807 = vld [vmem:[#allocation4 + $0xd0] sm:$0xff]
    %v1808 = vld [vmem:[#allocation4 + $0xd8] sm:$0xff]
    %v1809 = vld [vmem:[#allocation4 + $0xe0] sm:$0xff]
    %v1810 = vld [vmem:[#allocation4 + $0xe8] sm:$0xff]
    %v1811 = vld [vmem:[#allocation4 + $0xf0] sm:$0xff]
    %v1812 = vld [vmem:[#allocation4 + $0xf8] sm:$0xff]
    %v1813 = vld [vmem:[#allocation6] sm:$0xff]
    %v1814 = vld [vmem:[#allocation6 + $0x8] sm:$0xff]
    %v1815 = vld [vmem:[#allocation6 + $0x10] sm:$0xff]
    %v1816 = vld [vmem:[#allocation6 + $0x18] sm:$0xff]
    %v1817 = vld [vmem:[#allocation6 + $0x20] sm:$0xff]
    %v1818 = vld [vmem:[#allocation6 + $0x28] sm:$0xff]
    %v1819 = vld [vmem:[#allocation6 + $0x30] sm:$0xff]
    %v1820 = vld [vmem:[#allocation6 + $0x38] sm:$0xff]
    %v1821 = vld [vmem:[#allocation6 + $0x40] sm:$0xff]
    %v1822 = vld [vmem:[#allocation6 + $0x48] sm:$0xff]
    %v1823 = vld [vmem:[#allocation6 + $0x50] sm:$0xff]
    %v1824 = vld [vmem:[#allocation6 + $0x58] sm:$0xff]
    %v1825 = vld [vmem:[#allocation6 + $0x60] sm:$0xff]
    %v1826 = vld [vmem:[#allocation6 + $0x68] sm:$0xff]
    %v1827 = vld [vmem:[#allocation6 + $0x70] sm:$0xff]
    %v1828 = vld [vmem:[#allocation6 + $0x78] sm:$0xff]
    %v1829 = vld [vmem:[#allocation6 + $0x80] sm:$0xff]
    %v1830 = vld [vmem:[#allocation6 + $0x88] sm:$0xff]
    %v1831 = vld [vmem:[#allocation6 + $0x90] sm:$0xff]
    %v1832 = vld [vmem:[#allocation6 + $0x98] sm:$0xff]
    %v1833 = vld [vmem:[#allocation6 + $0xa0] sm:$0xff]
    %v1834 = vld [vmem:[#allocation6 + $0xa8] sm:$0xff]
    %v1835 = vld [vmem:[#allocation6 + $0xb0] sm:$0xff]
    %v1836 = vld [vmem:[#allocation6 + $0xb8] sm:$0xff]
    %v1837 = vld [vmem:[#allocation6 + $0xc0] sm:$0xff]
    %v1838 = vld [vmem:[#allocation6 + $0xc8] sm:$0xff]
    %v1839 = vld [vmem:[#allocation6 + $0xd0] sm:$0xff]
    %v1840 = vld [vmem:[#allocation6 + $0xd8] sm:$0xff]
    %v1841 = vld [vmem:[#allocation6 + $0xe0] sm:$0xff]
    %v1842 = vld [vmem:[#allocation6 + $0xe8] sm:$0xff]
    %v1843 = vld [vmem:[#allocation6 + $0xf0] sm:$0xff]
    %v1844 = vld [vmem:[#allocation6 + $0xf8] sm:$0xff]
    %1845 = vmatprep.subr.mxu0 %v1814
    %1846 = vmatpush1.msra.mxu0 %v1813
    %1847 = vmatprep.subr.mxu0 %v1816
    %1848 = vmatpush1.msra.mxu0 %v1815
    %1849 = vmatprep.subr.mxu0 %v1818
    %1850 = vmatpush1.msra.mxu0 %v1817
    %1851 = vmatprep.subr.mxu0 %v1820
    %1852 = vmatpush1.msra.mxu0 %v1819
    %1853 = vmatprep.subr.mxu0 %v1822
    %1854 = vmatpush1.msra.mxu0 %v1821
    %1855 = vmatprep.subr.mxu0 %v1824
    %1856 = vmatpush1.msra.mxu0 %v1823
    %1857 = vmatprep.subr.mxu0 %v1826
    %1858 = vmatpush1.msra.mxu0 %v1825
    %1859 = vmatprep.subr.mxu0 %v1828
    %1860 = vmatpush1.msra.mxu0 %v1827
    %1861 = vmatprep.subr.mxu0 %v1830
    %1862 = vmatpush1.msra.mxu0 %v1829
    %1863 = vmatprep.subr.mxu0 %v1832
    %1864 = vmatpush1.msra.mxu0 %v1831
    %1865 = vmatprep.subr.mxu0 %v1834
    %1866 = vmatpush1.msra.mxu0 %v1833
    %1867 = vmatprep.subr.mxu0 %v1836
    %1868 = vmatpush1.msra.mxu0 %v1835
    %1869 = vmatprep.subr.mxu0 %v1838
    %1870 = vmatpush1.msra.mxu0 %v1837
    %1871 = vmatprep.subr.mxu0 %v1840
    %1872 = vmatpush1.msra.mxu0 %v1839
    %1873 = vmatprep.subr.mxu0 %v1842
    %1874 = vmatpush1.msra.mxu0 %v1841
    %1875 = vmatprep.subr.mxu0 %v1844
    %1876 = vmatpush1.msra.mxu0 %v1843
    %1877 = vmatprep.subr.mxu0 0.0
    %1878 = vmatpush1.msra.mxu0 0.0
    %1879 = vmatprep.subr.mxu0 0.0
    %1880 = vmatpush1.msra.mxu0 0.0
    %1881 = vmatprep.subr.mxu0 0.0
    %1882 = vmatpush1.msra.mxu0 0.0
    %1883 = vmatprep.subr.mxu0 0.0
    %1884 = vmatpush1.msra.mxu0 0.0
    %1885 = vmatprep.subr.mxu0 0.0
    %1886 = vmatpush1.msra.mxu0 0.0
    %1887 = vmatprep.subr.mxu0 0.0
    %1888 = vmatpush1.msra.mxu0 0.0
    %1889 = vmatprep.subr.mxu0 0.0
    %1890 = vmatpush1.msra.mxu0 0.0
    %1891 = vmatprep.subr.mxu0 0.0
    %1892 = vmatpush1.msra.mxu0 0.0
    %1893 = vmatprep.subr.mxu0 0.0
    %1894 = vmatpush1.msra.mxu0 0.0
    %1895 = vmatprep.subr.mxu0 0.0
    %1896 = vmatpush1.msra.mxu0 0.0
    %1897 = vmatprep.subr.mxu0 0.0
    %1898 = vmatpush1.msra.mxu0 0.0
    %1899 = vmatprep.subr.mxu0 0.0
    %1900 = vmatpush1.msra.mxu0 0.0
    %1901 = vmatprep.subr.mxu0 0.0
    %1902 = vmatpush1.msra.mxu0 0.0
    %1903 = vmatprep.subr.mxu0 0.0
    %1904 = vmatpush1.msra.mxu0 0.0
    %1905 = vmatprep.subr.mxu0 0.0
    %1906 = vmatpush1.msra.mxu0 0.0
    %1907 = vmatprep.subr.mxu0 0.0
    %1908 = vmatpush1.msra.mxu0 0.0
    %1909 = vmatprep.mubr.f32.mxu0 0.0
    %1910 = vmatmul.mubr.f32.gmra.mrb[0].mxu0 %v1656
    %v1911 = vpop.f32.mrb[0].mxu0
    %v1912 = vadd.f32 0.0, %v1911
    %v1913 = vpop.f32.mrb[0].mxu0
    %v1914 = vadd.f32 0.0, %v1913
    %1915 = vdwg.mxu0
    %1916 = vmatprep.subr.mxu0 %v1782
    %1917 = vmatpush1.msra.mxu0 %v1781
    %1918 = vmatprep.subr.mxu0 %v1784
    %1919 = vmatpush1.msra.mxu0 %v1783
    %1920 = vmatprep.subr.mxu0 %v1786
    %1921 = vmatpush1.msra.mxu0 %v1785
    %1922 = vmatprep.subr.mxu0 %v1788
    %1923 = vmatpush1.msra.mxu0 %v1787
    %1924 = vmatprep.subr.mxu0 %v1790
    %1925 = vmatpush1.msra.mxu0 %v1789
    %1926 = vmatprep.subr.mxu0 %v1792
    %1927 = vmatpush1.msra.mxu0 %v1791
    %1928 = vmatprep.subr.mxu0 %v1794
    %1929 = vmatpush1.msra.mxu0 %v1793
    %1930 = vmatprep.subr.mxu0 %v1796
    %1931 = vmatpush1.msra.mxu0 %v1795
    %1932 = vmatprep.subr.mxu0 %v1798
    %1933 = vmatpush1.msra.mxu0 %v1797
    %1934 = vmatprep.subr.mxu0 %v1800
    %1935 = vmatpush1.msra.mxu0 %v1799
    %1936 = vmatprep.subr.mxu0 %v1802
    %1937 = vmatpush1.msra.mxu0 %v1801
    %1938 = vmatprep.subr.mxu0 %v1804
    %1939 = vmatpush1.msra.mxu0 %v1803
    %1940 = vmatprep.subr.mxu0 %v1806
    %1941 = vmatpush1.msra.mxu0 %v1805
    %1942 = vmatprep.subr.mxu0 %v1808
    %1943 = vmatpush1.msra.mxu0 %v1807
    %1944 = vmatprep.subr.mxu0 %v1810
    %1945 = vmatpush1.msra.mxu0 %v1809
    %1946 = vmatprep.subr.mxu0 %v1812
    %1947 = vmatpush1.msra.mxu0 %v1811
    %1948 = vmatprep.subr.mxu0 0.0
    %1949 = vmatpush1.msra.mxu0 0.0
    %1950 = vmatprep.subr.mxu0 0.0
    %1951 = vmatpush1.msra.mxu0 0.0
    %1952 = vmatprep.subr.mxu0 0.0
    %1953 = vmatpush1.msra.mxu0 0.0
    %1954 = vmatprep.subr.mxu0 0.0
    %1955 = vmatpush1.msra.mxu0 0.0
    %1956 = vmatprep.subr.mxu0 0.0
    %1957 = vmatpush1.msra.mxu0 0.0
    %1958 = vmatprep.subr.mxu0 0.0
    %1959 = vmatpush1.msra.mxu0 0.0
    %1960 = vmatprep.subr.mxu0 0.0
    %1961 = vmatpush1.msra.mxu0 0.0
    %1962 = vmatprep.subr.mxu0 0.0
    %1963 = vmatpush1.msra.mxu0 0.0
    %1964 = vmatprep.subr.mxu0 0.0
    %1965 = vmatpush1.msra.mxu0 0.0
    %1966 = vmatprep.subr.mxu0 0.0
    %1967 = vmatpush1.msra.mxu0 0.0
    %1968 = vmatprep.subr.mxu0 0.0
    %1969 = vmatpush1.msra.mxu0 0.0
    %1970 = vmatprep.subr.mxu0 0.0
    %1971 = vmatpush1.msra.mxu0 0.0
    %1972 = vmatprep.subr.mxu0 0.0
    %1973 = vmatpush1.msra.mxu0 0.0
    %1974 = vmatprep.subr.mxu0 0.0
    %1975 = vmatpush1.msra.mxu0 0.0
    %1976 = vmatprep.subr.mxu0 0.0
    %1977 = vmatpush1.msra.mxu0 0.0
    %1978 = vmatprep.subr.mxu0 0.0
    %1979 = vmatpush1.msra.mxu0 0.0
    %1980 = vmatprep.mubr.f32.mxu0 0.0
    %1981 = vmatmul.mubr.f32.gmra.mrb[0].mxu0 %v1780
    %v1982 = vpop.f32.mrb[0].mxu0
    %v1983 = vadd.f32 %v1912, %v1982
    %v1984 = vpop.f32.mrb[0].mxu0
    %v1985 = vadd.f32 %v1914, %v1984
    %1986 = vdwg.mxu0
    %v1987 = vadd.f32 %v1983, %v267
    %v1988 = vadd.f32 %v1985, %v271
    %v1989 = vxor.u32 %v1987, 2147483648
    %v1990 = vmul.f32 %v1989, 1.442695
    %v1991 = vpow.pop %v1990
    %v1992 = vadd.f32 %v1991, 1.0
    %v1993 = vrcp.pop %v1992
    %v1994 = vmul.f32 1.0, %v1993
    %v1995 = vand.u32 2147483647, %v1988
    %v1996 = vadd.f32 %v1995, 1.0
    %v1997 = vrcp.pop %v1996
    %v1998 = vmul.f32 %v1988, %v1997
    %v1999 = vmul.f32 %v1994, %v1656
    %v2000 = vsub.f32 1.0, %v1994
    %v2001 = vmul.f32 %v2000, %v1998
    %v2002 = vadd.f32 %v1999, %v2001
    %s2003 = scalar_lea.vmem [#allocation3], 32
    %2004 = vst [vmem:[%s2003] sm:$0xff] %v2002
    %v2005 = vld [vmem:[%s4] sm:$0xff]
    %v2006 = vld [vmem:[%s4 + $0x8] sm:$0xff]
    %v2007 = vld [vmem:[%s4 + $0x10] sm:$0xff]
    %v2008 = vld [vmem:[%s4 + $0x18] sm:$0xff]
    %v2009 = vld [vmem:[%s4 + $0x20] sm:$0xff]
    %v2010 = vld [vmem:[%s4 + $0x28] sm:$0xff]
    %v2011 = vld [vmem:[%s4 + $0x30] sm:$0xff]
    %v2012 = vld [vmem:[%s4 + $0x38] sm:$0xff]
    %v2013 = vld [vmem:[%s4 + $0x40] sm:$0xff]
    %v2014 = vld [vmem:[%s4 + $0x48] sm:$0xff]
    %v2015 = vld [vmem:[%s4 + $0x50] sm:$0xff]
    %v2016 = vld [vmem:[%s4 + $0x58] sm:$0xff]
    %v2017 = vld [vmem:[%s4 + $0x60] sm:$0xff]
    %v2018 = vld [vmem:[%s4 + $0x68] sm:$0xff]
    %v2019 = vld [vmem:[%s4 + $0x70] sm:$0xff]
    %v2020 = vld [vmem:[%s4 + $0x78] sm:$0xff]
    %v2021 = vld [vmem:[%s4 + $0x80] sm:$0xff]
    %v2022 = vld [vmem:[%s4 + $0x88] sm:$0xff]
    %v2023 = vld [vmem:[%s4 + $0x90] sm:$0xff]
    %v2024 = vld [vmem:[%s4 + $0x98] sm:$0xff]
    %v2025 = vld [vmem:[%s4 + $0xa0] sm:$0xff]
    %v2026 = vld [vmem:[%s4 + $0xa8] sm:$0xff]
    %v2027 = vld [vmem:[%s4 + $0xb0] sm:$0xff]
    %v2028 = vld [vmem:[%s4 + $0xb8] sm:$0xff]
    %v2029 = vld [vmem:[%s4 + $0xc0] sm:$0xff]
    %v2030 = vld [vmem:[%s4 + $0xc8] sm:$0xff]
    %v2031 = vld [vmem:[%s4 + $0xd0] sm:$0xff]
    %v2032 = vld [vmem:[%s4 + $0xd8] sm:$0xff]
    %v2033 = vld [vmem:[%s4 + $0xe0] sm:$0xff]
    %v2034 = vld [vmem:[%s4 + $0xe8] sm:$0xff]
    %v2035 = vld [vmem:[%s4 + $0xf0] sm:$0xff]
    %v2036 = vld [vmem:[%s4 + $0xf8] sm:$0xff]
    %s2037 = smul.u32 5, 2
    %s2038 = smul.addr %s2037, 8
    %s2039 = scalar_lea.vmem [#allocation2], %s2038
    %v2040 = vld [vmem:[%s2039] sm:$0xff]
    %v2041 = vld [vmem:[%s2039 + $0x8] sm:$0xff]
    %2042 = vmatprep.subr.mxu0 %v2006
    %2043 = vmatpush1.msra.mxu0 %v2005
    %2044 = vmatprep.subr.mxu0 %v2008
    %2045 = vmatpush1.msra.mxu0 %v2007
    %2046 = vmatprep.subr.mxu0 %v2010
    %2047 = vmatpush1.msra.mxu0 %v2009
    %2048 = vmatprep.subr.mxu0 %v2012
    %2049 = vmatpush1.msra.mxu0 %v2011
    %2050 = vmatprep.subr.mxu0 %v2014
    %2051 = vmatpush1.msra.mxu0 %v2013
    %2052 = vmatprep.subr.mxu0 %v2016
    %2053 = vmatpush1.msra.mxu0 %v2015
    %2054 = vmatprep.subr.mxu0 %v2018
    %2055 = vmatpush1.msra.mxu0 %v2017
    %2056 = vmatprep.subr.mxu0 %v2020
    %2057 = vmatpush1.msra.mxu0 %v2019
    %2058 = vmatprep.subr.mxu0 %v2022
    %2059 = vmatpush1.msra.mxu0 %v2021
    %2060 = vmatprep.subr.mxu0 %v2024
    %2061 = vmatpush1.msra.mxu0 %v2023
    %2062 = vmatprep.subr.mxu0 %v2026
    %2063 = vmatpush1.msra.mxu0 %v2025
    %2064 = vmatprep.subr.mxu0 %v2028
    %2065 = vmatpush1.msra.mxu0 %v2027
    %2066 = vmatprep.subr.mxu0 %v2030
    %2067 = vmatpush1.msra.mxu0 %v2029
    %2068 = vmatprep.subr.mxu0 %v2032
    %2069 = vmatpush1.msra.mxu0 %v2031
    %2070 = vmatprep.subr.mxu0 %v2034
    %2071 = vmatpush1.msra.mxu0 %v2033
    %2072 = vmatprep.subr.mxu0 %v2036
    %2073 = vmatpush1.msra.mxu0 %v2035
    %2074 = vmatprep.subr.mxu0 0.0
    %2075 = vmatpush1.msra.mxu0 0.0
    %2076 = vmatprep.subr.mxu0 0.0
    %2077 = vmatpush1.msra.mxu0 0.0
    %2078 = vmatprep.subr.mxu0 0.0
    %2079 = vmatpush1.msra.mxu0 0.0
    %2080 = vmatprep.subr.mxu0 0.0
    %2081 = vmatpush1.msra.mxu0 0.0
    %2082 = vmatprep.subr.mxu0 0.0
    %2083 = vmatpush1.msra.mxu0 0.0
    %2084 = vmatprep.subr.mxu0 0.0
    %2085 = vmatpush1.msra.mxu0 0.0
    %2086 = vmatprep.subr.mxu0 0.0
    %2087 = vmatpush1.msra.mxu0 0.0
    %2088 = vmatprep.subr.mxu0 0.0
    %2089 = vmatpush1.msra.mxu0 0.0
    %2090 = vmatprep.subr.mxu0 0.0
    %2091 = vmatpush1.msra.mxu0 0.0
    %2092 = vmatprep.subr.mxu0 0.0
    %2093 = vmatpush1.msra.mxu0 0.0
    %2094 = vmatprep.subr.mxu0 0.0
    %2095 = vmatpush1.msra.mxu0 0.0
    %2096 = vmatprep.subr.mxu0 0.0
    %2097 = vmatpush1.msra.mxu0 0.0
    %2098 = vmatprep.subr.mxu0 0.0
    %2099 = vmatpush1.msra.mxu0 0.0
    %2100 = vmatprep.subr.mxu0 0.0
    %2101 = vmatpush1.msra.mxu0 0.0
    %2102 = vmatprep.subr.mxu0 0.0
    %2103 = vmatpush1.msra.mxu0 0.0
    %2104 = vmatprep.subr.mxu0 0.0
    %2105 = vmatpush1.msra.mxu0 0.0
    %2106 = vmatprep.mubr.f32.mxu0 0.0
    %2107 = vmatmul.mubr.f32.gmra.mrb[0].mxu0 %v1780
    %v2108 = vpop.f32.mrb[0].mxu0
    %v2109 = vadd.f32 %v2040, %v2108
    %v2110 = vpop.f32.mrb[0].mxu0
    %v2111 = vadd.f32 %v2041, %v2110
    %2112 = vdwg.mxu0
    %v2113 = vxor.u32 %v2109, 2147483648
    %v2114 = vmul.f32 %v2113, 1.442695
    %v2115 = vpow.pop %v2114
    %v2116 = vadd.f32 %v2115, 1.0
    %v2117 = vrcp.pop %v2116
    %v2118 = vmul.f32 1.0, %v2117
    %v2119 = vand.u32 2147483647, %v2111
    %v2120 = vadd.f32 %v2119, 1.0
    %v2121 = vrcp.pop %v2120
    %v2122 = vmul.f32 %v2111, %v2121
    %v2123 = vmul.f32 %v2118, %v1780
    %v2124 = vsub.f32 1.0, %v2118
    %v2125 = vmul.f32 %v2124, %v2122
    %v2126 = vadd.f32 %v2123, %v2125
    %v2127 = vld [vmem:[#allocation4] sm:$0xff]
    %v2128 = vld [vmem:[#allocation4 + $0x8] sm:$0xff]
    %v2129 = vld [vmem:[#allocation4 + $0x10] sm:$0xff]
    %v2130 = vld [vmem:[#allocation4 + $0x18] sm:$0xff]
    %v2131 = vld [vmem:[#allocation4 + $0x20] sm:$0xff]
    %v2132 = vld [vmem:[#allocation4 + $0x28] sm:$0xff]
    %v2133 = vld [vmem:[#allocation4 + $0x30] sm:$0xff]
    %v2134 = vld [vmem:[#allocation4 + $0x38] sm:$0xff]
    %v2135 = vld [vmem:[#allocation4 + $0x40] sm:$0xff]
    %v2136 = vld [vmem:[#allocation4 + $0x48] sm:$0xff]
    %v2137 = vld [vmem:[#allocation4 + $0x50] sm:$0xff]
    %v2138 = vld [vmem:[#allocation4 + $0x58] sm:$0xff]
    %v2139 = vld [vmem:[#allocation4 + $0x60] sm:$0xff]
    %v2140 = vld [vmem:[#allocation4 + $0x68] sm:$0xff]
    %v2141 = vld [vmem:[#allocation4 + $0x70] sm:$0xff]
    %v2142 = vld [vmem:[#allocation4 + $0x78] sm:$0xff]
    %v2143 = vld [vmem:[#allocation4 + $0x80] sm:$0xff]
    %v2144 = vld [vmem:[#allocation4 + $0x88] sm:$0xff]
    %v2145 = vld [vmem:[#allocation4 + $0x90] sm:$0xff]
    %v2146 = vld [vmem:[#allocation4 + $0x98] sm:$0xff]
    %v2147 = vld [vmem:[#allocation4 + $0xa0] sm:$0xff]
    %v2148 = vld [vmem:[#allocation4 + $0xa8] sm:$0xff]
    %v2149 = vld [vmem:[#allocation4 + $0xb0] sm:$0xff]
    %v2150 = vld [vmem:[#allocation4 + $0xb8] sm:$0xff]
    %v2151 = vld [vmem:[#allocation4 + $0xc0] sm:$0xff]
    %v2152 = vld [vmem:[#allocation4 + $0xc8] sm:$0xff]
    %v2153 = vld [vmem:[#allocation4 + $0xd0] sm:$0xff]
    %v2154 = vld [vmem:[#allocation4 + $0xd8] sm:$0xff]
    %v2155 = vld [vmem:[#allocation4 + $0xe0] sm:$0xff]
    %v2156 = vld [vmem:[#allocation4 + $0xe8] sm:$0xff]
    %v2157 = vld [vmem:[#allocation4 + $0xf0] sm:$0xff]
    %v2158 = vld [vmem:[#allocation4 + $0xf8] sm:$0xff]
    %v2159 = vld [vmem:[#allocation6] sm:$0xff]
    %v2160 = vld [vmem:[#allocation6 + $0x8] sm:$0xff]
    %v2161 = vld [vmem:[#allocation6 + $0x10] sm:$0xff]
    %v2162 = vld [vmem:[#allocation6 + $0x18] sm:$0xff]
    %v2163 = vld [vmem:[#allocation6 + $0x20] sm:$0xff]
    %v2164 = vld [vmem:[#allocation6 + $0x28] sm:$0xff]
    %v2165 = vld [vmem:[#allocation6 + $0x30] sm:$0xff]
    %v2166 = vld [vmem:[#allocation6 + $0x38] sm:$0xff]
    %v2167 = vld [vmem:[#allocation6 + $0x40] sm:$0xff]
    %v2168 = vld [vmem:[#allocation6 + $0x48] sm:$0xff]
    %v2169 = vld [vmem:[#allocation6 + $0x50] sm:$0xff]
    %v2170 = vld [vmem:[#allocation6 + $0x58] sm:$0xff]
    %v2171 = vld [vmem:[#allocation6 + $0x60] sm:$0xff]
    %v2172 = vld [vmem:[#allocation6 + $0x68] sm:$0xff]
    %v2173 = vld [vmem:[#allocation6 + $0x70] sm:$0xff]
    %v2174 = vld [vmem:[#allocation6 + $0x78] sm:$0xff]
    %v2175 = vld [vmem:[#allocation6 + $0x80] sm:$0xff]
    %v2176 = vld [vmem:[#allocation6 + $0x88] sm:$0xff]
    %v2177 = vld [vmem:[#allocation6 + $0x90] sm:$0xff]
    %v2178 = vld [vmem:[#allocation6 + $0x98] sm:$0xff]
    %v2179 = vld [vmem:[#allocation6 + $0xa0] sm:$0xff]
    %v2180 = vld [vmem:[#allocation6 + $0xa8] sm:$0xff]
    %v2181 = vld [vmem:[#allocation6 + $0xb0] sm:$0xff]
    %v2182 = vld [vmem:[#allocation6 + $0xb8] sm:$0xff]
    %v2183 = vld [vmem:[#allocation6 + $0xc0] sm:$0xff]
    %v2184 = vld [vmem:[#allocation6 + $0xc8] sm:$0xff]
    %v2185 = vld [vmem:[#allocation6 + $0xd0] sm:$0xff]
    %v2186 = vld [vmem:[#allocation6 + $0xd8] sm:$0xff]
    %v2187 = vld [vmem:[#allocation6 + $0xe0] sm:$0xff]
    %v2188 = vld [vmem:[#allocation6 + $0xe8] sm:$0xff]
    %v2189 = vld [vmem:[#allocation6 + $0xf0] sm:$0xff]
    %v2190 = vld [vmem:[#allocation6 + $0xf8] sm:$0xff]
    %2191 = vmatprep.subr.mxu0 %v2160
    %2192 = vmatpush1.msra.mxu0 %v2159
    %2193 = vmatprep.subr.mxu0 %v2162
    %2194 = vmatpush1.msra.mxu0 %v2161
    %2195 = vmatprep.subr.mxu0 %v2164
    %2196 = vmatpush1.msra.mxu0 %v2163
    %2197 = vmatprep.subr.mxu0 %v2166
    %2198 = vmatpush1.msra.mxu0 %v2165
    %2199 = vmatprep.subr.mxu0 %v2168
    %2200 = vmatpush1.msra.mxu0 %v2167
    %2201 = vmatprep.subr.mxu0 %v2170
    %2202 = vmatpush1.msra.mxu0 %v2169
    %2203 = vmatprep.subr.mxu0 %v2172
    %2204 = vmatpush1.msra.mxu0 %v2171
    %2205 = vmatprep.subr.mxu0 %v2174
    %2206 = vmatpush1.msra.mxu0 %v2173
    %2207 = vmatprep.subr.mxu0 %v2176
    %2208 = vmatpush1.msra.mxu0 %v2175
    %2209 = vmatprep.subr.mxu0 %v2178
    %2210 = vmatpush1.msra.mxu0 %v2177
    %2211 = vmatprep.subr.mxu0 %v2180
    %2212 = vmatpush1.msra.mxu0 %v2179
    %2213 = vmatprep.subr.mxu0 %v2182
    %2214 = vmatpush1.msra.mxu0 %v2181
    %2215 = vmatprep.subr.mxu0 %v2184
    %2216 = vmatpush1.msra.mxu0 %v2183
    %2217 = vmatprep.subr.mxu0 %v2186
    %2218 = vmatpush1.msra.mxu0 %v2185
    %2219 = vmatprep.subr.mxu0 %v2188
    %2220 = vmatpush1.msra.mxu0 %v2187
    %2221 = vmatprep.subr.mxu0 %v2190
    %2222 = vmatpush1.msra.mxu0 %v2189
    %2223 = vmatprep.subr.mxu0 0.0
    %2224 = vmatpush1.msra.mxu0 0.0
    %2225 = vmatprep.subr.mxu0 0.0
    %2226 = vmatpush1.msra.mxu0 0.0
    %2227 = vmatprep.subr.mxu0 0.0
    %2228 = vmatpush1.msra.mxu0 0.0
    %2229 = vmatprep.subr.mxu0 0.0
    %2230 = vmatpush1.msra.mxu0 0.0
    %2231 = vmatprep.subr.mxu0 0.0
    %2232 = vmatpush1.msra.mxu0 0.0
    %2233 = vmatprep.subr.mxu0 0.0
    %2234 = vmatpush1.msra.mxu0 0.0
    %2235 = vmatprep.subr.mxu0 0.0
    %2236 = vmatpush1.msra.mxu0 0.0
    %2237 = vmatprep.subr.mxu0 0.0
    %2238 = vmatpush1.msra.mxu0 0.0
    %2239 = vmatprep.subr.mxu0 0.0
    %2240 = vmatpush1.msra.mxu0 0.0
    %2241 = vmatprep.subr.mxu0 0.0
    %2242 = vmatpush1.msra.mxu0 0.0
    %2243 = vmatprep.subr.mxu0 0.0
    %2244 = vmatpush1.msra.mxu0 0.0
    %2245 = vmatprep.subr.mxu0 0.0
    %2246 = vmatpush1.msra.mxu0 0.0
    %2247 = vmatprep.subr.mxu0 0.0
    %2248 = vmatpush1.msra.mxu0 0.0
    %2249 = vmatprep.subr.mxu0 0.0
    %2250 = vmatpush1.msra.mxu0 0.0
    %2251 = vmatprep.subr.mxu0 0.0
    %2252 = vmatpush1.msra.mxu0 0.0
    %2253 = vmatprep.subr.mxu0 0.0
    %2254 = vmatpush1.msra.mxu0 0.0
    %2255 = vmatprep.mubr.f32.mxu0 0.0
    %2256 = vmatmul.mubr.f32.gmra.mrb[0].mxu0 %v2002
    %v2257 = vpop.f32.mrb[0].mxu0
    %v2258 = vadd.f32 0.0, %v2257
    %v2259 = vpop.f32.mrb[0].mxu0
    %v2260 = vadd.f32 0.0, %v2259
    %2261 = vdwg.mxu0
    %2262 = vmatprep.subr.mxu0 %v2128
    %2263 = vmatpush1.msra.mxu0 %v2127
    %2264 = vmatprep.subr.mxu0 %v2130
    %2265 = vmatpush1.msra.mxu0 %v2129
    %2266 = vmatprep.subr.mxu0 %v2132
    %2267 = vmatpush1.msra.mxu0 %v2131
    %2268 = vmatprep.subr.mxu0 %v2134
    %2269 = vmatpush1.msra.mxu0 %v2133
    %2270 = vmatprep.subr.mxu0 %v2136
    %2271 = vmatpush1.msra.mxu0 %v2135
    %2272 = vmatprep.subr.mxu0 %v2138
    %2273 = vmatpush1.msra.mxu0 %v2137
    %2274 = vmatprep.subr.mxu0 %v2140
    %2275 = vmatpush1.msra.mxu0 %v2139
    %2276 = vmatprep.subr.mxu0 %v2142
    %2277 = vmatpush1.msra.mxu0 %v2141
    %2278 = vmatprep.subr.mxu0 %v2144
    %2279 = vmatpush1.msra.mxu0 %v2143
    %2280 = vmatprep.subr.mxu0 %v2146
    %2281 = vmatpush1.msra.mxu0 %v2145
    %2282 = vmatprep.subr.mxu0 %v2148
    %2283 = vmatpush1.msra.mxu0 %v2147
    %2284 = vmatprep.subr.mxu0 %v2150
    %2285 = vmatpush1.msra.mxu0 %v2149
    %2286 = vmatprep.subr.mxu0 %v2152
    %2287 = vmatpush1.msra.mxu0 %v2151
    %2288 = vmatprep.subr.mxu0 %v2154
    %2289 = vmatpush1.msra.mxu0 %v2153
    %2290 = vmatprep.subr.mxu0 %v2156
    %2291 = vmatpush1.msra.mxu0 %v2155
    %2292 = vmatprep.subr.mxu0 %v2158
    %2293 = vmatpush1.msra.mxu0 %v2157
    %2294 = vmatprep.subr.mxu0 0.0
    %2295 = vmatpush1.msra.mxu0 0.0
    %2296 = vmatprep.subr.mxu0 0.0
    %2297 = vmatpush1.msra.mxu0 0.0
    %2298 = vmatprep.subr.mxu0 0.0
    %2299 = vmatpush1.msra.mxu0 0.0
    %2300 = vmatprep.subr.mxu0 0.0
    %2301 = vmatpush1.msra.mxu0 0.0
    %2302 = vmatprep.subr.mxu0 0.0
    %2303 = vmatpush1.msra.mxu0 0.0
    %2304 = vmatprep.subr.mxu0 0.0
    %2305 = vmatpush1.msra.mxu0 0.0
    %2306 = vmatprep.subr.mxu0 0.0
    %2307 = vmatpush1.msra.mxu0 0.0
    %2308 = vmatprep.subr.mxu0 0.0
    %2309 = vmatpush1.msra.mxu0 0.0
    %2310 = vmatprep.subr.mxu0 0.0
    %2311 = vmatpush1.msra.mxu0 0.0
    %2312 = vmatprep.subr.mxu0 0.0
    %2313 = vmatpush1.msra.mxu0 0.0
    %2314 = vmatprep.subr.mxu0 0.0
    %2315 = vmatpush1.msra.mxu0 0.0
    %2316 = vmatprep.subr.mxu0 0.0
    %2317 = vmatpush1.msra.mxu0 0.0
    %2318 = vmatprep.subr.mxu0 0.0
    %2319 = vmatpush1.msra.mxu0 0.0
    %2320 = vmatprep.subr.mxu0 0.0
    %2321 = vmatpush1.msra.mxu0 0.0
    %2322 = vmatprep.subr.mxu0 0.0
    %2323 = vmatpush1.msra.mxu0 0.0
    %2324 = vmatprep.subr.mxu0 0.0
    %2325 = vmatpush1.msra.mxu0 0.0
    %2326 = vmatprep.mubr.f32.mxu0 0.0
    %2327 = vmatmul.mubr.f32.gmra.mrb[0].mxu0 %v2126
    %v2328 = vpop.f32.mrb[0].mxu0
    %v2329 = vadd.f32 %v2258, %v2328
    %v2330 = vpop.f32.mrb[0].mxu0
    %v2331 = vadd.f32 %v2260, %v2330
    %2332 = vdwg.mxu0
    %v2333 = vadd.f32 %v2329, %v267
    %v2334 = vadd.f32 %v2331, %v271
    %v2335 = vxor.u32 %v2333, 2147483648
    %v2336 = vmul.f32 %v2335, 1.442695
    %v2337 = vpow.pop %v2336
    %v2338 = vadd.f32 %v2337, 1.0
    %v2339 = vrcp.pop %v2338
    %v2340 = vmul.f32 1.0, %v2339
    %v2341 = vand.u32 2147483647, %v2334
    %v2342 = vadd.f32 %v2341, 1.0
    %v2343 = vrcp.pop %v2342
    %v2344 = vmul.f32 %v2334, %v2343
    %v2345 = vmul.f32 %v2340, %v2002
    %v2346 = vsub.f32 1.0, %v2340
    %v2347 = vmul.f32 %v2346, %v2344
    %v2348 = vadd.f32 %v2345, %v2347
    %s2349 = scalar_lea.vmem [#allocation3], 40
    %2350 = vst [vmem:[%s2349] sm:$0xff] %v2348
    %v2351 = vld [vmem:[%s4] sm:$0xff]
    %v2352 = vld [vmem:[%s4 + $0x8] sm:$0xff]
    %v2353 = vld [vmem:[%s4 + $0x10] sm:$0xff]
    %v2354 = vld [vmem:[%s4 + $0x18] sm:$0xff]
    %v2355 = vld [vmem:[%s4 + $0x20] sm:$0xff]
    %v2356 = vld [vmem:[%s4 + $0x28] sm:$0xff]
    %v2357 = vld [vmem:[%s4 + $0x30] sm:$0xff]
    %v2358 = vld [vmem:[%s4 + $0x38] sm:$0xff]
    %v2359 = vld [vmem:[%s4 + $0x40] sm:$0xff]
    %v2360 = vld [vmem:[%s4 + $0x48] sm:$0xff]
    %v2361 = vld [vmem:[%s4 + $0x50] sm:$0xff]
    %v2362 = vld [vmem:[%s4 + $0x58] sm:$0xff]
    %v2363 = vld [vmem:[%s4 + $0x60] sm:$0xff]
    %v2364 = vld [vmem:[%s4 + $0x68] sm:$0xff]
    %v2365 = vld [vmem:[%s4 + $0x70] sm:$0xff]
    %v2366 = vld [vmem:[%s4 + $0x78] sm:$0xff]
    %v2367 = vld [vmem:[%s4 + $0x80] sm:$0xff]
    %v2368 = vld [vmem:[%s4 + $0x88] sm:$0xff]
    %v2369 = vld [vmem:[%s4 + $0x90] sm:$0xff]
    %v2370 = vld [vmem:[%s4 + $0x98] sm:$0xff]
    %v2371 = vld [vmem:[%s4 + $0xa0] sm:$0xff]
    %v2372 = vld [vmem:[%s4 + $0xa8] sm:$0xff]
    %v2373 = vld [vmem:[%s4 + $0xb0] sm:$0xff]
    %v2374 = vld [vmem:[%s4 + $0xb8] sm:$0xff]
    %v2375 = vld [vmem:[%s4 + $0xc0] sm:$0xff]
    %v2376 = vld [vmem:[%s4 + $0xc8] sm:$0xff]
    %v2377 = vld [vmem:[%s4 + $0xd0] sm:$0xff]
    %v2378 = vld [vmem:[%s4 + $0xd8] sm:$0xff]
    %v2379 = vld [vmem:[%s4 + $0xe0] sm:$0xff]
    %v2380 = vld [vmem:[%s4 + $0xe8] sm:$0xff]
    %v2381 = vld [vmem:[%s4 + $0xf0] sm:$0xff]
    %v2382 = vld [vmem:[%s4 + $0xf8] sm:$0xff]
    %s2383 = smul.u32 6, 2
    %s2384 = smul.addr %s2383, 8
    %s2385 = scalar_lea.vmem [#allocation2], %s2384
    %v2386 = vld [vmem:[%s2385] sm:$0xff]
    %v2387 = vld [vmem:[%s2385 + $0x8] sm:$0xff]
    %2388 = vmatprep.subr.mxu0 %v2352
    %2389 = vmatpush1.msra.mxu0 %v2351
    %2390 = vmatprep.subr.mxu0 %v2354
    %2391 = vmatpush1.msra.mxu0 %v2353
    %2392 = vmatprep.subr.mxu0 %v2356
    %2393 = vmatpush1.msra.mxu0 %v2355
    %2394 = vmatprep.subr.mxu0 %v2358
    %2395 = vmatpush1.msra.mxu0 %v2357
    %2396 = vmatprep.subr.mxu0 %v2360
    %2397 = vmatpush1.msra.mxu0 %v2359
    %2398 = vmatprep.subr.mxu0 %v2362
    %2399 = vmatpush1.msra.mxu0 %v2361
    %2400 = vmatprep.subr.mxu0 %v2364
    %2401 = vmatpush1.msra.mxu0 %v2363
    %2402 = vmatprep.subr.mxu0 %v2366
    %2403 = vmatpush1.msra.mxu0 %v2365
    %2404 = vmatprep.subr.mxu0 %v2368
    %2405 = vmatpush1.msra.mxu0 %v2367
    %2406 = vmatprep.subr.mxu0 %v2370
    %2407 = vmatpush1.msra.mxu0 %v2369
    %2408 = vmatprep.subr.mxu0 %v2372
    %2409 = vmatpush1.msra.mxu0 %v2371
    %2410 = vmatprep.subr.mxu0 %v2374
    %2411 = vmatpush1.msra.mxu0 %v2373
    %2412 = vmatprep.subr.mxu0 %v2376
    %2413 = vmatpush1.msra.mxu0 %v2375
    %2414 = vmatprep.subr.mxu0 %v2378
    %2415 = vmatpush1.msra.mxu0 %v2377
    %2416 = vmatprep.subr.mxu0 %v2380
    %2417 = vmatpush1.msra.mxu0 %v2379
    %2418 = vmatprep.subr.mxu0 %v2382
    %2419 = vmatpush1.msra.mxu0 %v2381
    %2420 = vmatprep.subr.mxu0 0.0
    %2421 = vmatpush1.msra.mxu0 0.0
    %2422 = vmatprep.subr.mxu0 0.0
    %2423 = vmatpush1.msra.mxu0 0.0
    %2424 = vmatprep.subr.mxu0 0.0
    %2425 = vmatpush1.msra.mxu0 0.0
    %2426 = vmatprep.subr.mxu0 0.0
    %2427 = vmatpush1.msra.mxu0 0.0
    %2428 = vmatprep.subr.mxu0 0.0
    %2429 = vmatpush1.msra.mxu0 0.0
    %2430 = vmatprep.subr.mxu0 0.0
    %2431 = vmatpush1.msra.mxu0 0.0
    %2432 = vmatprep.subr.mxu0 0.0
    %2433 = vmatpush1.msra.mxu0 0.0
    %2434 = vmatprep.subr.mxu0 0.0
    %2435 = vmatpush1.msra.mxu0 0.0
    %2436 = vmatprep.subr.mxu0 0.0
    %2437 = vmatpush1.msra.mxu0 0.0
    %2438 = vmatprep.subr.mxu0 0.0
    %2439 = vmatpush1.msra.mxu0 0.0
    %2440 = vmatprep.subr.mxu0 0.0
    %2441 = vmatpush1.msra.mxu0 0.0
    %2442 = vmatprep.subr.mxu0 0.0
    %2443 = vmatpush1.msra.mxu0 0.0
    %2444 = vmatprep.subr.mxu0 0.0
    %2445 = vmatpush1.msra.mxu0 0.0
    %2446 = vmatprep.subr.mxu0 0.0
    %2447 = vmatpush1.msra.mxu0 0.0
    %2448 = vmatprep.subr.mxu0 0.0
    %2449 = vmatpush1.msra.mxu0 0.0
    %2450 = vmatprep.subr.mxu0 0.0
    %2451 = vmatpush1.msra.mxu0 0.0
    %2452 = vmatprep.mubr.f32.mxu0 0.0
    %2453 = vmatmul.mubr.f32.gmra.mrb[0].mxu0 %v2126
    %v2454 = vpop.f32.mrb[0].mxu0
    %v2455 = vadd.f32 %v2386, %v2454
    %v2456 = vpop.f32.mrb[0].mxu0
    %v2457 = vadd.f32 %v2387, %v2456
    %2458 = vdwg.mxu0
    %v2459 = vxor.u32 %v2455, 2147483648
    %v2460 = vmul.f32 %v2459, 1.442695
    %v2461 = vpow.pop %v2460
    %v2462 = vadd.f32 %v2461, 1.0
    %v2463 = vrcp.pop %v2462
    %v2464 = vmul.f32 1.0, %v2463
    %v2465 = vand.u32 2147483647, %v2457
    %v2466 = vadd.f32 %v2465, 1.0
    %v2467 = vrcp.pop %v2466
    %v2468 = vmul.f32 %v2457, %v2467
    %v2469 = vmul.f32 %v2464, %v2126
    %v2470 = vsub.f32 1.0, %v2464
    %v2471 = vmul.f32 %v2470, %v2468
    %v2472 = vadd.f32 %v2469, %v2471
    %v2473 = vld [vmem:[#allocation4] sm:$0xff]
    %v2474 = vld [vmem:[#allocation4 + $0x8] sm:$0xff]
    %v2475 = vld [vmem:[#allocation4 + $0x10] sm:$0xff]
    %v2476 = vld [vmem:[#allocation4 + $0x18] sm:$0xff]
    %v2477 = vld [vmem:[#allocation4 + $0x20] sm:$0xff]
    %v2478 = vld [vmem:[#allocation4 + $0x28] sm:$0xff]
    %v2479 = vld [vmem:[#allocation4 + $0x30] sm:$0xff]
    %v2480 = vld [vmem:[#allocation4 + $0x38] sm:$0xff]
    %v2481 = vld [vmem:[#allocation4 + $0x40] sm:$0xff]
    %v2482 = vld [vmem:[#allocation4 + $0x48] sm:$0xff]
    %v2483 = vld [vmem:[#allocation4 + $0x50] sm:$0xff]
    %v2484 = vld [vmem:[#allocation4 + $0x58] sm:$0xff]
    %v2485 = vld [vmem:[#allocation4 + $0x60] sm:$0xff]
    %v2486 = vld [vmem:[#allocation4 + $0x68] sm:$0xff]
    %v2487 = vld [vmem:[#allocation4 + $0x70] sm:$0xff]
    %v2488 = vld [vmem:[#allocation4 + $0x78] sm:$0xff]
    %v2489 = vld [vmem:[#allocation4 + $0x80] sm:$0xff]
    %v2490 = vld [vmem:[#allocation4 + $0x88] sm:$0xff]
    %v2491 = vld [vmem:[#allocation4 + $0x90] sm:$0xff]
    %v2492 = vld [vmem:[#allocation4 + $0x98] sm:$0xff]
    %v2493 = vld [vmem:[#allocation4 + $0xa0] sm:$0xff]
    %v2494 = vld [vmem:[#allocation4 + $0xa8] sm:$0xff]
    %v2495 = vld [vmem:[#allocation4 + $0xb0] sm:$0xff]
    %v2496 = vld [vmem:[#allocation4 + $0xb8] sm:$0xff]
    %v2497 = vld [vmem:[#allocation4 + $0xc0] sm:$0xff]
    %v2498 = vld [vmem:[#allocation4 + $0xc8] sm:$0xff]
    %v2499 = vld [vmem:[#allocation4 + $0xd0] sm:$0xff]
    %v2500 = vld [vmem:[#allocation4 + $0xd8] sm:$0xff]
    %v2501 = vld [vmem:[#allocation4 + $0xe0] sm:$0xff]
    %v2502 = vld [vmem:[#allocation4 + $0xe8] sm:$0xff]
    %v2503 = vld [vmem:[#allocation4 + $0xf0] sm:$0xff]
    %v2504 = vld [vmem:[#allocation4 + $0xf8] sm:$0xff]
    %v2505 = vld [vmem:[#allocation6] sm:$0xff]
    %v2506 = vld [vmem:[#allocation6 + $0x8] sm:$0xff]
    %v2507 = vld [vmem:[#allocation6 + $0x10] sm:$0xff]
    %v2508 = vld [vmem:[#allocation6 + $0x18] sm:$0xff]
    %v2509 = vld [vmem:[#allocation6 + $0x20] sm:$0xff]
    %v2510 = vld [vmem:[#allocation6 + $0x28] sm:$0xff]
    %v2511 = vld [vmem:[#allocation6 + $0x30] sm:$0xff]
    %v2512 = vld [vmem:[#allocation6 + $0x38] sm:$0xff]
    %v2513 = vld [vmem:[#allocation6 + $0x40] sm:$0xff]
    %v2514 = vld [vmem:[#allocation6 + $0x48] sm:$0xff]
    %v2515 = vld [vmem:[#allocation6 + $0x50] sm:$0xff]
    %v2516 = vld [vmem:[#allocation6 + $0x58] sm:$0xff]
    %v2517 = vld [vmem:[#allocation6 + $0x60] sm:$0xff]
    %v2518 = vld [vmem:[#allocation6 + $0x68] sm:$0xff]
    %v2519 = vld [vmem:[#allocation6 + $0x70] sm:$0xff]
    %v2520 = vld [vmem:[#allocation6 + $0x78] sm:$0xff]
    %v2521 = vld [vmem:[#allocation6 + $0x80] sm:$0xff]
    %v2522 = vld [vmem:[#allocation6 + $0x88] sm:$0xff]
    %v2523 = vld [vmem:[#allocation6 + $0x90] sm:$0xff]
    %v2524 = vld [vmem:[#allocation6 + $0x98] sm:$0xff]
    %v2525 = vld [vmem:[#allocation6 + $0xa0] sm:$0xff]
    %v2526 = vld [vmem:[#allocation6 + $0xa8] sm:$0xff]
    %v2527 = vld [vmem:[#allocation6 + $0xb0] sm:$0xff]
    %v2528 = vld [vmem:[#allocation6 + $0xb8] sm:$0xff]
    %v2529 = vld [vmem:[#allocation6 + $0xc0] sm:$0xff]
    %v2530 = vld [vmem:[#allocation6 + $0xc8] sm:$0xff]
    %v2531 = vld [vmem:[#allocation6 + $0xd0] sm:$0xff]
    %v2532 = vld [vmem:[#allocation6 + $0xd8] sm:$0xff]
    %v2533 = vld [vmem:[#allocation6 + $0xe0] sm:$0xff]
    %v2534 = vld [vmem:[#allocation6 + $0xe8] sm:$0xff]
    %v2535 = vld [vmem:[#allocation6 + $0xf0] sm:$0xff]
    %v2536 = vld [vmem:[#allocation6 + $0xf8] sm:$0xff]
    %2537 = vmatprep.subr.mxu0 %v2506
    %2538 = vmatpush1.msra.mxu0 %v2505
    %2539 = vmatprep.subr.mxu0 %v2508
    %2540 = vmatpush1.msra.mxu0 %v2507
    %2541 = vmatprep.subr.mxu0 %v2510
    %2542 = vmatpush1.msra.mxu0 %v2509
    %2543 = vmatprep.subr.mxu0 %v2512
    %2544 = vmatpush1.msra.mxu0 %v2511
    %2545 = vmatprep.subr.mxu0 %v2514
    %2546 = vmatpush1.msra.mxu0 %v2513
    %2547 = vmatprep.subr.mxu0 %v2516
    %2548 = vmatpush1.msra.mxu0 %v2515
    %2549 = vmatprep.subr.mxu0 %v2518
    %2550 = vmatpush1.msra.mxu0 %v2517
    %2551 = vmatprep.subr.mxu0 %v2520
    %2552 = vmatpush1.msra.mxu0 %v2519
    %2553 = vmatprep.subr.mxu0 %v2522
    %2554 = vmatpush1.msra.mxu0 %v2521
    %2555 = vmatprep.subr.mxu0 %v2524
    %2556 = vmatpush1.msra.mxu0 %v2523
    %2557 = vmatprep.subr.mxu0 %v2526
    %2558 = vmatpush1.msra.mxu0 %v2525
    %2559 = vmatprep.subr.mxu0 %v2528
    %2560 = vmatpush1.msra.mxu0 %v2527
    %2561 = vmatprep.subr.mxu0 %v2530
    %2562 = vmatpush1.msra.mxu0 %v2529
    %2563 = vmatprep.subr.mxu0 %v2532
    %2564 = vmatpush1.msra.mxu0 %v2531
    %2565 = vmatprep.subr.mxu0 %v2534
    %2566 = vmatpush1.msra.mxu0 %v2533
    %2567 = vmatprep.subr.mxu0 %v2536
    %2568 = vmatpush1.msra.mxu0 %v2535
    %2569 = vmatprep.subr.mxu0 0.0
    %2570 = vmatpush1.msra.mxu0 0.0
    %2571 = vmatprep.subr.mxu0 0.0
    %2572 = vmatpush1.msra.mxu0 0.0
    %2573 = vmatprep.subr.mxu0 0.0
    %2574 = vmatpush1.msra.mxu0 0.0
    %2575 = vmatprep.subr.mxu0 0.0
    %2576 = vmatpush1.msra.mxu0 0.0
    %2577 = vmatprep.subr.mxu0 0.0
    %2578 = vmatpush1.msra.mxu0 0.0
    %2579 = vmatprep.subr.mxu0 0.0
    %2580 = vmatpush1.msra.mxu0 0.0
    %2581 = vmatprep.subr.mxu0 0.0
    %2582 = vmatpush1.msra.mxu0 0.0
    %2583 = vmatprep.subr.mxu0 0.0
    %2584 = vmatpush1.msra.mxu0 0.0
    %2585 = vmatprep.subr.mxu0 0.0
    %2586 = vmatpush1.msra.mxu0 0.0
    %2587 = vmatprep.subr.mxu0 0.0
    %2588 = vmatpush1.msra.mxu0 0.0
    %2589 = vmatprep.subr.mxu0 0.0
    %2590 = vmatpush1.msra.mxu0 0.0
    %2591 = vmatprep.subr.mxu0 0.0
    %2592 = vmatpush1.msra.mxu0 0.0
    %2593 = vmatprep.subr.mxu0 0.0
    %2594 = vmatpush1.msra.mxu0 0.0
    %2595 = vmatprep.subr.mxu0 0.0
    %2596 = vmatpush1.msra.mxu0 0.0
    %2597 = vmatprep.subr.mxu0 0.0
    %2598 = vmatpush1.msra.mxu0 0.0
    %2599 = vmatprep.subr.mxu0 0.0
    %2600 = vmatpush1.msra.mxu0 0.0
    %2601 = vmatprep.mubr.f32.mxu0 0.0
    %2602 = vmatmul.mubr.f32.gmra.mrb[0].mxu0 %v2348
    %v2603 = vpop.f32.mrb[0].mxu0
    %v2604 = vadd.f32 0.0, %v2603
    %v2605 = vpop.f32.mrb[0].mxu0
    %v2606 = vadd.f32 0.0, %v2605
    %2607 = vdwg.mxu0
    %2608 = vmatprep.subr.mxu0 %v2474
    %2609 = vmatpush1.msra.mxu0 %v2473
    %2610 = vmatprep.subr.mxu0 %v2476
    %2611 = vmatpush1.msra.mxu0 %v2475
    %2612 = vmatprep.subr.mxu0 %v2478
    %2613 = vmatpush1.msra.mxu0 %v2477
    %2614 = vmatprep.subr.mxu0 %v2480
    %2615 = vmatpush1.msra.mxu0 %v2479
    %2616 = vmatprep.subr.mxu0 %v2482
    %2617 = vmatpush1.msra.mxu0 %v2481
    %2618 = vmatprep.subr.mxu0 %v2484
    %2619 = vmatpush1.msra.mxu0 %v2483
    %2620 = vmatprep.subr.mxu0 %v2486
    %2621 = vmatpush1.msra.mxu0 %v2485
    %2622 = vmatprep.subr.mxu0 %v2488
    %2623 = vmatpush1.msra.mxu0 %v2487
    %2624 = vmatprep.subr.mxu0 %v2490
    %2625 = vmatpush1.msra.mxu0 %v2489
    %2626 = vmatprep.subr.mxu0 %v2492
    %2627 = vmatpush1.msra.mxu0 %v2491
    %2628 = vmatprep.subr.mxu0 %v2494
    %2629 = vmatpush1.msra.mxu0 %v2493
    %2630 = vmatprep.subr.mxu0 %v2496
    %2631 = vmatpush1.msra.mxu0 %v2495
    %2632 = vmatprep.subr.mxu0 %v2498
    %2633 = vmatpush1.msra.mxu0 %v2497
    %2634 = vmatprep.subr.mxu0 %v2500
    %2635 = vmatpush1.msra.mxu0 %v2499
    %2636 = vmatprep.subr.mxu0 %v2502
    %2637 = vmatpush1.msra.mxu0 %v2501
    %2638 = vmatprep.subr.mxu0 %v2504
    %2639 = vmatpush1.msra.mxu0 %v2503
    %2640 = vmatprep.subr.mxu0 0.0
    %2641 = vmatpush1.msra.mxu0 0.0
    %2642 = vmatprep.subr.mxu0 0.0
    %2643 = vmatpush1.msra.mxu0 0.0
    %2644 = vmatprep.subr.mxu0 0.0
    %2645 = vmatpush1.msra.mxu0 0.0
    %2646 = vmatprep.subr.mxu0 0.0
    %2647 = vmatpush1.msra.mxu0 0.0
    %2648 = vmatprep.subr.mxu0 0.0
    %2649 = vmatpush1.msra.mxu0 0.0
    %2650 = vmatprep.subr.mxu0 0.0
    %2651 = vmatpush1.msra.mxu0 0.0
    %2652 = vmatprep.subr.mxu0 0.0
    %2653 = vmatpush1.msra.mxu0 0.0
    %2654 = vmatprep.subr.mxu0 0.0
    %2655 = vmatpush1.msra.mxu0 0.0
    %2656 = vmatprep.subr.mxu0 0.0
    %2657 = vmatpush1.msra.mxu0 0.0
    %2658 = vmatprep.subr.mxu0 0.0
    %2659 = vmatpush1.msra.mxu0 0.0
    %2660 = vmatprep.subr.mxu0 0.0
    %2661 = vmatpush1.msra.mxu0 0.0
    %2662 = vmatprep.subr.mxu0 0.0
    %2663 = vmatpush1.msra.mxu0 0.0
    %2664 = vmatprep.subr.mxu0 0.0
    %2665 = vmatpush1.msra.mxu0 0.0
    %2666 = vmatprep.subr.mxu0 0.0
    %2667 = vmatpush1.msra.mxu0 0.0
    %2668 = vmatprep.subr.mxu0 0.0
    %2669 = vmatpush1.msra.mxu0 0.0
    %2670 = vmatprep.subr.mxu0 0.0
    %2671 = vmatpush1.msra.mxu0 0.0
    %2672 = vmatprep.mubr.f32.mxu0 0.0
    %2673 = vmatmul.mubr.f32.gmra.mrb[0].mxu0 %v2472
    %v2674 = vpop.f32.mrb[0].mxu0
    %v2675 = vadd.f32 %v2604, %v2674
    %v2676 = vpop.f32.mrb[0].mxu0
    %v2677 = vadd.f32 %v2606, %v2676
    %2678 = vdwg.mxu0
    %v2679 = vadd.f32 %v2675, %v267
    %v2680 = vadd.f32 %v2677, %v271
    %v2681 = vxor.u32 %v2679, 2147483648
    %v2682 = vmul.f32 %v2681, 1.442695
    %v2683 = vpow.pop %v2682
    %v2684 = vadd.f32 %v2683, 1.0
    %v2685 = vrcp.pop %v2684
    %v2686 = vmul.f32 1.0, %v2685
    %v2687 = vand.u32 2147483647, %v2680
    %v2688 = vadd.f32 %v2687, 1.0
    %v2689 = vrcp.pop %v2688
    %v2690 = vmul.f32 %v2680, %v2689
    %v2691 = vmul.f32 %v2686, %v2348
    %v2692 = vsub.f32 1.0, %v2686
    %v2693 = vmul.f32 %v2692, %v2690
    %v2694 = vadd.f32 %v2691, %v2693
    %s2695 = scalar_lea.vmem [#allocation3], 48
    %2696 = vst [vmem:[%s2695] sm:$0xff] %v2694
    %v2697 = vld [vmem:[%s4] sm:$0xff]
    %v2698 = vld [vmem:[%s4 + $0x8] sm:$0xff]
    %v2699 = vld [vmem:[%s4 + $0x10] sm:$0xff]
    %v2700 = vld [vmem:[%s4 + $0x18] sm:$0xff]
    %v2701 = vld [vmem:[%s4 + $0x20] sm:$0xff]
    %v2702 = vld [vmem:[%s4 + $0x28] sm:$0xff]
    %v2703 = vld [vmem:[%s4 + $0x30] sm:$0xff]
    %v2704 = vld [vmem:[%s4 + $0x38] sm:$0xff]
    %v2705 = vld [vmem:[%s4 + $0x40] sm:$0xff]
    %v2706 = vld [vmem:[%s4 + $0x48] sm:$0xff]
    %v2707 = vld [vmem:[%s4 + $0x50] sm:$0xff]
    %v2708 = vld [vmem:[%s4 + $0x58] sm:$0xff]
    %v2709 = vld [vmem:[%s4 + $0x60] sm:$0xff]
    %v2710 = vld [vmem:[%s4 + $0x68] sm:$0xff]
    %v2711 = vld [vmem:[%s4 + $0x70] sm:$0xff]
    %v2712 = vld [vmem:[%s4 + $0x78] sm:$0xff]
    %v2713 = vld [vmem:[%s4 + $0x80] sm:$0xff]
    %v2714 = vld [vmem:[%s4 + $0x88] sm:$0xff]
    %v2715 = vld [vmem:[%s4 + $0x90] sm:$0xff]
    %v2716 = vld [vmem:[%s4 + $0x98] sm:$0xff]
    %v2717 = vld [vmem:[%s4 + $0xa0] sm:$0xff]
    %v2718 = vld [vmem:[%s4 + $0xa8] sm:$0xff]
    %v2719 = vld [vmem:[%s4 + $0xb0] sm:$0xff]
    %v2720 = vld [vmem:[%s4 + $0xb8] sm:$0xff]
    %v2721 = vld [vmem:[%s4 + $0xc0] sm:$0xff]
    %v2722 = vld [vmem:[%s4 + $0xc8] sm:$0xff]
    %v2723 = vld [vmem:[%s4 + $0xd0] sm:$0xff]
    %v2724 = vld [vmem:[%s4 + $0xd8] sm:$0xff]
    %v2725 = vld [vmem:[%s4 + $0xe0] sm:$0xff]
    %v2726 = vld [vmem:[%s4 + $0xe8] sm:$0xff]
    %v2727 = vld [vmem:[%s4 + $0xf0] sm:$0xff]
    %v2728 = vld [vmem:[%s4 + $0xf8] sm:$0xff]
    %s2729 = smul.u32 7, 2
    %s2730 = smul.addr %s2729, 8
    %s2731 = scalar_lea.vmem [#allocation2], %s2730
    %v2732 = vld [vmem:[%s2731] sm:$0xff]
    %v2733 = vld [vmem:[%s2731 + $0x8] sm:$0xff]
    %2734 = vmatprep.subr.mxu0 %v2698
    %2735 = vmatpush1.msra.mxu0 %v2697
    %2736 = vmatprep.subr.mxu0 %v2700
    %2737 = vmatpush1.msra.mxu0 %v2699
    %2738 = vmatprep.subr.mxu0 %v2702
    %2739 = vmatpush1.msra.mxu0 %v2701
    %2740 = vmatprep.subr.mxu0 %v2704
    %2741 = vmatpush1.msra.mxu0 %v2703
    %2742 = vmatprep.subr.mxu0 %v2706
    %2743 = vmatpush1.msra.mxu0 %v2705
    %2744 = vmatprep.subr.mxu0 %v2708
    %2745 = vmatpush1.msra.mxu0 %v2707
    %2746 = vmatprep.subr.mxu0 %v2710
    %2747 = vmatpush1.msra.mxu0 %v2709
    %2748 = vmatprep.subr.mxu0 %v2712
    %2749 = vmatpush1.msra.mxu0 %v2711
    %2750 = vmatprep.subr.mxu0 %v2714
    %2751 = vmatpush1.msra.mxu0 %v2713
    %2752 = vmatprep.subr.mxu0 %v2716
    %2753 = vmatpush1.msra.mxu0 %v2715
    %2754 = vmatprep.subr.mxu0 %v2718
    %2755 = vmatpush1.msra.mxu0 %v2717
    %2756 = vmatprep.subr.mxu0 %v2720
    %2757 = vmatpush1.msra.mxu0 %v2719
    %2758 = vmatprep.subr.mxu0 %v2722
    %2759 = vmatpush1.msra.mxu0 %v2721
    %2760 = vmatprep.subr.mxu0 %v2724
    %2761 = vmatpush1.msra.mxu0 %v2723
    %2762 = vmatprep.subr.mxu0 %v2726
    %2763 = vmatpush1.msra.mxu0 %v2725
    %2764 = vmatprep.subr.mxu0 %v2728
    %2765 = vmatpush1.msra.mxu0 %v2727
    %2766 = vmatprep.subr.mxu0 0.0
    %2767 = vmatpush1.msra.mxu0 0.0
    %2768 = vmatprep.subr.mxu0 0.0
    %2769 = vmatpush1.msra.mxu0 0.0
    %2770 = vmatprep.subr.mxu0 0.0
    %2771 = vmatpush1.msra.mxu0 0.0
    %2772 = vmatprep.subr.mxu0 0.0
    %2773 = vmatpush1.msra.mxu0 0.0
    %2774 = vmatprep.subr.mxu0 0.0
    %2775 = vmatpush1.msra.mxu0 0.0
    %2776 = vmatprep.subr.mxu0 0.0
    %2777 = vmatpush1.msra.mxu0 0.0
    %2778 = vmatprep.subr.mxu0 0.0
    %2779 = vmatpush1.msra.mxu0 0.0
    %2780 = vmatprep.subr.mxu0 0.0
    %2781 = vmatpush1.msra.mxu0 0.0
    %2782 = vmatprep.subr.mxu0 0.0
    %2783 = vmatpush1.msra.mxu0 0.0
    %2784 = vmatprep.subr.mxu0 0.0
    %2785 = vmatpush1.msra.mxu0 0.0
    %2786 = vmatprep.subr.mxu0 0.0
    %2787 = vmatpush1.msra.mxu0 0.0
    %2788 = vmatprep.subr.mxu0 0.0
    %2789 = vmatpush1.msra.mxu0 0.0
    %2790 = vmatprep.subr.mxu0 0.0
    %2791 = vmatpush1.msra.mxu0 0.0
    %2792 = vmatprep.subr.mxu0 0.0
    %2793 = vmatpush1.msra.mxu0 0.0
    %2794 = vmatprep.subr.mxu0 0.0
    %2795 = vmatpush1.msra.mxu0 0.0
    %2796 = vmatprep.subr.mxu0 0.0
    %2797 = vmatpush1.msra.mxu0 0.0
    %2798 = vmatprep.mubr.f32.mxu0 0.0
    %2799 = vmatmul.mubr.f32.gmra.mrb[0].mxu0 %v2472
    %v2800 = vpop.f32.mrb[0].mxu0
    %v2801 = vadd.f32 %v2732, %v2800
    %v2802 = vpop.f32.mrb[0].mxu0
    %v2803 = vadd.f32 %v2733, %v2802
    %2804 = vdwg.mxu0
    %v2805 = vxor.u32 %v2801, 2147483648
    %v2806 = vmul.f32 %v2805, 1.442695
    %v2807 = vpow.pop %v2806
    %v2808 = vadd.f32 %v2807, 1.0
    %v2809 = vrcp.pop %v2808
    %v2810 = vmul.f32 1.0, %v2809
    %v2811 = vand.u32 2147483647, %v2803
    %v2812 = vadd.f32 %v2811, 1.0
    %v2813 = vrcp.pop %v2812
    %v2814 = vmul.f32 %v2803, %v2813
    %v2815 = vmul.f32 %v2810, %v2472
    %v2816 = vsub.f32 1.0, %v2810
    %v2817 = vmul.f32 %v2816, %v2814
    %v2818 = vadd.f32 %v2815, %v2817
    %v2819 = vld [vmem:[#allocation4] sm:$0xff]
    %v2820 = vld [vmem:[#allocation4 + $0x8] sm:$0xff]
    %v2821 = vld [vmem:[#allocation4 + $0x10] sm:$0xff]
    %v2822 = vld [vmem:[#allocation4 + $0x18] sm:$0xff]
    %v2823 = vld [vmem:[#allocation4 + $0x20] sm:$0xff]
    %v2824 = vld [vmem:[#allocation4 + $0x28] sm:$0xff]
    %v2825 = vld [vmem:[#allocation4 + $0x30] sm:$0xff]
    %v2826 = vld [vmem:[#allocation4 + $0x38] sm:$0xff]
    %v2827 = vld [vmem:[#allocation4 + $0x40] sm:$0xff]
    %v2828 = vld [vmem:[#allocation4 + $0x48] sm:$0xff]
    %v2829 = vld [vmem:[#allocation4 + $0x50] sm:$0xff]
    %v2830 = vld [vmem:[#allocation4 + $0x58] sm:$0xff]
    %v2831 = vld [vmem:[#allocation4 + $0x60] sm:$0xff]
    %v2832 = vld [vmem:[#allocation4 + $0x68] sm:$0xff]
    %v2833 = vld [vmem:[#allocation4 + $0x70] sm:$0xff]
    %v2834 = vld [vmem:[#allocation4 + $0x78] sm:$0xff]
    %v2835 = vld [vmem:[#allocation4 + $0x80] sm:$0xff]
    %v2836 = vld [vmem:[#allocation4 + $0x88] sm:$0xff]
    %v2837 = vld [vmem:[#allocation4 + $0x90] sm:$0xff]
    %v2838 = vld [vmem:[#allocation4 + $0x98] sm:$0xff]
    %v2839 = vld [vmem:[#allocation4 + $0xa0] sm:$0xff]
    %v2840 = vld [vmem:[#allocation4 + $0xa8] sm:$0xff]
    %v2841 = vld [vmem:[#allocation4 + $0xb0] sm:$0xff]
    %v2842 = vld [vmem:[#allocation4 + $0xb8] sm:$0xff]
    %v2843 = vld [vmem:[#allocation4 + $0xc0] sm:$0xff]
    %v2844 = vld [vmem:[#allocation4 + $0xc8] sm:$0xff]
    %v2845 = vld [vmem:[#allocation4 + $0xd0] sm:$0xff]
    %v2846 = vld [vmem:[#allocation4 + $0xd8] sm:$0xff]
    %v2847 = vld [vmem:[#allocation4 + $0xe0] sm:$0xff]
    %v2848 = vld [vmem:[#allocation4 + $0xe8] sm:$0xff]
    %v2849 = vld [vmem:[#allocation4 + $0xf0] sm:$0xff]
    %v2850 = vld [vmem:[#allocation4 + $0xf8] sm:$0xff]
    %v2851 = vld [vmem:[#allocation6] sm:$0xff]
    %v2852 = vld [vmem:[#allocation6 + $0x8] sm:$0xff]
    %v2853 = vld [vmem:[#allocation6 + $0x10] sm:$0xff]
    %v2854 = vld [vmem:[#allocation6 + $0x18] sm:$0xff]
    %v2855 = vld [vmem:[#allocation6 + $0x20] sm:$0xff]
    %v2856 = vld [vmem:[#allocation6 + $0x28] sm:$0xff]
    %v2857 = vld [vmem:[#allocation6 + $0x30] sm:$0xff]
    %v2858 = vld [vmem:[#allocation6 + $0x38] sm:$0xff]
    %v2859 = vld [vmem:[#allocation6 + $0x40] sm:$0xff]
    %v2860 = vld [vmem:[#allocation6 + $0x48] sm:$0xff]
    %v2861 = vld [vmem:[#allocation6 + $0x50] sm:$0xff]
    %v2862 = vld [vmem:[#allocation6 + $0x58] sm:$0xff]
    %v2863 = vld [vmem:[#allocation6 + $0x60] sm:$0xff]
    %v2864 = vld [vmem:[#allocation6 + $0x68] sm:$0xff]
    %v2865 = vld [vmem:[#allocation6 + $0x70] sm:$0xff]
    %v2866 = vld [vmem:[#allocation6 + $0x78] sm:$0xff]
    %v2867 = vld [vmem:[#allocation6 + $0x80] sm:$0xff]
    %v2868 = vld [vmem:[#allocation6 + $0x88] sm:$0xff]
    %v2869 = vld [vmem:[#allocation6 + $0x90] sm:$0xff]
    %v2870 = vld [vmem:[#allocation6 + $0x98] sm:$0xff]
    %v2871 = vld [vmem:[#allocation6 + $0xa0] sm:$0xff]
    %v2872 = vld [vmem:[#allocation6 + $0xa8] sm:$0xff]
    %v2873 = vld [vmem:[#allocation6 + $0xb0] sm:$0xff]
    %v2874 = vld [vmem:[#allocation6 + $0xb8] sm:$0xff]
    %v2875 = vld [vmem:[#allocation6 + $0xc0] sm:$0xff]
    %v2876 = vld [vmem:[#allocation6 + $0xc8] sm:$0xff]
    %v2877 = vld [vmem:[#allocation6 + $0xd0] sm:$0xff]
    %v2878 = vld [vmem:[#allocation6 + $0xd8] sm:$0xff]
    %v2879 = vld [vmem:[#allocation6 + $0xe0] sm:$0xff]
    %v2880 = vld [vmem:[#allocation6 + $0xe8] sm:$0xff]
    %v2881 = vld [vmem:[#allocation6 + $0xf0] sm:$0xff]
    %v2882 = vld [vmem:[#allocation6 + $0xf8] sm:$0xff]
    %2883 = vmatprep.subr.mxu0 %v2852
    %2884 = vmatpush1.msra.mxu0 %v2851
    %2885 = vmatprep.subr.mxu0 %v2854
    %2886 = vmatpush1.msra.mxu0 %v2853
    %2887 = vmatprep.subr.mxu0 %v2856
    %2888 = vmatpush1.msra.mxu0 %v2855
    %2889 = vmatprep.subr.mxu0 %v2858
    %2890 = vmatpush1.msra.mxu0 %v2857
    %2891 = vmatprep.subr.mxu0 %v2860
    %2892 = vmatpush1.msra.mxu0 %v2859
    %2893 = vmatprep.subr.mxu0 %v2862
    %2894 = vmatpush1.msra.mxu0 %v2861
    %2895 = vmatprep.subr.mxu0 %v2864
    %2896 = vmatpush1.msra.mxu0 %v2863
    %2897 = vmatprep.subr.mxu0 %v2866
    %2898 = vmatpush1.msra.mxu0 %v2865
    %2899 = vmatprep.subr.mxu0 %v2868
    %2900 = vmatpush1.msra.mxu0 %v2867
    %2901 = vmatprep.subr.mxu0 %v2870
    %2902 = vmatpush1.msra.mxu0 %v2869
    %2903 = vmatprep.subr.mxu0 %v2872
    %2904 = vmatpush1.msra.mxu0 %v2871
    %2905 = vmatprep.subr.mxu0 %v2874
    %2906 = vmatpush1.msra.mxu0 %v2873
    %2907 = vmatprep.subr.mxu0 %v2876
    %2908 = vmatpush1.msra.mxu0 %v2875
    %2909 = vmatprep.subr.mxu0 %v2878
    %2910 = vmatpush1.msra.mxu0 %v2877
    %2911 = vmatprep.subr.mxu0 %v2880
    %2912 = vmatpush1.msra.mxu0 %v2879
    %2913 = vmatprep.subr.mxu0 %v2882
    %2914 = vmatpush1.msra.mxu0 %v2881
    %2915 = vmatprep.subr.mxu0 0.0
    %2916 = vmatpush1.msra.mxu0 0.0
    %2917 = vmatprep.subr.mxu0 0.0
    %2918 = vmatpush1.msra.mxu0 0.0
    %2919 = vmatprep.subr.mxu0 0.0
    %2920 = vmatpush1.msra.mxu0 0.0
    %2921 = vmatprep.subr.mxu0 0.0
    %2922 = vmatpush1.msra.mxu0 0.0
    %2923 = vmatprep.subr.mxu0 0.0
    %2924 = vmatpush1.msra.mxu0 0.0
    %2925 = vmatprep.subr.mxu0 0.0
    %2926 = vmatpush1.msra.mxu0 0.0
    %2927 = vmatprep.subr.mxu0 0.0
    %2928 = vmatpush1.msra.mxu0 0.0
    %2929 = vmatprep.subr.mxu0 0.0
    %2930 = vmatpush1.msra.mxu0 0.0
    %2931 = vmatprep.subr.mxu0 0.0
    %2932 = vmatpush1.msra.mxu0 0.0
    %2933 = vmatprep.subr.mxu0 0.0
    %2934 = vmatpush1.msra.mxu0 0.0
    %2935 = vmatprep.subr.mxu0 0.0
    %2936 = vmatpush1.msra.mxu0 0.0
    %2937 = vmatprep.subr.mxu0 0.0
    %2938 = vmatpush1.msra.mxu0 0.0
    %2939 = vmatprep.subr.mxu0 0.0
    %2940 = vmatpush1.msra.mxu0 0.0
    %2941 = vmatprep.subr.mxu0 0.0
    %2942 = vmatpush1.msra.mxu0 0.0
    %2943 = vmatprep.subr.mxu0 0.0
    %2944 = vmatpush1.msra.mxu0 0.0
    %2945 = vmatprep.subr.mxu0 0.0
    %2946 = vmatpush1.msra.mxu0 0.0
    %2947 = vmatprep.mubr.f32.mxu0 0.0
    %2948 = vmatmul.mubr.f32.gmra.mrb[0].mxu0 %v2694
    %v2949 = vpop.f32.mrb[0].mxu0
    %v2950 = vadd.f32 0.0, %v2949
    %v2951 = vpop.f32.mrb[0].mxu0
    %v2952 = vadd.f32 0.0, %v2951
    %2953 = vdwg.mxu0
    %2954 = vmatprep.subr.mxu0 %v2820
    %2955 = vmatpush1.msra.mxu0 %v2819
    %2956 = vmatprep.subr.mxu0 %v2822
    %2957 = vmatpush1.msra.mxu0 %v2821
    %2958 = vmatprep.subr.mxu0 %v2824
    %2959 = vmatpush1.msra.mxu0 %v2823
    %2960 = vmatprep.subr.mxu0 %v2826
    %2961 = vmatpush1.msra.mxu0 %v2825
    %2962 = vmatprep.subr.mxu0 %v2828
    %2963 = vmatpush1.msra.mxu0 %v2827
    %2964 = vmatprep.subr.mxu0 %v2830
    %2965 = vmatpush1.msra.mxu0 %v2829
    %2966 = vmatprep.subr.mxu0 %v2832
    %2967 = vmatpush1.msra.mxu0 %v2831
    %2968 = vmatprep.subr.mxu0 %v2834
    %2969 = vmatpush1.msra.mxu0 %v2833
    %2970 = vmatprep.subr.mxu0 %v2836
    %2971 = vmatpush1.msra.mxu0 %v2835
    %2972 = vmatprep.subr.mxu0 %v2838
    %2973 = vmatpush1.msra.mxu0 %v2837
    %2974 = vmatprep.subr.mxu0 %v2840
    %2975 = vmatpush1.msra.mxu0 %v2839
    %2976 = vmatprep.subr.mxu0 %v2842
    %2977 = vmatpush1.msra.mxu0 %v2841
    %2978 = vmatprep.subr.mxu0 %v2844
    %2979 = vmatpush1.msra.mxu0 %v2843
    %2980 = vmatprep.subr.mxu0 %v2846
    %2981 = vmatpush1.msra.mxu0 %v2845
    %2982 = vmatprep.subr.mxu0 %v2848
    %2983 = vmatpush1.msra.mxu0 %v2847
    %2984 = vmatprep.subr.mxu0 %v2850
    %2985 = vmatpush1.msra.mxu0 %v2849
    %2986 = vmatprep.subr.mxu0 0.0
    %2987 = vmatpush1.msra.mxu0 0.0
    %2988 = vmatprep.subr.mxu0 0.0
    %2989 = vmatpush1.msra.mxu0 0.0
    %2990 = vmatprep.subr.mxu0 0.0
    %2991 = vmatpush1.msra.mxu0 0.0
    %2992 = vmatprep.subr.mxu0 0.0
    %2993 = vmatpush1.msra.mxu0 0.0
    %2994 = vmatprep.subr.mxu0 0.0
    %2995 = vmatpush1.msra.mxu0 0.0
    %2996 = vmatprep.subr.mxu0 0.0
    %2997 = vmatpush1.msra.mxu0 0.0
    %2998 = vmatprep.subr.mxu0 0.0
    %2999 = vmatpush1.msra.mxu0 0.0
    %3000 = vmatprep.subr.mxu0 0.0
    %3001 = vmatpush1.msra.mxu0 0.0
    %3002 = vmatprep.subr.mxu0 0.0
    %3003 = vmatpush1.msra.mxu0 0.0
    %3004 = vmatprep.subr.mxu0 0.0
    %3005 = vmatpush1.msra.mxu0 0.0
    %3006 = vmatprep.subr.mxu0 0.0
    %3007 = vmatpush1.msra.mxu0 0.0
    %3008 = vmatprep.subr.mxu0 0.0
    %3009 = vmatpush1.msra.mxu0 0.0
    %3010 = vmatprep.subr.mxu0 0.0
    %3011 = vmatpush1.msra.mxu0 0.0
    %3012 = vmatprep.subr.mxu0 0.0
    %3013 = vmatpush1.msra.mxu0 0.0
    %3014 = vmatprep.subr.mxu0 0.0
    %3015 = vmatpush1.msra.mxu0 0.0
    %3016 = vmatprep.subr.mxu0 0.0
    %3017 = vmatpush1.msra.mxu0 0.0
    %3018 = vmatprep.mubr.f32.mxu0 0.0
    %3019 = vmatmul.mubr.f32.gmra.mrb[0].mxu0 %v2818
    %v3020 = vpop.f32.mrb[0].mxu0
    %v3021 = vadd.f32 %v2950, %v3020
    %v3022 = vpop.f32.mrb[0].mxu0
    %v3023 = vadd.f32 %v2952, %v3022
    %3024 = vdwg.mxu0
    %v3025 = vadd.f32 %v3021, %v267
    %v3026 = vadd.f32 %v3023, %v271
    %v3027 = vxor.u32 %v3025, 2147483648
    %v3028 = vmul.f32 %v3027, 1.442695
    %v3029 = vpow.pop %v3028
    %v3030 = vadd.f32 %v3029, 1.0
    %v3031 = vrcp.pop %v3030
    %v3032 = vmul.f32 1.0, %v3031
    %v3033 = vand.u32 2147483647, %v3026
    %v3034 = vadd.f32 %v3033, 1.0
    %v3035 = vrcp.pop %v3034
    %v3036 = vmul.f32 %v3026, %v3035
    %v3037 = vmul.f32 %v3032, %v2694
    %v3038 = vsub.f32 1.0, %v3032
    %v3039 = vmul.f32 %v3038, %v3036
    %v3040 = vadd.f32 %v3037, %v3039
    %s3041 = scalar_lea.vmem [#allocation3], 56
    %3042 = vst [vmem:[%s3041] sm:$0xff] %v3040
    %v3043 = vld [vmem:[#allocation3] sm:$0xff]
    %v3044 = vld [vmem:[#allocation3 + $0x8] sm:$0xff]
    %v3045 = vld [vmem:[#allocation3 + $0x10] sm:$0xff]
    %v3046 = vld [vmem:[#allocation3 + $0x18] sm:$0xff]
    %v3047 = vld [vmem:[#allocation3 + $0x20] sm:$0xff]
    %v3048 = vld [vmem:[#allocation3 + $0x28] sm:$0xff]
    %v3049 = vld [vmem:[#allocation3 + $0x30] sm:$0xff]
    %v3050 = vld [vmem:[#allocation3 + $0x38] sm:$0xff]
    %v3051 = vld [vmem:[%s9] sm:$0xff]
    %v3052 = vld [vmem:[%s9 + $0x8] sm:$0xff]
    %v3053 = vld [vmem:[%s9 + $0x10] sm:$0xff]
    %v3054 = vld [vmem:[%s9 + $0x18] sm:$0xff]
    %v3055 = vld [vmem:[%s9 + $0x20] sm:$0xff]
    %v3056 = vld [vmem:[%s9 + $0x28] sm:$0xff]
    %v3057 = vld [vmem:[%s9 + $0x30] sm:$0xff]
    %v3058 = vld [vmem:[%s9 + $0x38] sm:$0xff]
    %v3059 = vld [vmem:[%s9 + $0x40] sm:$0xff]
    %v3060 = vld [vmem:[%s9 + $0x48] sm:$0xff]
    %v3061 = vld [vmem:[%s9 + $0x50] sm:$0xff]
    %v3062 = vld [vmem:[%s9 + $0x58] sm:$0xff]
    %v3063 = vld [vmem:[%s9 + $0x60] sm:$0xff]
    %v3064 = vld [vmem:[%s9 + $0x68] sm:$0xff]
    %v3065 = vld [vmem:[%s9 + $0x70] sm:$0xff]
    %v3066 = vld [vmem:[%s9 + $0x78] sm:$0xff]
    %v3067 = vld [vmem:[%s10] sm:$0x1]
    %v3069 = vlaneseq
    %v3070 = vshrl.u32 %v3069, 7
    %v3071 = vsub.s32 0, %v3070
    %v3072 = vrot.slane %v3067, %v3071
    %3074 = vmatprep.subr.mxu0 0.0
    %3075 = vmatpush1.msra.mxu0 %v3051
    %3076 = vmatprep.subr.mxu0 0.0
    %3077 = vmatpush1.msra.mxu0 %v3052
    %3078 = vmatprep.subr.mxu0 0.0
    %3079 = vmatpush1.msra.mxu0 %v3053
    %3080 = vmatprep.subr.mxu0 0.0
    %3081 = vmatpush1.msra.mxu0 %v3054
    %3082 = vmatprep.subr.mxu0 0.0
    %3083 = vmatpush1.msra.mxu0 %v3055
    %3084 = vmatprep.subr.mxu0 0.0
    %3085 = vmatpush1.msra.mxu0 %v3056
    %3086 = vmatprep.subr.mxu0 0.0
    %3087 = vmatpush1.msra.mxu0 %v3057
    %3088 = vmatprep.subr.mxu0 0.0
    %3089 = vmatpush1.msra.mxu0 %v3058
    %3090 = vmatprep.subr.mxu0 0.0
    %3091 = vmatpush1.msra.mxu0 %v3059
    %3092 = vmatprep.subr.mxu0 0.0
    %3093 = vmatpush1.msra.mxu0 %v3060
    %3094 = vmatprep.subr.mxu0 0.0
    %3095 = vmatpush1.msra.mxu0 %v3061
    %3096 = vmatprep.subr.mxu0 0.0
    %3097 = vmatpush1.msra.mxu0 %v3062
    %3098 = vmatprep.subr.mxu0 0.0
    %3099 = vmatpush1.msra.mxu0 %v3063
    %3100 = vmatprep.subr.mxu0 0.0
    %3101 = vmatpush1.msra.mxu0 %v3064
    %3102 = vmatprep.subr.mxu0 0.0
    %3103 = vmatpush1.msra.mxu0 %v3065
    %3104 = vmatprep.subr.mxu0 0.0
    %3105 = vmatpush1.msra.mxu0 %v3066
    %3106 = vmatprep.subr.mxu0 0.0
    %3107 = vmatpush1.msra.mxu0 0.0
    %3108 = vmatprep.subr.mxu0 0.0
    %3109 = vmatpush1.msra.mxu0 0.0
    %3110 = vmatprep.subr.mxu0 0.0
    %3111 = vmatpush1.msra.mxu0 0.0
    %3112 = vmatprep.subr.mxu0 0.0
    %3113 = vmatpush1.msra.mxu0 0.0
    %3114 = vmatprep.subr.mxu0 0.0
    %3115 = vmatpush1.msra.mxu0 0.0
    %3116 = vmatprep.subr.mxu0 0.0
    %3117 = vmatpush1.msra.mxu0 0.0
    %3118 = vmatprep.subr.mxu0 0.0
    %3119 = vmatpush1.msra.mxu0 0.0
    %3120 = vmatprep.subr.mxu0 0.0
    %3121 = vmatpush1.msra.mxu0 0.0
    %3122 = vmatprep.subr.mxu0 0.0
    %3123 = vmatpush1.msra.mxu0 0.0
    %3124 = vmatprep.subr.mxu0 0.0
    %3125 = vmatpush1.msra.mxu0 0.0
    %3126 = vmatprep.subr.mxu0 0.0
    %3127 = vmatpush1.msra.mxu0 0.0
    %3128 = vmatprep.subr.mxu0 0.0
    %3129 = vmatpush1.msra.mxu0 0.0
    %3130 = vmatprep.subr.mxu0 0.0
    %3131 = vmatpush1.msra.mxu0 0.0
    %3132 = vmatprep.subr.mxu0 0.0
    %3133 = vmatpush1.msra.mxu0 0.0
    %3134 = vmatprep.subr.mxu0 0.0
    %3135 = vmatpush1.msra.mxu0 0.0
    %3136 = vmatprep.subr.mxu0 0.0
    %3137 = vmatpush1.msra.mxu0 0.0
    %3138 = vmatprep.mubr.f32.mxu0 0.0
    %3139 = vmatmul.mubr.f32.gmra.mrb[0].mxu0 %v3043
    %v3140 = vpop.f32.mrb[0].mxu0
    %v3141 = vadd.f32 %v3072, %v3140
    %v3142 = vpop.f32.mrb[0].mxu0
    %3143 = vmatprep.mubr.f32.mxu0 0.0
    %3144 = vmatmul.mubr.f32.gmra.mrb[0].mxu0 %v3044
    %v3145 = vpop.f32.mrb[0].mxu0
    %v3146 = vadd.f32 %v3072, %v3145
    %v3147 = vpop.f32.mrb[0].mxu0
    %3148 = vmatprep.mubr.f32.mxu0 0.0
    %3149 = vmatmul.mubr.f32.gmra.mrb[0].mxu0 %v3045
    %v3150 = vpop.f32.mrb[0].mxu0
    %v3151 = vadd.f32 %v3072, %v3150
    %v3152 = vpop.f32.mrb[0].mxu0
    %3153 = vmatprep.mubr.f32.mxu0 0.0
    %3154 = vmatmul.mubr.f32.gmra.mrb[0].mxu0 %v3046
    %v3155 = vpop.f32.mrb[0].mxu0
    %v3156 = vadd.f32 %v3072, %v3155
    %v3157 = vpop.f32.mrb[0].mxu0
    %3158 = vmatprep.mubr.f32.mxu0 0.0
    %3159 = vmatmul.mubr.f32.gmra.mrb[0].mxu0 %v3047
    %v3160 = vpop.f32.mrb[0].mxu0
    %v3161 = vadd.f32 %v3072, %v3160
    %v3162 = vpop.f32.mrb[0].mxu0
    %3163 = vmatprep.mubr.f32.mxu0 0.0
    %3164 = vmatmul.mubr.f32.gmra.mrb[0].mxu0 %v3048
    %v3165 = vpop.f32.mrb[0].mxu0
    %v3166 = vadd.f32 %v3072, %v3165
    %v3167 = vpop.f32.mrb[0].mxu0
    %3168 = vmatprep.mubr.f32.mxu0 0.0
    %3169 = vmatmul.mubr.f32.gmra.mrb[0].mxu0 %v3049
    %v3170 = vpop.f32.mrb[0].mxu0
    %v3171 = vadd.f32 %v3072, %v3170
    %v3172 = vpop.f32.mrb[0].mxu0
    %3173 = vmatprep.mubr.f32.mxu0 0.0
    %3174 = vmatmul.mubr.f32.gmra.mrb[0].mxu0 %v3050
    %v3175 = vpop.f32.mrb[0].mxu0
    %v3176 = vadd.f32 %v3072, %v3175
    %v3177 = vpop.f32.mrb[0].mxu0
    %3178 = vdwg.mxu0
    %v3179 = vmax.f32 %v3141, 0.0
    %v3180 = vmax.f32 %v3146, 0.0
    %v3181 = vmax.f32 %v3151, 0.0
    %v3182 = vmax.f32 %v3156, 0.0
    %v3183 = vmax.f32 %v3161, 0.0
    %v3184 = vmax.f32 %v3166, 0.0
    %v3185 = vmax.f32 %v3171, 0.0
    %v3186 = vmax.f32 %v3176, 0.0
    %v3187 = vld [vmem:[%s11] sm:$0xff]
    %v3188 = vld [vmem:[%s11 + $0x8] sm:$0xff]
    %v3189 = vld [vmem:[%s11 + $0x10] sm:$0xff]
    %v3190 = vld [vmem:[%s11 + $0x18] sm:$0xff]
    %v3191 = vld [vmem:[%s11 + $0x20] sm:$0xff]
    %v3192 = vld [vmem:[%s11 + $0x28] sm:$0xff]
    %v3193 = vld [vmem:[%s11 + $0x30] sm:$0xff]
    %v3194 = vld [vmem:[%s11 + $0x38] sm:$0xff]
    %v3195 = vld [vmem:[%s12] sm:$0x1]
    %v3197 = vlaneseq
    %v3198 = vshrl.u32 %v3197, 7
    %v3199 = vsub.s32 0, %v3198
    %v3200 = vrot.slane %v3195, %v3199
    %v3203 = vsel %vm108, %v3179, 0
    %v3206 = vsel %vm108, %v3180, 0
    %v3209 = vsel %vm108, %v3181, 0
    %v3212 = vsel %vm108, %v3182, 0
    %v3215 = vsel %vm108, %v3183, 0
    %v3218 = vsel %vm108, %v3184, 0
    %v3221 = vsel %vm108, %v3185, 0
    %v3224 = vsel %vm108, %v3186, 0
    %3226 = vmatprep.subr.mxu0 0.0
    %3227 = vmatpush1.msra.mxu0 %v3187
    %3228 = vmatprep.subr.mxu0 0.0
    %3229 = vmatpush1.msra.mxu0 %v3188
    %3230 = vmatprep.subr.mxu0 0.0
    %3231 = vmatpush1.msra.mxu0 %v3189
    %3232 = vmatprep.subr.mxu0 0.0
    %3233 = vmatpush1.msra.mxu0 %v3190
    %3234 = vmatprep.subr.mxu0 0.0
    %3235 = vmatpush1.msra.mxu0 %v3191
    %3236 = vmatprep.subr.mxu0 0.0
    %3237 = vmatpush1.msra.mxu0 %v3192
    %3238 = vmatprep.subr.mxu0 0.0
    %3239 = vmatpush1.msra.mxu0 %v3193
    %3240 = vmatprep.subr.mxu0 0.0
    %3241 = vmatpush1.msra.mxu0 %v3194
    %3242 = vmatprep.subr.mxu0 0.0
    %3243 = vmatpush1.msra.mxu0 0.0
    %3244 = vmatprep.subr.mxu0 0.0
    %3245 = vmatpush1.msra.mxu0 0.0
    %3246 = vmatprep.subr.mxu0 0.0
    %3247 = vmatpush1.msra.mxu0 0.0
    %3248 = vmatprep.subr.mxu0 0.0
    %3249 = vmatpush1.msra.mxu0 0.0
    %3250 = vmatprep.subr.mxu0 0.0
    %3251 = vmatpush1.msra.mxu0 0.0
    %3252 = vmatprep.subr.mxu0 0.0
    %3253 = vmatpush1.msra.mxu0 0.0
    %3254 = vmatprep.subr.mxu0 0.0
    %3255 = vmatpush1.msra.mxu0 0.0
    %3256 = vmatprep.subr.mxu0 0.0
    %3257 = vmatpush1.msra.mxu0 0.0
    %3258 = vmatprep.subr.mxu0 0.0
    %3259 = vmatpush1.msra.mxu0 0.0
    %3260 = vmatprep.subr.mxu0 0.0
    %3261 = vmatpush1.msra.mxu0 0.0
    %3262 = vmatprep.subr.mxu0 0.0
    %3263 = vmatpush1.msra.mxu0 0.0
    %3264 = vmatprep.subr.mxu0 0.0
    %3265 = vmatpush1.msra.mxu0 0.0
    %3266 = vmatprep.subr.mxu0 0.0
    %3267 = vmatpush1.msra.mxu0 0.0
    %3268 = vmatprep.subr.mxu0 0.0
    %3269 = vmatpush1.msra.mxu0 0.0
    %3270 = vmatprep.subr.mxu0 0.0
    %3271 = vmatpush1.msra.mxu0 0.0
    %3272 = vmatprep.subr.mxu0 0.0
    %3273 = vmatpush1.msra.mxu0 0.0
    %3274 = vmatprep.subr.mxu0 0.0
    %3275 = vmatpush1.msra.mxu0 0.0
    %3276 = vmatprep.subr.mxu0 0.0
    %3277 = vmatpush1.msra.mxu0 0.0
    %3278 = vmatprep.subr.mxu0 0.0
    %3279 = vmatpush1.msra.mxu0 0.0
    %3280 = vmatprep.subr.mxu0 0.0
    %3281 = vmatpush1.msra.mxu0 0.0
    %3282 = vmatprep.subr.mxu0 0.0
    %3283 = vmatpush1.msra.mxu0 0.0
    %3284 = vmatprep.subr.mxu0 0.0
    %3285 = vmatpush1.msra.mxu0 0.0
    %3286 = vmatprep.subr.mxu0 0.0
    %3287 = vmatpush1.msra.mxu0 0.0
    %3288 = vmatprep.subr.mxu0 0.0
    %3289 = vmatpush1.msra.mxu0 0.0
    %3290 = vmatprep.mubr.f32.mxu0 0.0
    %3291 = vmatmul.mubr.f32.gmra.mrb[0].mxu0 %v3203
    %v3292 = vpop.f32.mrb[0].mxu0
    %v3293 = vadd.f32 %v3200, %v3292
    %v3294 = vpop.f32.mrb[0].mxu0
    %3295 = vmatprep.mubr.f32.mxu0 0.0
    %3296 = vmatmul.mubr.f32.gmra.mrb[0].mxu0 %v3206
    %v3297 = vpop.f32.mrb[0].mxu0
    %v3298 = vadd.f32 %v3200, %v3297
    %v3299 = vpop.f32.mrb[0].mxu0
    %3300 = vmatprep.mubr.f32.mxu0 0.0
    %3301 = vmatmul.mubr.f32.gmra.mrb[0].mxu0 %v3209
    %v3302 = vpop.f32.mrb[0].mxu0
    %v3303 = vadd.f32 %v3200, %v3302
    %v3304 = vpop.f32.mrb[0].mxu0
    %3305 = vmatprep.mubr.f32.mxu0 0.0
    %3306 = vmatmul.mubr.f32.gmra.mrb[0].mxu0 %v3212
    %v3307 = vpop.f32.mrb[0].mxu0
    %v3308 = vadd.f32 %v3200, %v3307
    %v3309 = vpop.f32.mrb[0].mxu0
    %3310 = vmatprep.mubr.f32.mxu0 0.0
    %3311 = vmatmul.mubr.f32.gmra.mrb[0].mxu0 %v3215
    %v3312 = vpop.f32.mrb[0].mxu0
    %v3313 = vadd.f32 %v3200, %v3312
    %v3314 = vpop.f32.mrb[0].mxu0
    %3315 = vmatprep.mubr.f32.mxu0 0.0
    %3316 = vmatmul.mubr.f32.gmra.mrb[0].mxu0 %v3218
    %v3317 = vpop.f32.mrb[0].mxu0
    %v3318 = vadd.f32 %v3200, %v3317
    %v3319 = vpop.f32.mrb[0].mxu0
    %3320 = vmatprep.mubr.f32.mxu0 0.0
    %3321 = vmatmul.mubr.f32.gmra.mrb[0].mxu0 %v3221
    %v3322 = vpop.f32.mrb[0].mxu0
    %v3323 = vadd.f32 %v3200, %v3322
    %v3324 = vpop.f32.mrb[0].mxu0
    %3325 = vmatprep.mubr.f32.mxu0 0.0
    %3326 = vmatmul.mubr.f32.gmra.mrb[0].mxu0 %v3224
    %v3327 = vpop.f32.mrb[0].mxu0
    %v3328 = vadd.f32 %v3200, %v3327
    %v3329 = vpop.f32.mrb[0].mxu0
    %3330 = vdwg.mxu0
    %vm3331 = vcmask 64512
    %v3332 = vsel %vm3331, %v3293, -inf
    %3333 = vmax.xlane.f32.xlu0 %v3332
    %v3334 = vpop.xlane.xlu0 %3333
    %v3335 = vsel %vm3331, %v3298, -inf
    %3336 = vmax.xlane.f32.xlu0 %v3335
    %v3337 = vpop.xlane.xlu0 %3336
    %v3338 = vsel %vm3331, %v3303, -inf
    %3339 = vmax.xlane.f32.xlu0 %v3338
    %v3340 = vpop.xlane.xlu0 %3339
    %v3341 = vsel %vm3331, %v3308, -inf
    %3342 = vmax.xlane.f32.xlu0 %v3341
    %v3343 = vpop.xlane.xlu0 %3342
    %v3344 = vsel %vm3331, %v3313, -inf
    %3345 = vmax.xlane.f32.xlu0 %v3344
    %v3346 = vpop.xlane.xlu0 %3345
    %v3347 = vsel %vm3331, %v3318, -inf
    %3348 = vmax.xlane.f32.xlu0 %v3347
    %v3349 = vpop.xlane.xlu0 %3348
    %v3350 = vsel %vm3331, %v3323, -inf
    %3351 = vmax.xlane.f32.xlu0 %v3350
    %v3352 = vpop.xlane.xlu0 %3351
    %v3353 = vsel %vm3331, %v3328, -inf
    %3354 = vmax.xlane.f32.xlu0 %v3353
    %v3355 = vpop.xlane.xlu0 %3354
    %v3356 = vsub.f32 %v3293, %v3334
    %v3357 = vsub.f32 %v3298, %v3337
    %v3358 = vsub.f32 %v3303, %v3340
    %v3359 = vsub.f32 %v3308, %v3343
    %v3360 = vsub.f32 %v3313, %v3346
    %v3361 = vsub.f32 %v3318, %v3349
    %v3362 = vsub.f32 %v3323, %v3352
    %v3363 = vsub.f32 %v3328, %v3355
    %v3364 = vmul.f32 %v3356, 1.442695
    %v3365 = vpow.pop %v3364
    %v3366 = vmul.f32 %v3357, 1.442695
    %v3367 = vpow.pop %v3366
    %v3368 = vmul.f32 %v3358, 1.442695
    %v3369 = vpow.pop %v3368
    %v3370 = vmul.f32 %v3359, 1.442695
    %v3371 = vpow.pop %v3370
    %v3372 = vmul.f32 %v3360, 1.442695
    %v3373 = vpow.pop %v3372
    %v3374 = vmul.f32 %v3361, 1.442695
    %v3375 = vpow.pop %v3374
    %v3376 = vmul.f32 %v3362, 1.442695
    %v3377 = vpow.pop %v3376
    %v3378 = vmul.f32 %v3363, 1.442695
    %v3379 = vpow.pop %v3378
    %v3380 = vsel %vm3331, %v3365, 0.0
    %3381 = vadd.xlane.f32.xlu0 %v3380
    %v3382 = vpop.xlane.xlu0 %3381
    %v3383 = vsel %vm3331, %v3367, 0.0
    %3384 = vadd.xlane.f32.xlu0 %v3383
    %v3385 = vpop.xlane.xlu0 %3384
    %v3386 = vsel %vm3331, %v3369, 0.0
    %3387 = vadd.xlane.f32.xlu0 %v3386
    %v3388 = vpop.xlane.xlu0 %3387
    %v3389 = vsel %vm3331, %v3371, 0.0
    %3390 = vadd.xlane.f32.xlu0 %v3389
    %v3391 = vpop.xlane.xlu0 %3390
    %v3392 = vsel %vm3331, %v3373, 0.0
    %3393 = vadd.xlane.f32.xlu0 %v3392
    %v3394 = vpop.xlane.xlu0 %3393
    %v3395 = vsel %vm3331, %v3375, 0.0
    %3396 = vadd.xlane.f32.xlu0 %v3395
    %v3397 = vpop.xlane.xlu0 %3396
    %v3398 = vsel %vm3331, %v3377, 0.0
    %3399 = vadd.xlane.f32.xlu0 %v3398
    %v3400 = vpop.xlane.xlu0 %3399
    %v3401 = vsel %vm3331, %v3379, 0.0
    %3402 = vadd.xlane.f32.xlu0 %v3401
    %v3403 = vpop.xlane.xlu0 %3402
    %v3404 = vlog2.pop %v3382
    %v3405 = vmul.f32 %v3404, 0.6931472
    %v3406 = vlog2.pop %v3385
    %v3407 = vmul.f32 %v3406, 0.6931472
    %v3408 = vlog2.pop %v3388
    %v3409 = vmul.f32 %v3408, 0.6931472
    %v3410 = vlog2.pop %v3391
    %v3411 = vmul.f32 %v3410, 0.6931472
    %v3412 = vlog2.pop %v3394
    %v3413 = vmul.f32 %v3412, 0.6931472
    %v3414 = vlog2.pop %v3397
    %v3415 = vmul.f32 %v3414, 0.6931472
    %v3416 = vlog2.pop %v3400
    %v3417 = vmul.f32 %v3416, 0.6931472
    %v3418 = vlog2.pop %v3403
    %v3419 = vmul.f32 %v3418, 0.6931472
    %v3420 = vsub.f32 %v3356, %v3405
    %v3421 = vsub.f32 %v3357, %v3407
    %v3422 = vsub.f32 %v3358, %v3409
    %v3423 = vsub.f32 %v3359, %v3411
    %v3424 = vsub.f32 %v3360, %v3413
    %v3425 = vsub.f32 %v3361, %v3415
    %v3426 = vsub.f32 %v3362, %v3417
    %v3427 = vsub.f32 %v3363, %v3419
    %3428 = vst.msk [vmem:[%s13] sm:$0xff] %vm3331, %v3420
    %3429 = vst.msk [vmem:[%s13 + $0x8] sm:$0xff] %vm3331, %v3421
    %3430 = vst.msk [vmem:[%s13 + $0x10] sm:$0xff] %vm3331, %v3422
    %3431 = vst.msk [vmem:[%s13 + $0x18] sm:$0xff] %vm3331, %v3423
    %3432 = vst.msk [vmem:[%s13 + $0x20] sm:$0xff] %vm3331, %v3424
    %3433 = vst.msk [vmem:[%s13 + $0x28] sm:$0xff] %vm3331, %v3425
    %3434 = vst.msk [vmem:[%s13 + $0x30] sm:$0xff] %vm3331, %v3426
    %3435 = vst.msk [vmem:[%s13 + $0x38] sm:$0xff] %vm3331, %v3427
    // Predicated region
    $region62: #{_network_forward_impl.1} parent=1 // pred_check
      _
    $region63: #{_network_forward_impl.1} parent=1 // pred_check_branch
      %3437 = sbr.rel (0) target = $region65
    $region64: #{_network_forward_impl.1} parent=1 // pred_region
      _
    $region65: #{_network_forward_impl.1} parent=1 // pred_fallthru
      _
    // Predicated region
    $region66: #{_network_forward_impl.1} parent=1 // pred_check
      _
    $region67: #{_network_forward_impl.1} parent=1 // pred_check_branch
      %3439 = sbr.rel (0) target = $region69
    $region68: #{_network_forward_impl.1} parent=1 // pred_region
      _
    $region69: #{_network_forward_impl.1} parent=1 // pred_fallthru
      _
    %3440 = vsyncpa [#allocation5], 1
    %3441 = vsyncpa [#allocation7], 1

</llo_original>
